<compile_context>
chip_gen: v7x
topology: tpu7x:2x2x1
jax: 0.10.0
libtpu: 0.0.40
codegen_flags: <defaults>
</compile_context>

<pallas_src>
import functools
import numpy as np
import jax
import jax.numpy as jnp
from jax.experimental import pallas as pl
from jax.experimental.pallas import tpu as pltpu

EPS = 1e-5
LANES = 128


def _round_up(x, m):
    return ((x + m - 1) // m) * m


# ---------------------------------------------------------------------------
# Pallas kernel: fused (patches @ W^T) -> BatchNorm(batch stats) -> ReLU
# grid = (pass, m_tile); pass 0 accumulates per-channel sum / sum-of-squares,
# pass 1 applies (y - mean) * rsqrt(var + eps) * gamma + beta and ReLU.
# ---------------------------------------------------------------------------
def _conv_bn_relu_kernel(p_ref, w_ref, g_ref, b_ref, o_ref, stat_ref, *, m_total, eps):
    pass_id = pl.program_id(0)
    m_idx = pl.program_id(1)

    # bf16 x bf16 -> f32 on the MXU
    y = jnp.dot(p_ref[...], w_ref[...], preferred_element_type=jnp.float32)

    @pl.when((pass_id == 0) & (m_idx == 0))
    def _():
        stat_ref[...] = jnp.zeros_like(stat_ref)

    @pl.when(pass_id == 0)
    def _():
        # f32 accumulators; zero-padded rows/channels contribute exactly 0.
        stat_ref[0:1, :] = stat_ref[0:1, :] + jnp.sum(y, axis=0, keepdims=True)
        stat_ref[1:2, :] = stat_ref[1:2, :] + jnp.sum(y * y, axis=0, keepdims=True)
        o_ref[...] = y  # placeholder write; overwritten in pass 1

    @pl.when(pass_id == 1)
    def _():
        inv_m = 1.0 / m_total
        mean = stat_ref[0:1, :] * inv_m
        var = stat_ref[1:2, :] * inv_m - mean * mean        # biased variance
        scale = jax.lax.rsqrt(var + eps) * g_ref[...]
        shift = b_ref[...] - mean * scale
        o_ref[...] = jnp.maximum(y * scale + shift, 0.0)


def _fused_conv_bn_relu_gemm(patches_bf16, w_t_pad, gamma_pad, beta_pad, m_total):
    M, P = patches_bf16.shape
    cout_pad = w_t_pad.shape[1]

    # M tiling: pad rows with zeros (they contribute nothing to sum/sumsq).
    tm = min(1024, _round_up(M, 8))
    m_pad = _round_up(M, tm)
    if m_pad != M:
        patches_bf16 = jnp.pad(patches_bf16, ((0, m_pad - M), (0, 0)))
    n_tiles = m_pad // tm

    kernel = functools.partial(_conv_bn_relu_kernel, m_total=float(m_total), eps=EPS)

    bytes_accessed = (2 * m_pad * P * 2            # patches read in both passes (bf16)
                      + P * cout_pad * 2           # weights (bf16)
                      + 2 * m_pad * cout_pad * 4)  # output written in both passes (f32)

    out = pl.pallas_call(
        kernel,
        out_shape=jax.ShapeDtypeStruct((m_pad, cout_pad), jnp.float32),
        grid_spec=pltpu.PrefetchScalarGridSpec(
            num_scalar_prefetch=0,
            grid=(2, n_tiles),
            in_specs=[
                pl.BlockSpec((tm, P), lambda p, m: (m, 0)),
                pl.BlockSpec((P, cout_pad), lambda p, m: (0, 0)),
                pl.BlockSpec((1, cout_pad), lambda p, m: (0, 0)),
                pl.BlockSpec((1, cout_pad), lambda p, m: (0, 0)),
            ],
            out_specs=pl.BlockSpec((tm, cout_pad), lambda p, m: (m, 0)),
            scratch_shapes=[pltpu.VMEM((2, cout_pad), jnp.float32)],
        ),
        compiler_params=pltpu.CompilerParams(
            # stats scratch accumulates across both axes -> must stay sequential
            dimension_semantics=("arbitrary", "arbitrary"),
            vmem_limit_bytes=32 * 1024 * 1024,
        ),
        cost_estimate=pl.CostEstimate(
            flops=2 * 2 * m_pad * P * cout_pad,
            transcendentals=0,
            bytes_accessed=bytes_accessed,
        ),
    )(patches_bf16, w_t_pad, gamma_pad, beta_pad)
    return out[:M]


# ---------------------------------------------------------------------------
# Glue: NHWC im2col (stride 1, pad 1) producing (c, kh, kw)-ordered columns.
# ---------------------------------------------------------------------------
def _im2col_nhwc(x_nhwc, k=3, pad=1):
    N, H, W, C = x_nhwc.shape
    xp = jnp.pad(x_nhwc, ((0, 0), (pad, pad), (pad, pad), (0, 0)))
    taps = []
    for kh in range(k):
        for kw in range(k):
            taps.append(xp[:, kh:kh + H, kw:kw + W, :])
    p = jnp.stack(taps, axis=3).reshape(N, H, W, k, k, C)
    p = p.transpose(0, 1, 2, 5, 3, 4)              # [N,H,W,C,kh,kw]
    return p.reshape(N, H, W, C * k * k)


def conv_bn_relu_nhwc(patches_nhwp, w, gamma, beta):
    """patches: [N,Ho,Wo,Cin*9]; w: [Cout,Cin,3,3] torch layout; -> [N,Ho,Wo,Cout]."""
    N, Ho, Wo, P = patches_nhwp.shape
    Cout = w.shape[0]
    cout_pad = _round_up(max(Cout, LANES), LANES)

    w_t = w.reshape(Cout, P).T.astype(jnp.bfloat16)                 # (cin,kh,kw) x Cout
    w_t = jnp.pad(w_t, ((0, 0), (0, cout_pad - Cout)))              # lane-dense Cout
    g = jnp.pad(gamma.reshape(1, Cout).astype(jnp.float32), ((0, 0), (0, cout_pad - Cout)))
    b = jnp.pad(beta.reshape(1, Cout).astype(jnp.float32), ((0, 0), (0, cout_pad - Cout)))

    M = N * Ho * Wo
    out = _fused_conv_bn_relu_gemm(
        patches_nhwp.reshape(M, P).astype(jnp.bfloat16), w_t, g, b, M)
    return out[:, :Cout].reshape(N, Ho, Wo, Cout)


# ---------------------------------------------------------------------------
# mainNet forward
# ---------------------------------------------------------------------------
def init_params(key, in_size, out_size):
    def init_conv(k, cin, cout, ksz=3):
        k1, k2 = jax.random.split(k)
        bound = 1.0 / np.sqrt(cin * ksz * ksz)
        w = jax.random.uniform(k1, (cout, cin, ksz, ksz), jnp.float32, -bound, bound)
        b = jax.random.uniform(k2, (cout,), jnp.float32, -bound, bound)
        return w, b

    k1, k2, k3 = jax.random.split(key, 3)
    w1, b1 = init_conv(k1, in_size, out_size)
    w2, b2 = init_conv(k2, out_size, out_size)
    w3, b3 = init_conv(k3, in_size, out_size)
    bn = lambda c: (jnp.ones((c,), jnp.float32), jnp.zeros((c,), jnp.float32))
    g1, be1 = bn(out_size)
    g2, be2 = bn(out_size)
    g3, be3 = bn(out_size)
    # NOTE: conv biases (b1..b3) are kept for parity with torch but never applied:
    # training-mode BatchNorm subtracts the per-channel batch mean right after the
    # conv, so the bias cancels exactly.
    return dict(w1=w1, b1=b1, g1=g1, be1=be1,
                w2=w2, b2=b2, g2=g2, be2=be2,
                w3=w3, b3=b3, g3=g3, be3=be3)


@jax.jit
def main_net_forward(params, x_nchw):
    # single NCHW -> NHWC conversion at the input
    x = jnp.transpose(x_nchw, (0, 2, 3, 1))

    # shared stride-1 im2col for conv1 (stride 1) and conv3 (stride 2)
    p1 = _im2col_nhwc(x)                                   # [N,H,W,Cin*9]

    # Conv_right: conv(s=1)+BN+ReLU -> conv(s=1)+BN+ReLU (stays NHWC in between)
    h = conv_bn_relu_nhwc(p1, params["w1"], params["g1"], params["be1"])
    p2 = _im2col_nhwc(h)
    two_conv = conv_bn_relu_nhwc(p2, params["w2"], params["g2"], params["be2"])

    # Conv_down: conv(s=2)+BN+ReLU — stride-2 patches are the ::2,::2 subset
    p3 = p1[:, ::2, ::2, :]
    down2r = conv_bn_relu_nhwc(p3, params["w3"], params["g3"], params["be3"])

    # back to torch NCHW only at the outputs
    return (jnp.transpose(two_conv, (0, 3, 1, 2)),
            jnp.transpose(down2r, (0, 3, 1, 2)))


if __name__ == "__main__":
    key = jax.random.PRNGKey(0)
    kx, kp = jax.random.split(key)

    N, Cin, H, W = 2, 4, 16, 16
    Cout = 8
    x = jax.random.normal(kx, (N, Cin, H, W), dtype=jnp.float32)
    params = init_params(kp, Cin, Cout)

    two_conv, down2r = main_net_forward(params, x)
    jax.block_until_ready(two_conv)
    jax.block_until_ready(down2r)

    assert two_conv.shape == (N, Cout, H, W), two_conv.shape
    assert down2r.shape == (N, Cout, H // 2, W // 2), down2r.shape
    assert bool(jnp.all(jnp.isfinite(two_conv))) and bool(jnp.all(jnp.isfinite(down2r)))
    assert bool(jnp.all(two_conv >= 0)) and bool(jnp.all(down2r >= 0))  # ReLU
    print("KERNEL_OK")
</pallas_src>

<mosaic_0001>
module attributes {stable_mosaic.version = 11 : i64} {
  func.func @_conv_bn_relu_kernel(%arg0: i32, %arg1: i32, %arg2: memref<512x36xbf16, #tpu.memory_space<vmem>>, %arg3: memref<36x128xbf16, #tpu.memory_space<vmem>>, %arg4: memref<1x128xf32, #tpu.memory_space<vmem>>, %arg5: memref<1x128xf32, #tpu.memory_space<vmem>>, %arg6: memref<512x128xf32, #tpu.memory_space<vmem>>, %arg7: memref<2x128xf32, #tpu.memory_space<vmem>>) attributes {dimension_semantics = [#tpu.dimension_semantics<arbitrary>, #tpu.dimension_semantics<arbitrary>], iteration_bounds = array<i64: 2, 1>, scalar_prefetch = 0 : i64, scratch_operands = 1 : i64, tpu.core_type = #tpu.core_type<tc>, window_params = [{transform_indices = @transform_0, window_bounds = array<i64: 512, 36>}, {pipeline_mode = #tpu.pipeline_mode<synchronous>, transform_indices = @transform_1, window_bounds = array<i64: 36, 128>}, {pipeline_mode = #tpu.pipeline_mode<synchronous>, transform_indices = @transform_2, window_bounds = array<i64: 1, 128>}, {pipeline_mode = #tpu.pipeline_mode<synchronous>, transform_indices = @transform_3, window_bounds = array<i64: 1, 128>}, {transform_indices = @transform_4, window_bounds = array<i64: 512, 128>}]} {
    %c0 = arith.constant 0 : index
    %c0_0 = arith.constant 0 : index
    %0 = vector.load %arg2[%c0, %c0_0] : memref<512x36xbf16, #tpu.memory_space<vmem>>, vector<512x36xbf16>
    %c0_1 = arith.constant 0 : index
    %c0_2 = arith.constant 0 : index
    %1 = vector.load %arg3[%c0_1, %c0_2] : memref<36x128xbf16, #tpu.memory_space<vmem>>, vector<36x128xbf16>
    %cst = arith.constant dense<0.000000e+00> : vector<512x128xf32>
    %2 = tpu.matmul %0, %1, %cst {dimension_numbers = #tpu.dot_dimension_numbers<[1], [0], [0], [1], [0, 0, 1, 1], [], []>} : vector<512x36xbf16>, vector<36x128xbf16>, vector<512x128xf32> -> vector<512x128xf32>
    %c0_i32 = arith.constant 0 : i32
    %3 = arith.cmpi eq, %arg0, %c0_i32 : i32
    %c0_i32_3 = arith.constant 0 : i32
    %4 = arith.cmpi eq, %arg1, %c0_i32_3 : i32
    %5 = arith.andi %3, %4 : i1
    %6 = arith.extui %5 : i1 to i32
    %c0_i32_4 = arith.constant 0 : i32
    %7 = arith.cmpi ne, %6, %c0_i32_4 : i32
    scf.if %7 {
      %cst_8 = arith.constant 0.000000e+00 : f32
      %14 = vector.broadcast %cst_8 : f32 to vector<2x128xf32>
      %c0_9 = arith.constant 0 : index
      %c0_10 = arith.constant 0 : index
      %15 = vector.load %arg7[%c0_9, %c0_10] : memref<2x128xf32, #tpu.memory_space<vmem>>, vector<2x128xf32>
      tpu.vector_store %arg7[%c0_9, %c0_10], %14 {strides = array<i32>} : memref<2x128xf32, #tpu.memory_space<vmem>>, vector<2x128xf32>,
    } else {
    }
    %c0_i32_5 = arith.constant 0 : i32
    %8 = arith.cmpi eq, %arg0, %c0_i32_5 : i32
    %9 = arith.extui %8 : i1 to i32
    %c0_i32_6 = arith.constant 0 : i32
    %10 = arith.cmpi ne, %9, %c0_i32_6 : i32
    scf.if %10 {
      %c0_8 = arith.constant 0 : index
      %c0_9 = arith.constant 0 : index
      %14 = vector.load %arg7[%c0_8, %c0_9] : memref<2x128xf32, #tpu.memory_space<vmem>>, vector<1x128xf32>
      %cst_10 = arith.constant dense<0.000000e+00> : vector<128xf32>
      %15 = vector.multi_reduction <add>, %2, %cst_10 [0] : vector<512x128xf32> to vector<128xf32>
      %16 = vector.shape_cast %15 : vector<128xf32> to vector<1x128xf32>
      %17 = arith.addf %14, %16 : vector<1x128xf32>
      %c0_11 = arith.constant 0 : index
      %c0_12 = arith.constant 0 : index
      %18 = vector.load %arg7[%c0_11, %c0_12] : memref<2x128xf32, #tpu.memory_space<vmem>>, vector<1x128xf32>
      tpu.vector_store %arg7[%c0_11, %c0_12], %17 {strides = array<i32>} : memref<2x128xf32, #tpu.memory_space<vmem>>, vector<1x128xf32>,
      %c1 = arith.constant 1 : index
      %c0_13 = arith.constant 0 : index
      %19 = vector.load %arg7[%c1, %c0_13] : memref<2x128xf32, #tpu.memory_space<vmem>>, vector<1x128xf32>
      %20 = arith.mulf %2, %2 : vector<512x128xf32>
      %cst_14 = arith.constant dense<0.000000e+00> : vector<128xf32>
      %21 = vector.multi_reduction <add>, %20, %cst_14 [0] : vector<512x128xf32> to vector<128xf32>
      %22 = vector.shape_cast %21 : vector<128xf32> to vector<1x128xf32>
      %23 = arith.addf %19, %22 : vector<1x128xf32>
      %c1_15 = arith.constant 1 : index
      %c0_16 = arith.constant 0 : index
      %24 = vector.load %arg7[%c1_15, %c0_16] : memref<2x128xf32, #tpu.memory_space<vmem>>, vector<1x128xf32>
      tpu.vector_store %arg7[%c1_15, %c0_16], %23 {strides = array<i32>} : memref<2x128xf32, #tpu.memory_space<vmem>>, vector<1x128xf32>,
      %c0_17 = arith.constant 0 : index
      %c0_18 = arith.constant 0 : index
      %25 = vector.load %arg6[%c0_17, %c0_18] : memref<512x128xf32, #tpu.memory_space<vmem>>, vector<512x128xf32>
      tpu.vector_store %arg6[%c0_17, %c0_18], %2 {strides = array<i32>} : memref<512x128xf32, #tpu.memory_space<vmem>>, vector<512x128xf32>,
    } else {
    }
    %c1_i32 = arith.constant 1 : i32
    %11 = arith.cmpi eq, %arg0, %c1_i32 : i32
    %12 = arith.extui %11 : i1 to i32
    %c0_i32_7 = arith.constant 0 : i32
    %13 = arith.cmpi ne, %12, %c0_i32_7 : i32
    scf.if %13 {
      %c0_8 = arith.constant 0 : index
      %c0_9 = arith.constant 0 : index
      %14 = vector.load %arg7[%c0_8, %c0_9] : memref<2x128xf32, #tpu.memory_space<vmem>>, vector<1x128xf32>
      %cst_10 = arith.constant 0.001953125 : f32
      %15 = vector.broadcast %cst_10 : f32 to vector<1x128xf32>
      %16 = arith.mulf %14, %15 : vector<1x128xf32>
      %c1 = arith.constant 1 : index
      %c0_11 = arith.constant 0 : index
      %17 = vector.load %arg7[%c1, %c0_11] : memref<2x128xf32, #tpu.memory_space<vmem>>, vector<1x128xf32>
      %cst_12 = arith.constant 0.001953125 : f32
      %18 = vector.broadcast %cst_12 : f32 to vector<1x128xf32>
      %19 = arith.mulf %17, %18 : vector<1x128xf32>
      %20 = arith.mulf %16, %16 : vector<1x128xf32>
      %21 = arith.subf %19, %20 : vector<1x128xf32>
      %cst_13 = arith.constant 9.99999974E-6 : f32
      %22 = vector.broadcast %cst_13 : f32 to vector<1x128xf32>
      %23 = arith.addf %21, %22 : vector<1x128xf32>
      %24 = math.rsqrt %23 : vector<1x128xf32>
      %c0_14 = arith.constant 0 : index
      %c0_15 = arith.constant 0 : index
      %25 = vector.load %arg4[%c0_14, %c0_15] : memref<1x128xf32, #tpu.memory_space<vmem>>, vector<1x128xf32>
      %26 = arith.mulf %24, %25 : vector<1x128xf32>
      %c0_16 = arith.constant 0 : index
      %c0_17 = arith.constant 0 : index
      %27 = vector.load %arg5[%c0_16, %c0_17] : memref<1x128xf32, #tpu.memory_space<vmem>>, vector<1x128xf32>
      %28 = arith.mulf %16, %26 : vector<1x128xf32>
      %29 = arith.subf %27, %28 : vector<1x128xf32>
      %30 = vector.broadcast %26 : vector<1x128xf32> to vector<512x128xf32>
      %31 = arith.mulf %2, %30 : vector<512x128xf32>
      %32 = vector.broadcast %29 : vector<1x128xf32> to vector<512x128xf32>
      %33 = arith.addf %31, %32 : vector<512x128xf32>
      %cst_18 = arith.constant 0.000000e+00 : f32
      %34 = vector.broadcast %cst_18 : f32 to vector<512x128xf32>
      %35 = arith.maximumf %33, %34 : vector<512x128xf32>
      %c0_19 = arith.constant 0 : index
      %c0_20 = arith.constant 0 : index
      %36 = vector.load %arg6[%c0_19, %c0_20] : memref<512x128xf32, #tpu.memory_space<vmem>>, vector<512x128xf32>
      tpu.vector_store %arg6[%c0_19, %c0_20], %35 {strides = array<i32>} : memref<512x128xf32, #tpu.memory_space<vmem>>, vector<512x128xf32>,
    } else {
    }
    return
  }
  func.func @transform_0(%arg0: i32, %arg1: i32) -> (i32, i32) {
    %c0_i32 = arith.constant 0 : i32
    %c0_i32_0 = arith.constant 0 : i32
    return %arg1, %c0_i32 : i32, i32
  }
  func.func @transform_1(%arg0: i32, %arg1: i32) -> (i32, i32) {
    %c0_i32 = arith.constant 0 : i32
    %c0_i32_0 = arith.constant 0 : i32
    %c0_i32_1 = arith.constant 0 : i32
    return %c0_i32, %c0_i32_0 : i32, i32
  }
  func.func @transform_2(%arg0: i32, %arg1: i32) -> (i32, i32) {
    %c0_i32 = arith.constant 0 : i32
    %c0_i32_0 = arith.constant 0 : i32
    %c0_i32_1 = arith.constant 0 : i32
    return %c0_i32, %c0_i32_0 : i32, i32
  }
  func.func @transform_3(%arg0: i32, %arg1: i32) -> (i32, i32) {
    %c0_i32 = arith.constant 0 : i32
    %c0_i32_0 = arith.constant 0 : i32
    %c0_i32_1 = arith.constant 0 : i32
    return %c0_i32, %c0_i32_0 : i32, i32
  }
  func.func @transform_4(%arg0: i32, %arg1: i32) -> (i32, i32) {
    %c0_i32 = arith.constant 0 : i32
    %c0_i32_0 = arith.constant 0 : i32
    return %arg1, %c0_i32 : i32, i32
  }
}

module attributes {stable_mosaic.version = 11 : i64} {
  func.func @_conv_bn_relu_kernel(%arg0: i32, %arg1: i32, %arg2: memref<128x36xbf16, #tpu.memory_space<vmem>>, %arg3: memref<36x128xbf16, #tpu.memory_space<vmem>>, %arg4: memref<1x128xf32, #tpu.memory_space<vmem>>, %arg5: memref<1x128xf32, #tpu.memory_space<vmem>>, %arg6: memref<128x128xf32, #tpu.memory_space<vmem>>, %arg7: memref<2x128xf32, #tpu.memory_space<vmem>>) attributes {dimension_semantics = [#tpu.dimension_semantics<arbitrary>, #tpu.dimension_semantics<arbitrary>], iteration_bounds = array<i64: 2, 1>, scalar_prefetch = 0 : i64, scratch_operands = 1 : i64, tpu.core_type = #tpu.core_type<tc>, window_params = [{transform_indices = @transform_0, window_bounds = array<i64: 128, 36>}, {pipeline_mode = #tpu.pipeline_mode<synchronous>, transform_indices = @transform_1, window_bounds = array<i64: 36, 128>}, {pipeline_mode = #tpu.pipeline_mode<synchronous>, transform_indices = @transform_2, window_bounds = array<i64: 1, 128>}, {pipeline_mode = #tpu.pipeline_mode<synchronous>, transform_indices = @transform_3, window_bounds = array<i64: 1, 128>}, {transform_indices = @transform_4, window_bounds = array<i64: 128, 128>}]} {
    %c0 = arith.constant 0 : index
    %c0_0 = arith.constant 0 : index
    %0 = vector.load %arg2[%c0, %c0_0] : memref<128x36xbf16, #tpu.memory_space<vmem>>, vector<128x36xbf16>
    %c0_1 = arith.constant 0 : index
    %c0_2 = arith.constant 0 : index
    %1 = vector.load %arg3[%c0_1, %c0_2] : memref<36x128xbf16, #tpu.memory_space<vmem>>, vector<36x128xbf16>
    %cst = arith.constant dense<0.000000e+00> : vector<128x128xf32>
    %2 = tpu.matmul %0, %1, %cst {dimension_numbers = #tpu.dot_dimension_numbers<[1], [0], [0], [1], [0, 0, 1, 1], [], []>} : vector<128x36xbf16>, vector<36x128xbf16>, vector<128x128xf32> -> vector<128x128xf32>
    %c0_i32 = arith.constant 0 : i32
    %3 = arith.cmpi eq, %arg0, %c0_i32 : i32
    %c0_i32_3 = arith.constant 0 : i32
    %4 = arith.cmpi eq, %arg1, %c0_i32_3 : i32
    %5 = arith.andi %3, %4 : i1
    %6 = arith.extui %5 : i1 to i32
    %c0_i32_4 = arith.constant 0 : i32
    %7 = arith.cmpi ne, %6, %c0_i32_4 : i32
    scf.if %7 {
      %cst_8 = arith.constant 0.000000e+00 : f32
      %14 = vector.broadcast %cst_8 : f32 to vector<2x128xf32>
      %c0_9 = arith.constant 0 : index
      %c0_10 = arith.constant 0 : index
      %15 = vector.load %arg7[%c0_9, %c0_10] : memref<2x128xf32, #tpu.memory_space<vmem>>, vector<2x128xf32>
      tpu.vector_store %arg7[%c0_9, %c0_10], %14 {strides = array<i32>} : memref<2x128xf32, #tpu.memory_space<vmem>>, vector<2x128xf32>,
    } else {
    }
    %c0_i32_5 = arith.constant 0 : i32
    %8 = arith.cmpi eq, %arg0, %c0_i32_5 : i32
    %9 = arith.extui %8 : i1 to i32
    %c0_i32_6 = arith.constant 0 : i32
    %10 = arith.cmpi ne, %9, %c0_i32_6 : i32
    scf.if %10 {
      %c0_8 = arith.constant 0 : index
      %c0_9 = arith.constant 0 : index
      %14 = vector.load %arg7[%c0_8, %c0_9] : memref<2x128xf32, #tpu.memory_space<vmem>>, vector<1x128xf32>
      %cst_10 = arith.constant dense<0.000000e+00> : vector<128xf32>
      %15 = vector.multi_reduction <add>, %2, %cst_10 [0] : vector<128x128xf32> to vector<128xf32>
      %16 = vector.shape_cast %15 : vector<128xf32> to vector<1x128xf32>
      %17 = arith.addf %14, %16 : vector<1x128xf32>
      %c0_11 = arith.constant 0 : index
      %c0_12 = arith.constant 0 : index
      %18 = vector.load %arg7[%c0_11, %c0_12] : memref<2x128xf32, #tpu.memory_space<vmem>>, vector<1x128xf32>
      tpu.vector_store %arg7[%c0_11, %c0_12], %17 {strides = array<i32>} : memref<2x128xf32, #tpu.memory_space<vmem>>, vector<1x128xf32>,
      %c1 = arith.constant 1 : index
      %c0_13 = arith.constant 0 : index
      %19 = vector.load %arg7[%c1, %c0_13] : memref<2x128xf32, #tpu.memory_space<vmem>>, vector<1x128xf32>
      %20 = arith.mulf %2, %2 : vector<128x128xf32>
      %cst_14 = arith.constant dense<0.000000e+00> : vector<128xf32>
      %21 = vector.multi_reduction <add>, %20, %cst_14 [0] : vector<128x128xf32> to vector<128xf32>
      %22 = vector.shape_cast %21 : vector<128xf32> to vector<1x128xf32>
      %23 = arith.addf %19, %22 : vector<1x128xf32>
      %c1_15 = arith.constant 1 : index
      %c0_16 = arith.constant 0 : index
      %24 = vector.load %arg7[%c1_15, %c0_16] : memref<2x128xf32, #tpu.memory_space<vmem>>, vector<1x128xf32>
      tpu.vector_store %arg7[%c1_15, %c0_16], %23 {strides = array<i32>} : memref<2x128xf32, #tpu.memory_space<vmem>>, vector<1x128xf32>,
      %c0_17 = arith.constant 0 : index
      %c0_18 = arith.constant 0 : index
      %25 = vector.load %arg6[%c0_17, %c0_18] : memref<128x128xf32, #tpu.memory_space<vmem>>, vector<128x128xf32>
      tpu.vector_store %arg6[%c0_17, %c0_18], %2 {strides = array<i32>} : memref<128x128xf32, #tpu.memory_space<vmem>>, vector<128x128xf32>,
    } else {
    }
    %c1_i32 = arith.constant 1 : i32
    %11 = arith.cmpi eq, %arg0, %c1_i32 : i32
    %12 = arith.extui %11 : i1 to i32
    %c0_i32_7 = arith.constant 0 : i32
    %13 = arith.cmpi ne, %12, %c0_i32_7 : i32
    scf.if %13 {
      %c0_8 = arith.constant 0 : index
      %c0_9 = arith.constant 0 : index
      %14 = vector.load %arg7[%c0_8, %c0_9] : memref<2x128xf32, #tpu.memory_space<vmem>>, vector<1x128xf32>
      %cst_10 = arith.constant 7.812500e-03 : f32
      %15 = vector.broadcast %cst_10 : f32 to vector<1x128xf32>
      %16 = arith.mulf %14, %15 : vector<1x128xf32>
      %c1 = arith.constant 1 : index
      %c0_11 = arith.constant 0 : index
      %17 = vector.load %arg7[%c1, %c0_11] : memref<2x128xf32, #tpu.memory_space<vmem>>, vector<1x128xf32>
      %cst_12 = arith.constant 7.812500e-03 : f32
      %18 = vector.broadcast %cst_12 : f32 to vector<1x128xf32>
      %19 = arith.mulf %17, %18 : vector<1x128xf32>
      %20 = arith.mulf %16, %16 : vector<1x128xf32>
      %21 = arith.subf %19, %20 : vector<1x128xf32>
      %cst_13 = arith.constant 9.99999974E-6 : f32
      %22 = vector.broadcast %cst_13 : f32 to vector<1x128xf32>
      %23 = arith.addf %21, %22 : vector<1x128xf32>
      %24 = math.rsqrt %23 : vector<1x128xf32>
      %c0_14 = arith.constant 0 : index
      %c0_15 = arith.constant 0 : index
      %25 = vector.load %arg4[%c0_14, %c0_15] : memref<1x128xf32, #tpu.memory_space<vmem>>, vector<1x128xf32>
      %26 = arith.mulf %24, %25 : vector<1x128xf32>
      %c0_16 = arith.constant 0 : index
      %c0_17 = arith.constant 0 : index
      %27 = vector.load %arg5[%c0_16, %c0_17] : memref<1x128xf32, #tpu.memory_space<vmem>>, vector<1x128xf32>
      %28 = arith.mulf %16, %26 : vector<1x128xf32>
      %29 = arith.subf %27, %28 : vector<1x128xf32>
      %30 = vector.broadcast %26 : vector<1x128xf32> to vector<128x128xf32>
      %31 = arith.mulf %2, %30 : vector<128x128xf32>
      %32 = vector.broadcast %29 : vector<1x128xf32> to vector<128x128xf32>
      %33 = arith.addf %31, %32 : vector<128x128xf32>
      %cst_18 = arith.constant 0.000000e+00 : f32
      %34 = vector.broadcast %cst_18 : f32 to vector<128x128xf32>
      %35 = arith.maximumf %33, %34 : vector<128x128xf32>
      %c0_19 = arith.constant 0 : index
      %c0_20 = arith.constant 0 : index
      %36 = vector.load %arg6[%c0_19, %c0_20] : memref<128x128xf32, #tpu.memory_space<vmem>>, vector<128x128xf32>
      tpu.vector_store %arg6[%c0_19, %c0_20], %35 {strides = array<i32>} : memref<128x128xf32, #tpu.memory_space<vmem>>, vector<128x128xf32>,
    } else {
    }
    return
  }
  func.func @transform_0(%arg0: i32, %arg1: i32) -> (i32, i32) {
    %c0_i32 = arith.constant 0 : i32
    %c0_i32_0 = arith.constant 0 : i32
    return %arg1, %c0_i32 : i32, i32
  }
  func.func @transform_1(%arg0: i32, %arg1: i32) -> (i32, i32) {
    %c0_i32 = arith.constant 0 : i32
    %c0_i32_0 = arith.constant 0 : i32
    %c0_i32_1 = arith.constant 0 : i32
    return %c0_i32, %c0_i32_0 : i32, i32
  }
  func.func @transform_2(%arg0: i32, %arg1: i32) -> (i32, i32) {
    %c0_i32 = arith.constant 0 : i32
    %c0_i32_0 = arith.constant 0 : i32
    %c0_i32_1 = arith.constant 0 : i32
    return %c0_i32, %c0_i32_0 : i32, i32
  }
  func.func @transform_3(%arg0: i32, %arg1: i32) -> (i32, i32) {
    %c0_i32 = arith.constant 0 : i32
    %c0_i32_0 = arith.constant 0 : i32
    %c0_i32_1 = arith.constant 0 : i32
    return %c0_i32, %c0_i32_0 : i32, i32
  }
  func.func @transform_4(%arg0: i32, %arg1: i32) -> (i32, i32) {
    %c0_i32 = arith.constant 0 : i32
    %c0_i32_0 = arith.constant 0 : i32
    return %arg1, %c0_i32 : i32, i32
  }
}

module attributes {stable_mosaic.version = 11 : i64} {
  func.func @_conv_bn_relu_kernel(%arg0: i32, %arg1: i32, %arg2: memref<512x72xbf16, #tpu.memory_space<vmem>>, %arg3: memref<72x128xbf16, #tpu.memory_space<vmem>>, %arg4: memref<1x128xf32, #tpu.memory_space<vmem>>, %arg5: memref<1x128xf32, #tpu.memory_space<vmem>>, %arg6: memref<512x128xf32, #tpu.memory_space<vmem>>, %arg7: memref<2x128xf32, #tpu.memory_space<vmem>>) attributes {dimension_semantics = [#tpu.dimension_semantics<arbitrary>, #tpu.dimension_semantics<arbitrary>], iteration_bounds = array<i64: 2, 1>, scalar_prefetch = 0 : i64, scratch_operands = 1 : i64, tpu.core_type = #tpu.core_type<tc>, window_params = [{transform_indices = @transform_0, window_bounds = array<i64: 512, 72>}, {pipeline_mode = #tpu.pipeline_mode<synchronous>, transform_indices = @transform_1, window_bounds = array<i64: 72, 128>}, {pipeline_mode = #tpu.pipeline_mode<synchronous>, transform_indices = @transform_2, window_bounds = array<i64: 1, 128>}, {pipeline_mode = #tpu.pipeline_mode<synchronous>, transform_indices = @transform_3, window_bounds = array<i64: 1, 128>}, {transform_indices = @transform_4, window_bounds = array<i64: 512, 128>}]} {
    %c0 = arith.constant 0 : index
    %c0_0 = arith.constant 0 : index
    %0 = vector.load %arg2[%c0, %c0_0] : memref<512x72xbf16, #tpu.memory_space<vmem>>, vector<512x72xbf16>
    %c0_1 = arith.constant 0 : index
    %c0_2 = arith.constant 0 : index
    %1 = vector.load %arg3[%c0_1, %c0_2] : memref<72x128xbf16, #tpu.memory_space<vmem>>, vector<72x128xbf16>
    %cst = arith.constant dense<0.000000e+00> : vector<512x128xf32>
    %2 = tpu.matmul %0, %1, %cst {dimension_numbers = #tpu.dot_dimension_numbers<[1], [0], [0], [1], [0, 0, 1, 1], [], []>} : vector<512x72xbf16>, vector<72x128xbf16>, vector<512x128xf32> -> vector<512x128xf32>
    %c0_i32 = arith.constant 0 : i32
    %3 = arith.cmpi eq, %arg0, %c0_i32 : i32
    %c0_i32_3 = arith.constant 0 : i32
    %4 = arith.cmpi eq, %arg1, %c0_i32_3 : i32
    %5 = arith.andi %3, %4 : i1
    %6 = arith.extui %5 : i1 to i32
    %c0_i32_4 = arith.constant 0 : i32
    %7 = arith.cmpi ne, %6, %c0_i32_4 : i32
    scf.if %7 {
      %cst_8 = arith.constant 0.000000e+00 : f32
      %14 = vector.broadcast %cst_8 : f32 to vector<2x128xf32>
      %c0_9 = arith.constant 0 : index
      %c0_10 = arith.constant 0 : index
      %15 = vector.load %arg7[%c0_9, %c0_10] : memref<2x128xf32, #tpu.memory_space<vmem>>, vector<2x128xf32>
      tpu.vector_store %arg7[%c0_9, %c0_10], %14 {strides = array<i32>} : memref<2x128xf32, #tpu.memory_space<vmem>>, vector<2x128xf32>,
    } else {
    }
    %c0_i32_5 = arith.constant 0 : i32
    %8 = arith.cmpi eq, %arg0, %c0_i32_5 : i32
    %9 = arith.extui %8 : i1 to i32
    %c0_i32_6 = arith.constant 0 : i32
    %10 = arith.cmpi ne, %9, %c0_i32_6 : i32
    scf.if %10 {
      %c0_8 = arith.constant 0 : index
      %c0_9 = arith.constant 0 : index
      %14 = vector.load %arg7[%c0_8, %c0_9] : memref<2x128xf32, #tpu.memory_space<vmem>>, vector<1x128xf32>
      %cst_10 = arith.constant dense<0.000000e+00> : vector<128xf32>
      %15 = vector.multi_reduction <add>, %2, %cst_10 [0] : vector<512x128xf32> to vector<128xf32>
      %16 = vector.shape_cast %15 : vector<128xf32> to vector<1x128xf32>
      %17 = arith.addf %14, %16 : vector<1x128xf32>
      %c0_11 = arith.constant 0 : index
      %c0_12 = arith.constant 0 : index
      %18 = vector.load %arg7[%c0_11, %c0_12] : memref<2x128xf32, #tpu.memory_space<vmem>>, vector<1x128xf32>
      tpu.vector_store %arg7[%c0_11, %c0_12], %17 {strides = array<i32>} : memref<2x128xf32, #tpu.memory_space<vmem>>, vector<1x128xf32>,
      %c1 = arith.constant 1 : index
      %c0_13 = arith.constant 0 : index
      %19 = vector.load %arg7[%c1, %c0_13] : memref<2x128xf32, #tpu.memory_space<vmem>>, vector<1x128xf32>
      %20 = arith.mulf %2, %2 : vector<512x128xf32>
      %cst_14 = arith.constant dense<0.000000e+00> : vector<128xf32>
      %21 = vector.multi_reduction <add>, %20, %cst_14 [0] : vector<512x128xf32> to vector<128xf32>
      %22 = vector.shape_cast %21 : vector<128xf32> to vector<1x128xf32>
      %23 = arith.addf %19, %22 : vector<1x128xf32>
      %c1_15 = arith.constant 1 : index
      %c0_16 = arith.constant 0 : index
      %24 = vector.load %arg7[%c1_15, %c0_16] : memref<2x128xf32, #tpu.memory_space<vmem>>, vector<1x128xf32>
      tpu.vector_store %arg7[%c1_15, %c0_16], %23 {strides = array<i32>} : memref<2x128xf32, #tpu.memory_space<vmem>>, vector<1x128xf32>,
      %c0_17 = arith.constant 0 : index
      %c0_18 = arith.constant 0 : index
      %25 = vector.load %arg6[%c0_17, %c0_18] : memref<512x128xf32, #tpu.memory_space<vmem>>, vector<512x128xf32>
      tpu.vector_store %arg6[%c0_17, %c0_18], %2 {strides = array<i32>} : memref<512x128xf32, #tpu.memory_space<vmem>>, vector<512x128xf32>,
    } else {
    }
    %c1_i32 = arith.constant 1 : i32
    %11 = arith.cmpi eq, %arg0, %c1_i32 : i32
    %12 = arith.extui %11 : i1 to i32
    %c0_i32_7 = arith.constant 0 : i32
    %13 = arith.cmpi ne, %12, %c0_i32_7 : i32
    scf.if %13 {
      %c0_8 = arith.constant 0 : index
      %c0_9 = arith.constant 0 : index
      %14 = vector.load %arg7[%c0_8, %c0_9] : memref<2x128xf32, #tpu.memory_space<vmem>>, vector<1x128xf32>
      %cst_10 = arith.constant 0.001953125 : f32
      %15 = vector.broadcast %cst_10 : f32 to vector<1x128xf32>
      %16 = arith.mulf %14, %15 : vector<1x128xf32>
      %c1 = arith.constant 1 : index
      %c0_11 = arith.constant 0 : index
      %17 = vector.load %arg7[%c1, %c0_11] : memref<2x128xf32, #tpu.memory_space<vmem>>, vector<1x128xf32>
      %cst_12 = arith.constant 0.001953125 : f32
      %18 = vector.broadcast %cst_12 : f32 to vector<1x128xf32>
      %19 = arith.mulf %17, %18 : vector<1x128xf32>
      %20 = arith.mulf %16, %16 : vector<1x128xf32>
      %21 = arith.subf %19, %20 : vector<1x128xf32>
      %cst_13 = arith.constant 9.99999974E-6 : f32
      %22 = vector.broadcast %cst_13 : f32 to vector<1x128xf32>
      %23 = arith.addf %21, %22 : vector<1x128xf32>
      %24 = math.rsqrt %23 : vector<1x128xf32>
      %c0_14 = arith.constant 0 : index
      %c0_15 = arith.constant 0 : index
      %25 = vector.load %arg4[%c0_14, %c0_15] : memref<1x128xf32, #tpu.memory_space<vmem>>, vector<1x128xf32>
      %26 = arith.mulf %24, %25 : vector<1x128xf32>
      %c0_16 = arith.constant 0 : index
      %c0_17 = arith.constant 0 : index
      %27 = vector.load %arg5[%c0_16, %c0_17] : memref<1x128xf32, #tpu.memory_space<vmem>>, vector<1x128xf32>
      %28 = arith.mulf %16, %26 : vector<1x128xf32>
      %29 = arith.subf %27, %28 : vector<1x128xf32>
      %30 = vector.broadcast %26 : vector<1x128xf32> to vector<512x128xf32>
      %31 = arith.mulf %2, %30 : vector<512x128xf32>
      %32 = vector.broadcast %29 : vector<1x128xf32> to vector<512x128xf32>
      %33 = arith.addf %31, %32 : vector<512x128xf32>
      %cst_18 = arith.constant 0.000000e+00 : f32
      %34 = vector.broadcast %cst_18 : f32 to vector<512x128xf32>
      %35 = arith.maximumf %33, %34 : vector<512x128xf32>
      %c0_19 = arith.constant 0 : index
      %c0_20 = arith.constant 0 : index
      %36 = vector.load %arg6[%c0_19, %c0_20] : memref<512x128xf32, #tpu.memory_space<vmem>>, vector<512x128xf32>
      tpu.vector_store %arg6[%c0_19, %c0_20], %35 {strides = array<i32>} : memref<512x128xf32, #tpu.memory_space<vmem>>, vector<512x128xf32>,
    } else {
    }
    return
  }
  func.func @transform_0(%arg0: i32, %arg1: i32) -> (i32, i32) {
    %c0_i32 = arith.constant 0 : i32
    %c0_i32_0 = arith.constant 0 : i32
    return %arg1, %c0_i32 : i32, i32
  }
  func.func @transform_1(%arg0: i32, %arg1: i32) -> (i32, i32) {
    %c0_i32 = arith.constant 0 : i32
    %c0_i32_0 = arith.constant 0 : i32
    %c0_i32_1 = arith.constant 0 : i32
    return %c0_i32, %c0_i32_0 : i32, i32
  }
  func.func @transform_2(%arg0: i32, %arg1: i32) -> (i32, i32) {
    %c0_i32 = arith.constant 0 : i32
    %c0_i32_0 = arith.constant 0 : i32
    %c0_i32_1 = arith.constant 0 : i32
    return %c0_i32, %c0_i32_0 : i32, i32
  }
  func.func @transform_3(%arg0: i32, %arg1: i32) -> (i32, i32) {
    %c0_i32 = arith.constant 0 : i32
    %c0_i32_0 = arith.constant 0 : i32
    %c0_i32_1 = arith.constant 0 : i32
    return %c0_i32, %c0_i32_0 : i32, i32
  }
  func.func @transform_4(%arg0: i32, %arg1: i32) -> (i32, i32) {
    %c0_i32 = arith.constant 0 : i32
    %c0_i32_0 = arith.constant 0 : i32
    return %arg1, %c0_i32 : i32, i32
  }
}

</mosaic_0001>

<llo_original>
// kernel: main_net_forward.3
$region0: #{main_net_forward.3}
  #allocation0 [shape = 'u32[]', space=smem, size = 0x4, offset = 0x4, fixed_abs, tag = 'smem constant byte address 0x4 - core index']
  #allocation1 [shape = 'u32[144,128]{1,0:T(1,128)}', space=vmem, size = 0x12000, scoped, tag = 'internal scratch']
  #allocation2 [shape = 'f32[2,128]{1,0:T(2,128)}', space=vmem, size = 0x400, scoped, tag = 'scratch operand']
  %s0 = inlined_call_operand.vmem [shape: bf16[512,36], index: 0, kind: input, shape index: {}]
  %s1 = inlined_call_operand.vmem [shape: bf16[36,128], index: 1, kind: input, shape index: {}]
  %s2 = inlined_call_operand.vmem [shape: f32[1,128], index: 2, kind: input, shape index: {}]
  %s3 = inlined_call_operand.vmem [shape: f32[1,128], index: 3, kind: input, shape index: {}]
  %s4 = inlined_call_operand.vmem [shape: f32[512,128], index: 4, kind: output, shape index: {}]
  %s5 = sld [smem:[#allocation0]]
  $region61: #{main_net_forward.3} parent=0
    _
  %s7 = ssub.s32 1, %s5
  %s8 = scalar_select 0, %s7, %s5
  loop: start=0, step=1, limit=4
  $region2: #{main_net_forward.3} parent=0 // loop_pre_header
    _
  $region3: #{main_net_forward.3} parent=0 // loop_header
    %s10 = sphi 0, %s14
    %p11 = scmp.ge.s32.totalorder %s10, 4
    %s17 = sphi 0, %s29
    %s18 = sphi 0, %s25
    %s19 = sphi 0, %s17
    %s20 = sphi 0, %s18
    %s21 = sphi 0, %s19
    %s22 = sphi 0, %s20
    %s32 = sphi 0, %s34
    %s35 = sphi 0, %s32
    %s36 = sphi 0, %s35
    %s52 = sphi 0, %s36
    %s56 = sphi 0, %s56
    %s58 = sphi 0, %s56
    %s59 = sphi 0, %s58
    %s73 = sphi 0, %s59
    %s77 = sphi 0, %s77
    %s79 = sphi 0, %s77
    %s80 = sphi 0, %s79
    %s94 = sphi 0, %s80
    %s98 = sphi 0, %s98
    %s100 = sphi 0, %s98
    %s101 = sphi 0, %s100
    %s115 = sphi 0, %s101
    %s121 = sphi 0, %s123
    %s124 = sphi 0, %s121
    %s125 = sphi 0, %s124
    %s141 = sphi 0, %s125
  $region4: #{main_net_forward.3} parent=0 // loop_header_branch
    %13 = sbr.rel (%p11) target = $region8
  $region5: #{main_net_forward.3} parent=0 // loop_body
    %s15 = ssub.s32 %s10, 1
    %s16 = ssub.s32 %s10, 2
    %s23 = sadd.s32 1, %s18
    %p24 = scmp.ge.s32.totalorder %s23, 1
    %s25 = scalar_select %p24, 0, %s23
    %s26 = sadd.s32 1, %s17
    %s27 = scalar_select %p24, %s26, %s17
    %p28 = scmp.ge.s32.totalorder %s27, 2
    %s29 = scalar_select %p28, 0, %s27
    %s30 = ssub.s32 %s18, %s25
    %p31 = scmp.eq.s32.totalorder %s30, 0
    %s33 = sadd.s32 %s32, 1
    %s34 = scalar_select %p31, %s32, %s33
    %p37 = pneg %p31
    %p38 = scmp.eq.s32.totalorder %s10, 1
    %p39 = por %p37, %p38
    %p40 = scmp.ne.s32.totalorder %s32, %s35
    %p41 = scmp.eq.s32.totalorder %s10, 0
    %p42 = por %p40, %p41
    %p43 = scmp.ne.s32.totalorder %s32, %s35
    %p44 = scmp.eq.s32.totalorder %s15, 1
    %p45 = por %p43, %p44
    %p46 = scmp.ne.s32.totalorder %s35, %s36
    %p47 = scmp.eq.s32.totalorder %s15, 0
    %p48 = por %p46, %p47
    %p49 = scmp.ne.s32.totalorder %s35, %s36
    %p50 = scmp.eq.s32.totalorder %s16, 1
    %p51 = por %p49, %p50
    %p53 = scmp.ne.s32.totalorder %s36, %s52
    %p54 = scmp.eq.s32.totalorder %s16, 0
    %p55 = por %p53, %p54
    %s57 = sadd.s32 %s56, 1
    %p60 = scmp.eq.s32.totalorder %s10, 1
    %p61 = scmp.ne.s32.totalorder %s56, %s58
    %p62 = scmp.eq.s32.totalorder %s10, 0
    %p63 = por %p61, %p62
    %p64 = scmp.ne.s32.totalorder %s56, %s58
    %p65 = scmp.eq.s32.totalorder %s15, 1
    %p66 = por %p64, %p65
    %p67 = scmp.ne.s32.totalorder %s58, %s59
    %p68 = scmp.eq.s32.totalorder %s15, 0
    %p69 = por %p67, %p68
    %p70 = scmp.ne.s32.totalorder %s58, %s59
    %p71 = scmp.eq.s32.totalorder %s16, 1
    %p72 = por %p70, %p71
    %p74 = scmp.ne.s32.totalorder %s59, %s73
    %p75 = scmp.eq.s32.totalorder %s16, 0
    %p76 = por %p74, %p75
    %s78 = sadd.s32 %s77, 1
    %p81 = scmp.eq.s32.totalorder %s10, 1
    %p82 = scmp.ne.s32.totalorder %s77, %s79
    %p83 = scmp.eq.s32.totalorder %s10, 0
    %p84 = por %p82, %p83
    %p85 = scmp.ne.s32.totalorder %s77, %s79
    %p86 = scmp.eq.s32.totalorder %s15, 1
    %p87 = por %p85, %p86
    %p88 = scmp.ne.s32.totalorder %s79, %s80
    %p89 = scmp.eq.s32.totalorder %s15, 0
    %p90 = por %p88, %p89
    %p91 = scmp.ne.s32.totalorder %s79, %s80
    %p92 = scmp.eq.s32.totalorder %s16, 1
    %p93 = por %p91, %p92
    %p95 = scmp.ne.s32.totalorder %s80, %s94
    %p96 = scmp.eq.s32.totalorder %s16, 0
    %p97 = por %p95, %p96
    %s99 = sadd.s32 %s98, 1
    %p102 = scmp.eq.s32.totalorder %s10, 1
    %p103 = scmp.ne.s32.totalorder %s98, %s100
    %p104 = scmp.eq.s32.totalorder %s10, 0
    %p105 = por %p103, %p104
    %p106 = scmp.ne.s32.totalorder %s98, %s100
    %p107 = scmp.eq.s32.totalorder %s15, 1
    %p108 = por %p106, %p107
    %p109 = scmp.ne.s32.totalorder %s100, %s101
    %p110 = scmp.eq.s32.totalorder %s15, 0
    %p111 = por %p109, %p110
    %p112 = scmp.ne.s32.totalorder %s100, %s101
    %p113 = scmp.eq.s32.totalorder %s16, 1
    %p114 = por %p112, %p113
    %p116 = scmp.ne.s32.totalorder %s101, %s115
    %p117 = scmp.eq.s32.totalorder %s16, 0
    %p118 = por %p116, %p117
    %s119 = ssub.s32 %s18, %s25
    %p120 = scmp.eq.s32.totalorder %s119, 0
    %s122 = sadd.s32 %s121, 1
    %s123 = scalar_select %p120, %s121, %s122
    %p126 = pneg %p120
    %p127 = scmp.eq.s32.totalorder %s10, 1
    %p128 = por %p126, %p127
    %p129 = scmp.ne.s32.totalorder %s121, %s124
    %p130 = scmp.eq.s32.totalorder %s10, 0
    %p131 = por %p129, %p130
    %p132 = scmp.ne.s32.totalorder %s121, %s124
    %p133 = scmp.eq.s32.totalorder %s15, 1
    %p134 = por %p132, %p133
    %p135 = scmp.ne.s32.totalorder %s124, %s125
    %p136 = scmp.eq.s32.totalorder %s15, 0
    %p137 = por %p135, %p136
    %p138 = scmp.ne.s32.totalorder %s124, %s125
    %p139 = scmp.eq.s32.totalorder %s16, 1
    %p140 = por %p138, %p139
    %p142 = scmp.ne.s32.totalorder %s125, %s141
    %p143 = scmp.eq.s32.totalorder %s16, 0
    %p144 = por %p142, %p143
    %p145 = scmp.le.s32.totalorder 1, %s10
    %p146 = scmp.lt.s32.totalorder %s10, 3
    %p147 = pnand %p145, %p146
    %p148 = pneg %p147
    // Predicated region
    $region9: #{main_net_forward.3} parent=5 // pred_check
      _
    $region10: #{main_net_forward.3} parent=5 // pred_check_branch
      %150 = sbr.rel (%p147) target = $region12
    $region11: #{main_net_forward.3} parent=5 // pred_region
      %s151 = ssub.s32 %s10, 1
      // Predicated region
      $region13: #{main_net_forward.3} parent=11 // pred_check
        %p152 = pneg %p48
      $region14: #{main_net_forward.3} parent=11 // pred_check_branch
        %154 = sbr.rel (%p152) target = $region16
      $region15: #{main_net_forward.3} parent=11 // pred_region
        %s155 = smul.u32 64, %s20
        %p156 = scmp.lt.s32.totalorder %s155, 63
        %s157 = scalar_select %p156, %s155, 63
        %s158 = smul.addr %s157, 4
        %s159 = scalar_lea.vmem %s0, %s158
        %s160 = smul.u32 64, %s20
      $region16: #{main_net_forward.3} parent=11 // pred_fallthru
        _
      // Predicated region
      $region17: #{main_net_forward.3} parent=11 // pred_check
        %p161 = pneg %p69
      $region18: #{main_net_forward.3} parent=11 // pred_check_branch
        %163 = sbr.rel (%p161) target = $region20
      $region19: #{main_net_forward.3} parent=11 // pred_region
        _
      $region20: #{main_net_forward.3} parent=11 // pred_fallthru
        _
      // Predicated region
      $region21: #{main_net_forward.3} parent=11 // pred_check
        %p164 = pneg %p90
      $region22: #{main_net_forward.3} parent=11 // pred_check_branch
        %166 = sbr.rel (%p164) target = $region24
      $region23: #{main_net_forward.3} parent=11 // pred_region
        _
      $region24: #{main_net_forward.3} parent=11 // pred_fallthru
        _
      // Predicated region
      $region25: #{main_net_forward.3} parent=11 // pred_check
        %p167 = pneg %p111
      $region26: #{main_net_forward.3} parent=11 // pred_check_branch
        %169 = sbr.rel (%p167) target = $region28
      $region27: #{main_net_forward.3} parent=11 // pred_region
        _
      $region28: #{main_net_forward.3} parent=11 // pred_fallthru
        _
    $region12: #{main_net_forward.3} parent=5 // pred_fallthru
      _
    %p170 = scmp.lt.s32.totalorder %s10, 2
    // Predicated region
    $region29: #{main_net_forward.3} parent=5 // pred_check
      %p171 = pneg %p170
    $region30: #{main_net_forward.3} parent=5 // pred_check_branch
      %173 = sbr.rel (%p171) target = $region32
    $region31: #{main_net_forward.3} parent=5 // pred_region
      _
    $region32: #{main_net_forward.3} parent=5 // pred_fallthru
      _
    %p174 = scmp.le.s32.totalorder 1, %s10
    %p175 = scmp.lt.s32.totalorder %s10, 3
    %p176 = pnand %p174, %p175
    %p177 = pneg %p176
    // Predicated region
    $region33: #{main_net_forward.3} parent=5 // pred_check
      _
    $region34: #{main_net_forward.3} parent=5 // pred_check_branch
      %179 = sbr.rel (%p176) target = $region36
    $region35: #{main_net_forward.3} parent=5 // pred_region
      %s180 = ssub.s32 %s10, 1
      %s181 = smul.u32 64, %s20
      %p182 = scmp.lt.s32.totalorder %s181, 63
      %s183 = scalar_select %p182, %s181, 63
      %s184 = smul.addr %s183, 4
      %s185 = scalar_lea.vmem %s0, %s184
      %p186 = pneg %p48
      %p187 = pneg %p45
      %p188 = pneg %p69
      %p189 = pneg %p66
      %p190 = pneg %p90
      %p191 = pneg %p87
      %p192 = pneg %p111
      %p193 = pneg %p108
      %p194 = pneg %p137
      %p195 = pneg %p134
      %s196 = smul.u32 64, %s20
      %p197 = scmp.lt.s32.totalorder %s196, 63
      %s198 = scalar_select %p197, %s196, 63
      %s199 = smul.addr %s198, 8
      %s200 = scalar_lea.vmem %s4, %s199
      %s201 = smul.u32 64, %s20
      %p202 = scmp.lt.s32.totalorder %s201, 63
      %s203 = scalar_select %p202, %s201, 63
      %s204 = smul.addr %s203, 4
      %s205 = scalar_lea.vmem %s0, %s204
      %s206 = smul.u32 64, %s20
      %s207 = smul.u32 64, %s20
      %p208 = scmp.lt.s32.totalorder %s207, 63
      %s209 = scalar_select %p208, %s207, 63
      %s210 = smul.addr %s209, 8
      %s211 = scalar_lea.vmem %s4, %s210
      %s212 = smul.u32 64, %s20
      %v214 = vld [vmem:[%s205] sm:$0xf]
      %v215 = vld [vmem:[%s205 + $0x4] sm:$0xf]
      %v216 = vld [vmem:[%s205 + $0x8] sm:$0xf]
      %v217 = vld [vmem:[%s205 + $0xc] sm:$0xf]
      %v218 = vld [vmem:[%s205 + $0x10] sm:$0xf]
      %v219 = vld [vmem:[%s205 + $0x14] sm:$0xf]
      %v220 = vld [vmem:[%s205 + $0x18] sm:$0xf]
      %v221 = vld [vmem:[%s205 + $0x1c] sm:$0xf]
      %v222 = vld [vmem:[%s205 + $0x20] sm:$0xf]
      %v223 = vld [vmem:[%s205 + $0x24] sm:$0xf]
      %v224 = vld [vmem:[%s205 + $0x28] sm:$0xf]
      %v225 = vld [vmem:[%s205 + $0x2c] sm:$0xf]
      %v226 = vld [vmem:[%s205 + $0x30] sm:$0xf]
      %v227 = vld [vmem:[%s205 + $0x34] sm:$0xf]
      %v228 = vld [vmem:[%s205 + $0x38] sm:$0xf]
      %v229 = vld [vmem:[%s205 + $0x3c] sm:$0xf]
      %v230 = vld [vmem:[%s205 + $0x40] sm:$0xf]
      %v231 = vld [vmem:[%s205 + $0x44] sm:$0xf]
      %v232 = vld [vmem:[%s205 + $0x48] sm:$0xf]
      %v233 = vld [vmem:[%s205 + $0x4c] sm:$0xf]
      %v234 = vld [vmem:[%s205 + $0x50] sm:$0xf]
      %v235 = vld [vmem:[%s205 + $0x54] sm:$0xf]
      %v236 = vld [vmem:[%s205 + $0x58] sm:$0xf]
      %v237 = vld [vmem:[%s205 + $0x5c] sm:$0xf]
      %v238 = vld [vmem:[%s205 + $0x60] sm:$0xf]
      %v239 = vld [vmem:[%s205 + $0x64] sm:$0xf]
      %v240 = vld [vmem:[%s205 + $0x68] sm:$0xf]
      %v241 = vld [vmem:[%s205 + $0x6c] sm:$0xf]
      %v242 = vld [vmem:[%s205 + $0x70] sm:$0xf]
      %v243 = vld [vmem:[%s205 + $0x74] sm:$0xf]
      %v244 = vld [vmem:[%s205 + $0x78] sm:$0xf]
      %v245 = vld [vmem:[%s205 + $0x7c] sm:$0xf]
      %v246 = vld [vmem:[%s205 + $0x80] sm:$0xf]
      %v247 = vld [vmem:[%s205 + $0x84] sm:$0xf]
      %v248 = vld [vmem:[%s205 + $0x88] sm:$0xf]
      %v249 = vld [vmem:[%s205 + $0x8c] sm:$0xf]
      %v250 = vld [vmem:[%s205 + $0x90] sm:$0xf]
      %v251 = vld [vmem:[%s205 + $0x94] sm:$0xf]
      %v252 = vld [vmem:[%s205 + $0x98] sm:$0xf]
      %v253 = vld [vmem:[%s205 + $0x9c] sm:$0xf]
      %v254 = vld [vmem:[%s205 + $0xa0] sm:$0xf]
      %v255 = vld [vmem:[%s205 + $0xa4] sm:$0xf]
      %v256 = vld [vmem:[%s205 + $0xa8] sm:$0xf]
      %v257 = vld [vmem:[%s205 + $0xac] sm:$0xf]
      %v258 = vld [vmem:[%s205 + $0xb0] sm:$0xf]
      %v259 = vld [vmem:[%s205 + $0xb4] sm:$0xf]
      %v260 = vld [vmem:[%s205 + $0xb8] sm:$0xf]
      %v261 = vld [vmem:[%s205 + $0xbc] sm:$0xf]
      %v262 = vld [vmem:[%s205 + $0xc0] sm:$0xf]
      %v263 = vld [vmem:[%s205 + $0xc4] sm:$0xf]
      %v264 = vld [vmem:[%s205 + $0xc8] sm:$0xf]
      %v265 = vld [vmem:[%s205 + $0xcc] sm:$0xf]
      %v266 = vld [vmem:[%s205 + $0xd0] sm:$0xf]
      %v267 = vld [vmem:[%s205 + $0xd4] sm:$0xf]
      %v268 = vld [vmem:[%s205 + $0xd8] sm:$0xf]
      %v269 = vld [vmem:[%s205 + $0xdc] sm:$0xf]
      %v270 = vld [vmem:[%s205 + $0xe0] sm:$0xf]
      %v271 = vld [vmem:[%s205 + $0xe4] sm:$0xf]
      %v272 = vld [vmem:[%s205 + $0xe8] sm:$0xf]
      %v273 = vld [vmem:[%s205 + $0xec] sm:$0xf]
      %v274 = vld [vmem:[%s205 + $0xf0] sm:$0xf]
      %v275 = vld [vmem:[%s205 + $0xf4] sm:$0xf]
      %v276 = vld [vmem:[%s205 + $0xf8] sm:$0xf]
      %v277 = vld [vmem:[%s205 + $0xfc] sm:$0xf]
      %v278 = vld [vmem:[%s1] sm:$0xf]
      %v279 = vld [vmem:[%s1 + $0x4] sm:$0xf]
      %v280 = vld [vmem:[%s1 + $0x8] sm:$0xf]
      %v281 = vld [vmem:[%s1 + $0xc] sm:$0xf]
      %v282 = vld [vmem:[%s1 + $0x10] sm:$0x3]
      %v347 = vunpack.c.l.b16 %v214
      %v348 = vunpack.c.l.b16 %v215
      %v349 = vunpack.c.l.b16 %v216
      %v350 = vunpack.c.l.b16 %v217
      %v351 = vunpack.c.l.b16 %v218
      %v352 = vunpack.c.l.b16 %v219
      %v353 = vunpack.c.l.b16 %v220
      %v354 = vunpack.c.l.b16 %v221
      %v355 = vunpack.c.l.b16 %v222
      %v356 = vunpack.c.l.b16 %v223
      %v357 = vunpack.c.l.b16 %v224
      %v358 = vunpack.c.l.b16 %v225
      %v359 = vunpack.c.l.b16 %v226
      %v360 = vunpack.c.l.b16 %v227
      %v361 = vunpack.c.l.b16 %v228
      %v362 = vunpack.c.l.b16 %v229
      %v363 = vunpack.c.l.b16 %v230
      %v364 = vunpack.c.l.b16 %v231
      %v365 = vunpack.c.l.b16 %v232
      %v366 = vunpack.c.l.b16 %v233
      %v367 = vunpack.c.l.b16 %v234
      %v368 = vunpack.c.l.b16 %v235
      %v369 = vunpack.c.l.b16 %v236
      %v370 = vunpack.c.l.b16 %v237
      %v371 = vunpack.c.l.b16 %v238
      %v372 = vunpack.c.l.b16 %v239
      %v373 = vunpack.c.l.b16 %v240
      %v374 = vunpack.c.l.b16 %v241
      %v375 = vunpack.c.l.b16 %v242
      %v376 = vunpack.c.l.b16 %v243
      %v377 = vunpack.c.l.b16 %v244
      %v378 = vunpack.c.l.b16 %v245
      %v379 = vunpack.c.l.b16 %v246
      %v380 = vunpack.c.l.b16 %v247
      %v381 = vunpack.c.l.b16 %v248
      %v382 = vunpack.c.l.b16 %v249
      %v383 = vunpack.c.l.b16 %v250
      %v384 = vunpack.c.l.b16 %v251
      %v385 = vunpack.c.l.b16 %v252
      %v386 = vunpack.c.l.b16 %v253
      %v387 = vunpack.c.l.b16 %v254
      %v388 = vunpack.c.l.b16 %v255
      %v389 = vunpack.c.l.b16 %v256
      %v390 = vunpack.c.l.b16 %v257
      %v391 = vunpack.c.l.b16 %v258
      %v392 = vunpack.c.l.b16 %v259
      %v393 = vunpack.c.l.b16 %v260
      %v394 = vunpack.c.l.b16 %v261
      %v395 = vunpack.c.l.b16 %v262
      %v396 = vunpack.c.l.b16 %v263
      %v397 = vunpack.c.l.b16 %v264
      %v398 = vunpack.c.l.b16 %v265
      %v399 = vunpack.c.l.b16 %v266
      %v400 = vunpack.c.l.b16 %v267
      %v401 = vunpack.c.l.b16 %v268
      %v402 = vunpack.c.l.b16 %v269
      %v403 = vunpack.c.l.b16 %v270
      %v404 = vunpack.c.l.b16 %v271
      %v405 = vunpack.c.l.b16 %v272
      %v406 = vunpack.c.l.b16 %v273
      %v407 = vunpack.c.l.b16 %v274
      %v408 = vunpack.c.l.b16 %v275
      %v409 = vunpack.c.l.b16 %v276
      %v410 = vunpack.c.l.b16 %v277
      %v411 = vpack.c.b16 %v348, %v347
      %v412 = vpack.c.b16 %v350, %v349
      %v413 = vpack.c.b16 %v352, %v351
      %v414 = vpack.c.b16 %v354, %v353
      %v415 = vpack.c.b16 %v356, %v355
      %v416 = vpack.c.b16 %v358, %v357
      %v417 = vpack.c.b16 %v360, %v359
      %v418 = vpack.c.b16 %v362, %v361
      %v419 = vpack.c.b16 %v364, %v363
      %v420 = vpack.c.b16 %v366, %v365
      %v421 = vpack.c.b16 %v368, %v367
      %v422 = vpack.c.b16 %v370, %v369
      %v423 = vpack.c.b16 %v372, %v371
      %v424 = vpack.c.b16 %v374, %v373
      %v425 = vpack.c.b16 %v376, %v375
      %v426 = vpack.c.b16 %v378, %v377
      %v427 = vpack.c.b16 %v380, %v379
      %v428 = vpack.c.b16 %v382, %v381
      %v429 = vpack.c.b16 %v384, %v383
      %v430 = vpack.c.b16 %v386, %v385
      %v431 = vpack.c.b16 %v388, %v387
      %v432 = vpack.c.b16 %v390, %v389
      %v433 = vpack.c.b16 %v392, %v391
      %v434 = vpack.c.b16 %v394, %v393
      %v435 = vpack.c.b16 %v396, %v395
      %v436 = vpack.c.b16 %v398, %v397
      %v437 = vpack.c.b16 %v400, %v399
      %v438 = vpack.c.b16 %v402, %v401
      %v439 = vpack.c.b16 %v404, %v403
      %v440 = vpack.c.b16 %v406, %v405
      %v441 = vpack.c.b16 %v408, %v407
      %v442 = vpack.c.b16 %v410, %v409
      %v448 = vunpack.c.l.b16 %v278
      %v449 = vunpack.c.l.b16 %v279
      %v450 = vunpack.c.l.b16 %v280
      %v451 = vunpack.c.l.b16 %v281
      %v452 = vunpack.c.l.b16 %v282
      %v453 = vpack.c.b16 %v449, %v448
      %v454 = vpack.c.b16 %v451, %v450
      %v455 = vpack.c.b16 %v452, %v452
      %vm458 = vcmask 293888
      %v460 = vsel %vm458, %v411, 0
      %v463 = vsel %vm458, %v412, 0
      %v466 = vsel %vm458, %v413, 0
      %v469 = vsel %vm458, %v414, 0
      %v472 = vsel %vm458, %v415, 0
      %v475 = vsel %vm458, %v416, 0
      %v478 = vsel %vm458, %v417, 0
      %v481 = vsel %vm458, %v418, 0
      %v484 = vsel %vm458, %v419, 0
      %v487 = vsel %vm458, %v420, 0
      %v490 = vsel %vm458, %v421, 0
      %v493 = vsel %vm458, %v422, 0
      %v496 = vsel %vm458, %v423, 0
      %v499 = vsel %vm458, %v424, 0
      %v502 = vsel %vm458, %v425, 0
      %v505 = vsel %vm458, %v426, 0
      %v508 = vsel %vm458, %v427, 0
      %v511 = vsel %vm458, %v428, 0
      %v514 = vsel %vm458, %v429, 0
      %v517 = vsel %vm458, %v430, 0
      %v520 = vsel %vm458, %v431, 0
      %v523 = vsel %vm458, %v432, 0
      %v526 = vsel %vm458, %v433, 0
      %v529 = vsel %vm458, %v434, 0
      %v532 = vsel %vm458, %v435, 0
      %v535 = vsel %vm458, %v436, 0
      %v538 = vsel %vm458, %v437, 0
      %v541 = vsel %vm458, %v438, 0
      %v544 = vsel %vm458, %v439, 0
      %v547 = vsel %vm458, %v440, 0
      %v550 = vsel %vm458, %v441, 0
      %v553 = vsel %vm458, %v442, 0
      %vm555 = vcmask 1041408
      %v557 = vsel %vm555, %v455, 0
      %559 = vmatprep.subr.bf16.mxu0 0
      %560 = vmatpush1.bf16.msra.mxu0 %v453
      %561 = vmatprep.subr.bf16.mxu0 0
      %562 = vmatpush1.bf16.msra.mxu0 %v454
      %563 = vmatprep.subr.bf16.mxu0 0
      %564 = vmatpush1.bf16.msra.mxu0 %v557
      %565 = vmatprep.subr.bf16.mxu0 0
      %566 = vmatpush1.bf16.msra.mxu0 0
      %567 = vmatprep.subr.bf16.mxu0 0
      %568 = vmatpush1.bf16.msra.mxu0 0
      %569 = vmatprep.subr.bf16.mxu0 0
      %570 = vmatpush1.bf16.msra.mxu0 0
      %571 = vmatprep.subr.bf16.mxu0 0
      %572 = vmatpush1.bf16.msra.mxu0 0
      %573 = vmatprep.subr.bf16.mxu0 0
      %574 = vmatpush1.bf16.msra.mxu0 0
      %575 = vmatprep.subr.bf16.mxu0 0
      %576 = vmatpush1.bf16.msra.mxu0 0
      %577 = vmatprep.subr.bf16.mxu0 0
      %578 = vmatpush1.bf16.msra.mxu0 0
      %579 = vmatprep.subr.bf16.mxu0 0
      %580 = vmatpush1.bf16.msra.mxu0 0
      %581 = vmatprep.subr.bf16.mxu0 0
      %582 = vmatpush1.bf16.msra.mxu0 0
      %583 = vmatprep.subr.bf16.mxu0 0
      %584 = vmatpush1.bf16.msra.mxu0 0
      %585 = vmatprep.subr.bf16.mxu0 0
      %586 = vmatpush1.bf16.msra.mxu0 0
      %587 = vmatprep.subr.bf16.mxu0 0
      %588 = vmatpush1.bf16.msra.mxu0 0
      %589 = vmatprep.subr.bf16.mxu0 0
      %590 = vmatpush1.bf16.msra.mxu0 0
      %591 = vmatprep.mubr.bf16.mxu0 0
      %592 = vmatmul.mubr.bf16.gmra.mrb[0].mxu0 %v460
      %v593 = vpop.f32.mrb[0].mxu0
      %v594 = vadd.f32 0.0, %v593
      %v595 = vpop.f32.mrb[0].mxu0
      %v596 = vpop.f32.mrb[0].mxu0
      %v597 = vadd.f32 0.0, %v596
      %v598 = vpop.f32.mrb[0].mxu0
      %599 = vmatprep.mubr.bf16.mxu0 0
      %600 = vmatmul.mubr.bf16.gmra.mrb[0].mxu0 %v463
      %v601 = vpop.f32.mrb[0].mxu0
      %v602 = vadd.f32 0.0, %v601
      %v603 = vpop.f32.mrb[0].mxu0
      %v604 = vpop.f32.mrb[0].mxu0
      %v605 = vadd.f32 0.0, %v604
      %v606 = vpop.f32.mrb[0].mxu0
      %607 = vmatprep.mubr.bf16.mxu0 0
      %608 = vmatmul.mubr.bf16.gmra.mrb[0].mxu0 %v466
      %v609 = vpop.f32.mrb[0].mxu0
      %v610 = vadd.f32 0.0, %v609
      %v611 = vpop.f32.mrb[0].mxu0
      %v612 = vpop.f32.mrb[0].mxu0
      %v613 = vadd.f32 0.0, %v612
      %v614 = vpop.f32.mrb[0].mxu0
      %615 = vmatprep.mubr.bf16.mxu0 0
      %616 = vmatmul.mubr.bf16.gmra.mrb[0].mxu0 %v469
      %v617 = vpop.f32.mrb[0].mxu0
      %v618 = vadd.f32 0.0, %v617
      %v619 = vpop.f32.mrb[0].mxu0
      %v620 = vpop.f32.mrb[0].mxu0
      %v621 = vadd.f32 0.0, %v620
      %v622 = vpop.f32.mrb[0].mxu0
      %623 = vmatprep.mubr.bf16.mxu0 0
      %624 = vmatmul.mubr.bf16.gmra.mrb[0].mxu0 %v472
      %v625 = vpop.f32.mrb[0].mxu0
      %v626 = vadd.f32 0.0, %v625
      %v627 = vpop.f32.mrb[0].mxu0
      %v628 = vpop.f32.mrb[0].mxu0
      %v629 = vadd.f32 0.0, %v628
      %v630 = vpop.f32.mrb[0].mxu0
      %631 = vmatprep.mubr.bf16.mxu0 0
      %632 = vmatmul.mubr.bf16.gmra.mrb[0].mxu0 %v475
      %v633 = vpop.f32.mrb[0].mxu0
      %v634 = vadd.f32 0.0, %v633
      %v635 = vpop.f32.mrb[0].mxu0
      %v636 = vpop.f32.mrb[0].mxu0
      %v637 = vadd.f32 0.0, %v636
      %v638 = vpop.f32.mrb[0].mxu0
      %639 = vmatprep.mubr.bf16.mxu0 0
      %640 = vmatmul.mubr.bf16.gmra.mrb[0].mxu0 %v478
      %v641 = vpop.f32.mrb[0].mxu0
      %v642 = vadd.f32 0.0, %v641
      %v643 = vpop.f32.mrb[0].mxu0
      %v644 = vpop.f32.mrb[0].mxu0
      %v645 = vadd.f32 0.0, %v644
      %v646 = vpop.f32.mrb[0].mxu0
      %647 = vmatprep.mubr.bf16.mxu0 0
      %648 = vmatmul.mubr.bf16.gmra.mrb[0].mxu0 %v481
      %v649 = vpop.f32.mrb[0].mxu0
      %v650 = vadd.f32 0.0, %v649
      %v651 = vpop.f32.mrb[0].mxu0
      %v652 = vpop.f32.mrb[0].mxu0
      %v653 = vadd.f32 0.0, %v652
      %v654 = vpop.f32.mrb[0].mxu0
      %655 = vmatprep.mubr.bf16.mxu0 0
      %656 = vmatmul.mubr.bf16.gmra.mrb[0].mxu0 %v484
      %v657 = vpop.f32.mrb[0].mxu0
      %v658 = vadd.f32 0.0, %v657
      %v659 = vpop.f32.mrb[0].mxu0
      %v660 = vpop.f32.mrb[0].mxu0
      %v661 = vadd.f32 0.0, %v660
      %v662 = vpop.f32.mrb[0].mxu0
      %663 = vmatprep.mubr.bf16.mxu0 0
      %664 = vmatmul.mubr.bf16.gmra.mrb[0].mxu0 %v487
      %v665 = vpop.f32.mrb[0].mxu0
      %v666 = vadd.f32 0.0, %v665
      %v667 = vpop.f32.mrb[0].mxu0
      %v668 = vpop.f32.mrb[0].mxu0
      %v669 = vadd.f32 0.0, %v668
      %v670 = vpop.f32.mrb[0].mxu0
      %671 = vmatprep.mubr.bf16.mxu0 0
      %672 = vmatmul.mubr.bf16.gmra.mrb[0].mxu0 %v490
      %v673 = vpop.f32.mrb[0].mxu0
      %v674 = vadd.f32 0.0, %v673
      %v675 = vpop.f32.mrb[0].mxu0
      %v676 = vpop.f32.mrb[0].mxu0
      %v677 = vadd.f32 0.0, %v676
      %v678 = vpop.f32.mrb[0].mxu0
      %679 = vmatprep.mubr.bf16.mxu0 0
      %680 = vmatmul.mubr.bf16.gmra.mrb[0].mxu0 %v493
      %v681 = vpop.f32.mrb[0].mxu0
      %v682 = vadd.f32 0.0, %v681
      %v683 = vpop.f32.mrb[0].mxu0
      %v684 = vpop.f32.mrb[0].mxu0
      %v685 = vadd.f32 0.0, %v684
      %v686 = vpop.f32.mrb[0].mxu0
      %687 = vmatprep.mubr.bf16.mxu0 0
      %688 = vmatmul.mubr.bf16.gmra.mrb[0].mxu0 %v496
      %v689 = vpop.f32.mrb[0].mxu0
      %v690 = vadd.f32 0.0, %v689
      %v691 = vpop.f32.mrb[0].mxu0
      %v692 = vpop.f32.mrb[0].mxu0
      %v693 = vadd.f32 0.0, %v692
      %v694 = vpop.f32.mrb[0].mxu0
      %695 = vmatprep.mubr.bf16.mxu0 0
      %696 = vmatmul.mubr.bf16.gmra.mrb[0].mxu0 %v499
      %v697 = vpop.f32.mrb[0].mxu0
      %v698 = vadd.f32 0.0, %v697
      %v699 = vpop.f32.mrb[0].mxu0
      %v700 = vpop.f32.mrb[0].mxu0
      %v701 = vadd.f32 0.0, %v700
      %v702 = vpop.f32.mrb[0].mxu0
      %703 = vmatprep.mubr.bf16.mxu0 0
      %704 = vmatmul.mubr.bf16.gmra.mrb[0].mxu0 %v502
      %v705 = vpop.f32.mrb[0].mxu0
      %v706 = vadd.f32 0.0, %v705
      %v707 = vpop.f32.mrb[0].mxu0
      %v708 = vpop.f32.mrb[0].mxu0
      %v709 = vadd.f32 0.0, %v708
      %v710 = vpop.f32.mrb[0].mxu0
      %711 = vmatprep.mubr.bf16.mxu0 0
      %712 = vmatmul.mubr.bf16.gmra.mrb[0].mxu0 %v505
      %v713 = vpop.f32.mrb[0].mxu0
      %v714 = vadd.f32 0.0, %v713
      %v715 = vpop.f32.mrb[0].mxu0
      %v716 = vpop.f32.mrb[0].mxu0
      %v717 = vadd.f32 0.0, %v716
      %v718 = vpop.f32.mrb[0].mxu0
      %719 = vmatprep.mubr.bf16.mxu0 0
      %720 = vmatmul.mubr.bf16.gmra.mrb[0].mxu0 %v508
      %v721 = vpop.f32.mrb[0].mxu0
      %v722 = vadd.f32 0.0, %v721
      %v723 = vpop.f32.mrb[0].mxu0
      %v724 = vpop.f32.mrb[0].mxu0
      %v725 = vadd.f32 0.0, %v724
      %v726 = vpop.f32.mrb[0].mxu0
      %727 = vmatprep.mubr.bf16.mxu0 0
      %728 = vmatmul.mubr.bf16.gmra.mrb[0].mxu0 %v511
      %v729 = vpop.f32.mrb[0].mxu0
      %v730 = vadd.f32 0.0, %v729
      %v731 = vpop.f32.mrb[0].mxu0
      %v732 = vpop.f32.mrb[0].mxu0
      %v733 = vadd.f32 0.0, %v732
      %v734 = vpop.f32.mrb[0].mxu0
      %735 = vmatprep.mubr.bf16.mxu0 0
      %736 = vmatmul.mubr.bf16.gmra.mrb[0].mxu0 %v514
      %v737 = vpop.f32.mrb[0].mxu0
      %v738 = vadd.f32 0.0, %v737
      %v739 = vpop.f32.mrb[0].mxu0
      %v740 = vpop.f32.mrb[0].mxu0
      %v741 = vadd.f32 0.0, %v740
      %v742 = vpop.f32.mrb[0].mxu0
      %743 = vmatprep.mubr.bf16.mxu0 0
      %744 = vmatmul.mubr.bf16.gmra.mrb[0].mxu0 %v517
      %v745 = vpop.f32.mrb[0].mxu0
      %v746 = vadd.f32 0.0, %v745
      %v747 = vpop.f32.mrb[0].mxu0
      %v748 = vpop.f32.mrb[0].mxu0
      %v749 = vadd.f32 0.0, %v748
      %v750 = vpop.f32.mrb[0].mxu0
      %751 = vmatprep.mubr.bf16.mxu0 0
      %752 = vmatmul.mubr.bf16.gmra.mrb[0].mxu0 %v520
      %v753 = vpop.f32.mrb[0].mxu0
      %v754 = vadd.f32 0.0, %v753
      %v755 = vpop.f32.mrb[0].mxu0
      %v756 = vpop.f32.mrb[0].mxu0
      %v757 = vadd.f32 0.0, %v756
      %v758 = vpop.f32.mrb[0].mxu0
      %759 = vmatprep.mubr.bf16.mxu0 0
      %760 = vmatmul.mubr.bf16.gmra.mrb[0].mxu0 %v523
      %v761 = vpop.f32.mrb[0].mxu0
      %v762 = vadd.f32 0.0, %v761
      %v763 = vpop.f32.mrb[0].mxu0
      %v764 = vpop.f32.mrb[0].mxu0
      %v765 = vadd.f32 0.0, %v764
      %v766 = vpop.f32.mrb[0].mxu0
      %767 = vmatprep.mubr.bf16.mxu0 0
      %768 = vmatmul.mubr.bf16.gmra.mrb[0].mxu0 %v526
      %v769 = vpop.f32.mrb[0].mxu0
      %v770 = vadd.f32 0.0, %v769
      %v771 = vpop.f32.mrb[0].mxu0
      %v772 = vpop.f32.mrb[0].mxu0
      %v773 = vadd.f32 0.0, %v772
      %v774 = vpop.f32.mrb[0].mxu0
      %775 = vmatprep.mubr.bf16.mxu0 0
      %776 = vmatmul.mubr.bf16.gmra.mrb[0].mxu0 %v529
      %v777 = vpop.f32.mrb[0].mxu0
      %v778 = vadd.f32 0.0, %v777
      %v779 = vpop.f32.mrb[0].mxu0
      %v780 = vpop.f32.mrb[0].mxu0
      %v781 = vadd.f32 0.0, %v780
      %v782 = vpop.f32.mrb[0].mxu0
      %783 = vmatprep.mubr.bf16.mxu0 0
      %784 = vmatmul.mubr.bf16.gmra.mrb[0].mxu0 %v532
      %v785 = vpop.f32.mrb[0].mxu0
      %v786 = vadd.f32 0.0, %v785
      %v787 = vpop.f32.mrb[0].mxu0
      %v788 = vpop.f32.mrb[0].mxu0
      %v789 = vadd.f32 0.0, %v788
      %v790 = vpop.f32.mrb[0].mxu0
      %791 = vmatprep.mubr.bf16.mxu0 0
      %792 = vmatmul.mubr.bf16.gmra.mrb[0].mxu0 %v535
      %v793 = vpop.f32.mrb[0].mxu0
      %v794 = vadd.f32 0.0, %v793
      %v795 = vpop.f32.mrb[0].mxu0
      %v796 = vpop.f32.mrb[0].mxu0
      %v797 = vadd.f32 0.0, %v796
      %v798 = vpop.f32.mrb[0].mxu0
      %799 = vmatprep.mubr.bf16.mxu0 0
      %800 = vmatmul.mubr.bf16.gmra.mrb[0].mxu0 %v538
      %v801 = vpop.f32.mrb[0].mxu0
      %v802 = vadd.f32 0.0, %v801
      %v803 = vpop.f32.mrb[0].mxu0
      %v804 = vpop.f32.mrb[0].mxu0
      %v805 = vadd.f32 0.0, %v804
      %v806 = vpop.f32.mrb[0].mxu0
      %807 = vmatprep.mubr.bf16.mxu0 0
      %808 = vmatmul.mubr.bf16.gmra.mrb[0].mxu0 %v541
      %v809 = vpop.f32.mrb[0].mxu0
      %v810 = vadd.f32 0.0, %v809
      %v811 = vpop.f32.mrb[0].mxu0
      %v812 = vpop.f32.mrb[0].mxu0
      %v813 = vadd.f32 0.0, %v812
      %v814 = vpop.f32.mrb[0].mxu0
      %815 = vmatprep.mubr.bf16.mxu0 0
      %816 = vmatmul.mubr.bf16.gmra.mrb[0].mxu0 %v544
      %v817 = vpop.f32.mrb[0].mxu0
      %v818 = vadd.f32 0.0, %v817
      %v819 = vpop.f32.mrb[0].mxu0
      %v820 = vpop.f32.mrb[0].mxu0
      %v821 = vadd.f32 0.0, %v820
      %v822 = vpop.f32.mrb[0].mxu0
      %823 = vmatprep.mubr.bf16.mxu0 0
      %824 = vmatmul.mubr.bf16.gmra.mrb[0].mxu0 %v547
      %v825 = vpop.f32.mrb[0].mxu0
      %v826 = vadd.f32 0.0, %v825
      %v827 = vpop.f32.mrb[0].mxu0
      %v828 = vpop.f32.mrb[0].mxu0
      %v829 = vadd.f32 0.0, %v828
      %v830 = vpop.f32.mrb[0].mxu0
      %831 = vmatprep.mubr.bf16.mxu0 0
      %832 = vmatmul.mubr.bf16.gmra.mrb[0].mxu0 %v550
      %v833 = vpop.f32.mrb[0].mxu0
      %v834 = vadd.f32 0.0, %v833
      %v835 = vpop.f32.mrb[0].mxu0
      %v836 = vpop.f32.mrb[0].mxu0
      %v837 = vadd.f32 0.0, %v836
      %v838 = vpop.f32.mrb[0].mxu0
      %839 = vmatprep.mubr.bf16.mxu0 0
      %840 = vmatmul.mubr.bf16.gmra.mrb[0].mxu0 %v553
      %v841 = vpop.f32.mrb[0].mxu0
      %v842 = vadd.f32 0.0, %v841
      %v843 = vpop.f32.mrb[0].mxu0
      %v844 = vpop.f32.mrb[0].mxu0
      %v845 = vadd.f32 0.0, %v844
      %v846 = vpop.f32.mrb[0].mxu0
      %847 = vdwg.mxu0
      %p848 = scmp.eq.s32.totalorder %s19, 0
      %p849 = scmp.eq.s32.totalorder %s20, 0
      %p850 = pnand %p848, %p849
      %p851 = pneg %p850
      // Predicated region
      $region37: #{main_net_forward.3} parent=35 // pred_check
        _
      $region38: #{main_net_forward.3} parent=35 // pred_check_branch
        %853 = sbr.rel (%p850) target = $region40
      $region39: #{main_net_forward.3} parent=35 // pred_region
        %854 = vst [vmem:[#allocation2] sm:$0x3] 0.0
      $region40: #{main_net_forward.3} parent=35 // pred_fallthru
        _
      // Predicated region
      $region41: #{main_net_forward.3} parent=35 // pred_check
        %p855 = pneg %p848
      $region42: #{main_net_forward.3} parent=35 // pred_check_branch
        %857 = sbr.rel (%p855) target = $region44
      $region43: #{main_net_forward.3} parent=35 // pred_region
        %v858 = vld [vmem:[#allocation2] sm:$0x1]
        %v859 = vadd.f32 %v594, %v597
        %v860 = vadd.f32 %v859, %v602
        %v861 = vadd.f32 %v860, %v605
        %v862 = vadd.f32 %v861, %v610
        %v863 = vadd.f32 %v862, %v613
        %v864 = vadd.f32 %v863, %v618
        %v865 = vadd.f32 %v864, %v621
        %v866 = vadd.f32 %v865, %v626
        %v867 = vadd.f32 %v866, %v629
        %v868 = vadd.f32 %v867, %v634
        %v869 = vadd.f32 %v868, %v637
        %v870 = vadd.f32 %v869, %v642
        %v871 = vadd.f32 %v870, %v645
        %v872 = vadd.f32 %v871, %v650
        %v873 = vadd.f32 %v872, %v653
        %v874 = vadd.f32 %v873, %v658
        %v875 = vadd.f32 %v874, %v661
        %v876 = vadd.f32 %v875, %v666
        %v877 = vadd.f32 %v876, %v669
        %v878 = vadd.f32 %v877, %v674
        %v879 = vadd.f32 %v878, %v677
        %v880 = vadd.f32 %v879, %v682
        %v881 = vadd.f32 %v880, %v685
        %v882 = vadd.f32 %v881, %v690
        %v883 = vadd.f32 %v882, %v693
        %v884 = vadd.f32 %v883, %v698
        %v885 = vadd.f32 %v884, %v701
        %v886 = vadd.f32 %v885, %v706
        %v887 = vadd.f32 %v886, %v709
        %v888 = vadd.f32 %v887, %v714
        %v889 = vadd.f32 %v888, %v717
        %v890 = vadd.f32 %v889, %v722
        %v891 = vadd.f32 %v890, %v725
        %v892 = vadd.f32 %v891, %v730
        %v893 = vadd.f32 %v892, %v733
        %v894 = vadd.f32 %v893, %v738
        %v895 = vadd.f32 %v894, %v741
        %v896 = vadd.f32 %v895, %v746
        %v897 = vadd.f32 %v896, %v749
        %v898 = vadd.f32 %v897, %v754
        %v899 = vadd.f32 %v898, %v757
        %v900 = vadd.f32 %v899, %v762
        %v901 = vadd.f32 %v900, %v765
        %v902 = vadd.f32 %v901, %v770
        %v903 = vadd.f32 %v902, %v773
        %v904 = vadd.f32 %v903, %v778
        %v905 = vadd.f32 %v904, %v781
        %v906 = vadd.f32 %v905, %v786
        %v907 = vadd.f32 %v906, %v789
        %v908 = vadd.f32 %v907, %v794
        %v909 = vadd.f32 %v908, %v797
        %v910 = vadd.f32 %v909, %v802
        %v911 = vadd.f32 %v910, %v805
        %v912 = vadd.f32 %v911, %v810
        %v913 = vadd.f32 %v912, %v813
        %v914 = vadd.f32 %v913, %v818
        %v915 = vadd.f32 %v914, %v821
        %v916 = vadd.f32 %v915, %v826
        %v917 = vadd.f32 %v916, %v829
        %v918 = vadd.f32 %v917, %v834
        %v919 = vadd.f32 %v918, %v837
        %v920 = vadd.f32 %v919, %v842
        %v921 = vadd.f32 %v920, %v845
        %v922 = vrot.slane %v921, 4
        %v923 = vadd.f32 %v921, %v922
        %v924 = vrot.slane %v923, 2
        %v925 = vadd.f32 %v923, %v924
        %v926 = vrot.slane %v925, 1
        %v927 = vadd.f32 %v925, %v926
        %v928 = vadd.f32 %v858, %v927
        %929 = vst [vmem:[#allocation2] sm:$0x1] %v928
        %v930 = vld [vmem:[#allocation2 + $0x1] sm:$0x1]
        %v931 = vmul.f32 %v594, %v594
        %v932 = vmul.f32 %v597, %v597
        %v933 = vmul.f32 %v602, %v602
        %v934 = vmul.f32 %v605, %v605
        %v935 = vmul.f32 %v610, %v610
        %v936 = vmul.f32 %v613, %v613
        %v937 = vmul.f32 %v618, %v618
        %v938 = vmul.f32 %v621, %v621
        %v939 = vmul.f32 %v626, %v626
        %v940 = vmul.f32 %v629, %v629
        %v941 = vmul.f32 %v634, %v634
        %v942 = vmul.f32 %v637, %v637
        %v943 = vmul.f32 %v642, %v642
        %v944 = vmul.f32 %v645, %v645
        %v945 = vmul.f32 %v650, %v650
        %v946 = vmul.f32 %v653, %v653
        %v947 = vmul.f32 %v658, %v658
        %v948 = vmul.f32 %v661, %v661
        %v949 = vmul.f32 %v666, %v666
        %v950 = vmul.f32 %v669, %v669
        %v951 = vmul.f32 %v674, %v674
        %v952 = vmul.f32 %v677, %v677
        %v953 = vmul.f32 %v682, %v682
        %v954 = vmul.f32 %v685, %v685
        %v955 = vmul.f32 %v690, %v690
        %v956 = vmul.f32 %v693, %v693
        %v957 = vmul.f32 %v698, %v698
        %v958 = vmul.f32 %v701, %v701
        %v959 = vmul.f32 %v706, %v706
        %v960 = vmul.f32 %v709, %v709
        %v961 = vmul.f32 %v714, %v714
        %v962 = vmul.f32 %v717, %v717
        %v963 = vmul.f32 %v722, %v722
        %v964 = vmul.f32 %v725, %v725
        %v965 = vmul.f32 %v730, %v730
        %v966 = vmul.f32 %v733, %v733
        %v967 = vmul.f32 %v738, %v738
        %v968 = vmul.f32 %v741, %v741
        %v969 = vmul.f32 %v746, %v746
        %v970 = vmul.f32 %v749, %v749
        %v971 = vmul.f32 %v754, %v754
        %v972 = vmul.f32 %v757, %v757
        %v973 = vmul.f32 %v762, %v762
        %v974 = vmul.f32 %v765, %v765
        %v975 = vmul.f32 %v770, %v770
        %v976 = vmul.f32 %v773, %v773
        %v977 = vmul.f32 %v778, %v778
        %v978 = vmul.f32 %v781, %v781
        %v979 = vmul.f32 %v786, %v786
        %v980 = vmul.f32 %v789, %v789
        %v981 = vmul.f32 %v794, %v794
        %v982 = vmul.f32 %v797, %v797
        %v983 = vmul.f32 %v802, %v802
        %v984 = vmul.f32 %v805, %v805
        %v985 = vmul.f32 %v810, %v810
        %v986 = vmul.f32 %v813, %v813
        %v987 = vmul.f32 %v818, %v818
        %v988 = vmul.f32 %v821, %v821
        %v989 = vmul.f32 %v826, %v826
        %v990 = vmul.f32 %v829, %v829
        %v991 = vmul.f32 %v834, %v834
        %v992 = vmul.f32 %v837, %v837
        %v993 = vmul.f32 %v842, %v842
        %v994 = vmul.f32 %v845, %v845
        %v995 = vadd.f32 %v931, %v932
        %v996 = vadd.f32 %v995, %v933
        %v997 = vadd.f32 %v996, %v934
        %v998 = vadd.f32 %v997, %v935
        %v999 = vadd.f32 %v998, %v936
        %v1000 = vadd.f32 %v999, %v937
        %v1001 = vadd.f32 %v1000, %v938
        %v1002 = vadd.f32 %v1001, %v939
        %v1003 = vadd.f32 %v1002, %v940
        %v1004 = vadd.f32 %v1003, %v941
        %v1005 = vadd.f32 %v1004, %v942
        %v1006 = vadd.f32 %v1005, %v943
        %v1007 = vadd.f32 %v1006, %v944
        %v1008 = vadd.f32 %v1007, %v945
        %v1009 = vadd.f32 %v1008, %v946
        %v1010 = vadd.f32 %v1009, %v947
        %v1011 = vadd.f32 %v1010, %v948
        %v1012 = vadd.f32 %v1011, %v949
        %v1013 = vadd.f32 %v1012, %v950
        %v1014 = vadd.f32 %v1013, %v951
        %v1015 = vadd.f32 %v1014, %v952
        %v1016 = vadd.f32 %v1015, %v953
        %v1017 = vadd.f32 %v1016, %v954
        %v1018 = vadd.f32 %v1017, %v955
        %v1019 = vadd.f32 %v1018, %v956
        %v1020 = vadd.f32 %v1019, %v957
        %v1021 = vadd.f32 %v1020, %v958
        %v1022 = vadd.f32 %v1021, %v959
        %v1023 = vadd.f32 %v1022, %v960
        %v1024 = vadd.f32 %v1023, %v961
        %v1025 = vadd.f32 %v1024, %v962
        %v1026 = vadd.f32 %v1025, %v963
        %v1027 = vadd.f32 %v1026, %v964
        %v1028 = vadd.f32 %v1027, %v965
        %v1029 = vadd.f32 %v1028, %v966
        %v1030 = vadd.f32 %v1029, %v967
        %v1031 = vadd.f32 %v1030, %v968
        %v1032 = vadd.f32 %v1031, %v969
        %v1033 = vadd.f32 %v1032, %v970
        %v1034 = vadd.f32 %v1033, %v971
        %v1035 = vadd.f32 %v1034, %v972
        %v1036 = vadd.f32 %v1035, %v973
        %v1037 = vadd.f32 %v1036, %v974
        %v1038 = vadd.f32 %v1037, %v975
        %v1039 = vadd.f32 %v1038, %v976
        %v1040 = vadd.f32 %v1039, %v977
        %v1041 = vadd.f32 %v1040, %v978
        %v1042 = vadd.f32 %v1041, %v979
        %v1043 = vadd.f32 %v1042, %v980
        %v1044 = vadd.f32 %v1043, %v981
        %v1045 = vadd.f32 %v1044, %v982
        %v1046 = vadd.f32 %v1045, %v983
        %v1047 = vadd.f32 %v1046, %v984
        %v1048 = vadd.f32 %v1047, %v985
        %v1049 = vadd.f32 %v1048, %v986
        %v1050 = vadd.f32 %v1049, %v987
        %v1051 = vadd.f32 %v1050, %v988
        %v1052 = vadd.f32 %v1051, %v989
        %v1053 = vadd.f32 %v1052, %v990
        %v1054 = vadd.f32 %v1053, %v991
        %v1055 = vadd.f32 %v1054, %v992
        %v1056 = vadd.f32 %v1055, %v993
        %v1057 = vadd.f32 %v1056, %v994
        %v1058 = vrot.slane %v1057, 4
        %v1059 = vadd.f32 %v1057, %v1058
        %v1060 = vrot.slane %v1059, 2
        %v1061 = vadd.f32 %v1059, %v1060
        %v1062 = vrot.slane %v1061, 1
        %v1063 = vadd.f32 %v1061, %v1062
        %v1064 = vadd.f32 %v930, %v1063
        %1065 = vst [vmem:[#allocation2 + $0x1] sm:$0x1] %v1064
        %1066 = vst [vmem:[%s211] sm:$0xff] %v594
        %1067 = vst [vmem:[%s211 + $0x8] sm:$0xff] %v597
        %1068 = vst [vmem:[%s211 + $0x10] sm:$0xff] %v602
        %1069 = vst [vmem:[%s211 + $0x18] sm:$0xff] %v605
        %1070 = vst [vmem:[%s211 + $0x20] sm:$0xff] %v610
        %1071 = vst [vmem:[%s211 + $0x28] sm:$0xff] %v613
        %1072 = vst [vmem:[%s211 + $0x30] sm:$0xff] %v618
        %1073 = vst [vmem:[%s211 + $0x38] sm:$0xff] %v621
        %1074 = vst [vmem:[%s211 + $0x40] sm:$0xff] %v626
        %1075 = vst [vmem:[%s211 + $0x48] sm:$0xff] %v629
        %1076 = vst [vmem:[%s211 + $0x50] sm:$0xff] %v634
        %1077 = vst [vmem:[%s211 + $0x58] sm:$0xff] %v637
        %1078 = vst [vmem:[%s211 + $0x60] sm:$0xff] %v642
        %1079 = vst [vmem:[%s211 + $0x68] sm:$0xff] %v645
        %1080 = vst [vmem:[%s211 + $0x70] sm:$0xff] %v650
        %1081 = vst [vmem:[%s211 + $0x78] sm:$0xff] %v653
        %1082 = vst [vmem:[%s211 + $0x80] sm:$0xff] %v658
        %1083 = vst [vmem:[%s211 + $0x88] sm:$0xff] %v661
        %1084 = vst [vmem:[%s211 + $0x90] sm:$0xff] %v666
        %1085 = vst [vmem:[%s211 + $0x98] sm:$0xff] %v669
        %1086 = vst [vmem:[%s211 + $0xa0] sm:$0xff] %v674
        %1087 = vst [vmem:[%s211 + $0xa8] sm:$0xff] %v677
        %1088 = vst [vmem:[%s211 + $0xb0] sm:$0xff] %v682
        %1089 = vst [vmem:[%s211 + $0xb8] sm:$0xff] %v685
        %1090 = vst [vmem:[%s211 + $0xc0] sm:$0xff] %v690
        %1091 = vst [vmem:[%s211 + $0xc8] sm:$0xff] %v693
        %1092 = vst [vmem:[%s211 + $0xd0] sm:$0xff] %v698
        %1093 = vst [vmem:[%s211 + $0xd8] sm:$0xff] %v701
        %1094 = vst [vmem:[%s211 + $0xe0] sm:$0xff] %v706
        %1095 = vst [vmem:[%s211 + $0xe8] sm:$0xff] %v709
        %1096 = vst [vmem:[%s211 + $0xf0] sm:$0xff] %v714
        %1097 = vst [vmem:[%s211 + $0xf8] sm:$0xff] %v717
        %1098 = vst [vmem:[%s211 + $0x100] sm:$0xff] %v722
        %1099 = vst [vmem:[%s211 + $0x108] sm:$0xff] %v725
        %1100 = vst [vmem:[%s211 + $0x110] sm:$0xff] %v730
        %1101 = vst [vmem:[%s211 + $0x118] sm:$0xff] %v733
        %1102 = vst [vmem:[%s211 + $0x120] sm:$0xff] %v738
        %1103 = vst [vmem:[%s211 + $0x128] sm:$0xff] %v741
        %1104 = vst [vmem:[%s211 + $0x130] sm:$0xff] %v746
        %1105 = vst [vmem:[%s211 + $0x138] sm:$0xff] %v749
        %1106 = vst [vmem:[%s211 + $0x140] sm:$0xff] %v754
        %1107 = vst [vmem:[%s211 + $0x148] sm:$0xff] %v757
        %1108 = vst [vmem:[%s211 + $0x150] sm:$0xff] %v762
        %1109 = vst [vmem:[%s211 + $0x158] sm:$0xff] %v765
        %1110 = vst [vmem:[%s211 + $0x160] sm:$0xff] %v770
        %1111 = vst [vmem:[%s211 + $0x168] sm:$0xff] %v773
        %1112 = vst [vmem:[%s211 + $0x170] sm:$0xff] %v778
        %1113 = vst [vmem:[%s211 + $0x178] sm:$0xff] %v781
        %1114 = vst [vmem:[%s211 + $0x180] sm:$0xff] %v786
        %1115 = vst [vmem:[%s211 + $0x188] sm:$0xff] %v789
        %1116 = vst [vmem:[%s211 + $0x190] sm:$0xff] %v794
        %1117 = vst [vmem:[%s211 + $0x198] sm:$0xff] %v797
        %1118 = vst [vmem:[%s211 + $0x1a0] sm:$0xff] %v802
        %1119 = vst [vmem:[%s211 + $0x1a8] sm:$0xff] %v805
        %1120 = vst [vmem:[%s211 + $0x1b0] sm:$0xff] %v810
        %1121 = vst [vmem:[%s211 + $0x1b8] sm:$0xff] %v813
        %1122 = vst [vmem:[%s211 + $0x1c0] sm:$0xff] %v818
        %1123 = vst [vmem:[%s211 + $0x1c8] sm:$0xff] %v821
        %1124 = vst [vmem:[%s211 + $0x1d0] sm:$0xff] %v826
        %1125 = vst [vmem:[%s211 + $0x1d8] sm:$0xff] %v829
        %1126 = vst [vmem:[%s211 + $0x1e0] sm:$0xff] %v834
        %1127 = vst [vmem:[%s211 + $0x1e8] sm:$0xff] %v837
        %1128 = vst [vmem:[%s211 + $0x1f0] sm:$0xff] %v842
        %1129 = vst [vmem:[%s211 + $0x1f8] sm:$0xff] %v845
      $region44: #{main_net_forward.3} parent=35 // pred_fallthru
        _
      %p1130 = scmp.eq.s32.totalorder %s19, 1
      // Predicated region
      $region45: #{main_net_forward.3} parent=35 // pred_check
        %p1131 = pneg %p1130
      $region46: #{main_net_forward.3} parent=35 // pred_check_branch
        %1133 = sbr.rel (%p1131) target = $region48
      $region47: #{main_net_forward.3} parent=35 // pred_region
        %v1134 = vld [vmem:[#allocation2] sm:$0x1]
        %v1135 = vmul.f32 %v1134, 0.001953125
        %v1136 = vld [vmem:[#allocation2 + $0x1] sm:$0x1]
        %v1137 = vmul.f32 %v1136, 0.001953125
        %v1138 = vmul.f32 %v1135, %v1135
        %v1139 = vsub.f32 %v1137, %v1138
        %v1140 = vadd.f32 %v1139, 1e-05
        %v1141 = vrsqrt.pop %v1140
        %v1142 = vld [vmem:[%s2] sm:$0x1]
        %v1143 = vmul.f32 %v1141, %v1142
        %v1144 = vld [vmem:[%s3] sm:$0x1]
        %v1145 = vmul.f32 %v1135, %v1143
        %v1146 = vsub.f32 %v1144, %v1145
        %v1147 = vlaneseq
        %v1148 = vshrl.u32 %v1147, 7
        %v1149 = vsub.s32 0, %v1148
        %v1150 = vrot.slane %v1143, %v1149
        %v1151 = vmul.f32 %v594, %v1150
        %v1152 = vmul.f32 %v597, %v1150
        %v1153 = vmul.f32 %v602, %v1150
        %v1154 = vmul.f32 %v605, %v1150
        %v1155 = vmul.f32 %v610, %v1150
        %v1156 = vmul.f32 %v613, %v1150
        %v1157 = vmul.f32 %v618, %v1150
        %v1158 = vmul.f32 %v621, %v1150
        %v1159 = vmul.f32 %v626, %v1150
        %v1160 = vmul.f32 %v629, %v1150
        %v1161 = vmul.f32 %v634, %v1150
        %v1162 = vmul.f32 %v637, %v1150
        %v1163 = vmul.f32 %v642, %v1150
        %v1164 = vmul.f32 %v645, %v1150
        %v1165 = vmul.f32 %v650, %v1150
        %v1166 = vmul.f32 %v653, %v1150
        %v1167 = vmul.f32 %v658, %v1150
        %v1168 = vmul.f32 %v661, %v1150
        %v1169 = vmul.f32 %v666, %v1150
        %v1170 = vmul.f32 %v669, %v1150
        %v1171 = vmul.f32 %v674, %v1150
        %v1172 = vmul.f32 %v677, %v1150
        %v1173 = vmul.f32 %v682, %v1150
        %v1174 = vmul.f32 %v685, %v1150
        %v1175 = vmul.f32 %v690, %v1150
        %v1176 = vmul.f32 %v693, %v1150
        %v1177 = vmul.f32 %v698, %v1150
        %v1178 = vmul.f32 %v701, %v1150
        %v1179 = vmul.f32 %v706, %v1150
        %v1180 = vmul.f32 %v709, %v1150
        %v1181 = vmul.f32 %v714, %v1150
        %v1182 = vmul.f32 %v717, %v1150
        %v1183 = vmul.f32 %v722, %v1150
        %v1184 = vmul.f32 %v725, %v1150
        %v1185 = vmul.f32 %v730, %v1150
        %v1186 = vmul.f32 %v733, %v1150
        %v1187 = vmul.f32 %v738, %v1150
        %v1188 = vmul.f32 %v741, %v1150
        %v1189 = vmul.f32 %v746, %v1150
        %v1190 = vmul.f32 %v749, %v1150
        %v1191 = vmul.f32 %v754, %v1150
        %v1192 = vmul.f32 %v757, %v1150
        %v1193 = vmul.f32 %v762, %v1150
        %v1194 = vmul.f32 %v765, %v1150
        %v1195 = vmul.f32 %v770, %v1150
        %v1196 = vmul.f32 %v773, %v1150
        %v1197 = vmul.f32 %v778, %v1150
        %v1198 = vmul.f32 %v781, %v1150
        %v1199 = vmul.f32 %v786, %v1150
        %v1200 = vmul.f32 %v789, %v1150
        %v1201 = vmul.f32 %v794, %v1150
        %v1202 = vmul.f32 %v797, %v1150
        %v1203 = vmul.f32 %v802, %v1150
        %v1204 = vmul.f32 %v805, %v1150
        %v1205 = vmul.f32 %v810, %v1150
        %v1206 = vmul.f32 %v813, %v1150
        %v1207 = vmul.f32 %v818, %v1150
        %v1208 = vmul.f32 %v821, %v1150
        %v1209 = vmul.f32 %v826, %v1150
        %v1210 = vmul.f32 %v829, %v1150
        %v1211 = vmul.f32 %v834, %v1150
        %v1212 = vmul.f32 %v837, %v1150
        %v1213 = vmul.f32 %v842, %v1150
        %v1214 = vmul.f32 %v845, %v1150
        %v1216 = vlaneseq
        %v1217 = vshrl.u32 %v1216, 7
        %v1218 = vsub.s32 0, %v1217
        %v1219 = vrot.slane %v1146, %v1218
        %v1221 = vadd.f32 %v1151, %v1219
        %v1222 = vadd.f32 %v1152, %v1219
        %v1223 = vadd.f32 %v1153, %v1219
        %v1224 = vadd.f32 %v1154, %v1219
        %v1225 = vadd.f32 %v1155, %v1219
        %v1226 = vadd.f32 %v1156, %v1219
        %v1227 = vadd.f32 %v1157, %v1219
        %v1228 = vadd.f32 %v1158, %v1219
        %v1229 = vadd.f32 %v1159, %v1219
        %v1230 = vadd.f32 %v1160, %v1219
        %v1231 = vadd.f32 %v1161, %v1219
        %v1232 = vadd.f32 %v1162, %v1219
        %v1233 = vadd.f32 %v1163, %v1219
        %v1234 = vadd.f32 %v1164, %v1219
        %v1235 = vadd.f32 %v1165, %v1219
        %v1236 = vadd.f32 %v1166, %v1219
        %v1237 = vadd.f32 %v1167, %v1219
        %v1238 = vadd.f32 %v1168, %v1219
        %v1239 = vadd.f32 %v1169, %v1219
        %v1240 = vadd.f32 %v1170, %v1219
        %v1241 = vadd.f32 %v1171, %v1219
        %v1242 = vadd.f32 %v1172, %v1219
        %v1243 = vadd.f32 %v1173, %v1219
        %v1244 = vadd.f32 %v1174, %v1219
        %v1245 = vadd.f32 %v1175, %v1219
        %v1246 = vadd.f32 %v1176, %v1219
        %v1247 = vadd.f32 %v1177, %v1219
        %v1248 = vadd.f32 %v1178, %v1219
        %v1249 = vadd.f32 %v1179, %v1219
        %v1250 = vadd.f32 %v1180, %v1219
        %v1251 = vadd.f32 %v1181, %v1219
        %v1252 = vadd.f32 %v1182, %v1219
        %v1253 = vadd.f32 %v1183, %v1219
        %v1254 = vadd.f32 %v1184, %v1219
        %v1255 = vadd.f32 %v1185, %v1219
        %v1256 = vadd.f32 %v1186, %v1219
        %v1257 = vadd.f32 %v1187, %v1219
        %v1258 = vadd.f32 %v1188, %v1219
        %v1259 = vadd.f32 %v1189, %v1219
        %v1260 = vadd.f32 %v1190, %v1219
        %v1261 = vadd.f32 %v1191, %v1219
        %v1262 = vadd.f32 %v1192, %v1219
        %v1263 = vadd.f32 %v1193, %v1219
        %v1264 = vadd.f32 %v1194, %v1219
        %v1265 = vadd.f32 %v1195, %v1219
        %v1266 = vadd.f32 %v1196, %v1219
        %v1267 = vadd.f32 %v1197, %v1219
        %v1268 = vadd.f32 %v1198, %v1219
        %v1269 = vadd.f32 %v1199, %v1219
        %v1270 = vadd.f32 %v1200, %v1219
        %v1271 = vadd.f32 %v1201, %v1219
        %v1272 = vadd.f32 %v1202, %v1219
        %v1273 = vadd.f32 %v1203, %v1219
        %v1274 = vadd.f32 %v1204, %v1219
        %v1275 = vadd.f32 %v1205, %v1219
        %v1276 = vadd.f32 %v1206, %v1219
        %v1277 = vadd.f32 %v1207, %v1219
        %v1278 = vadd.f32 %v1208, %v1219
        %v1279 = vadd.f32 %v1209, %v1219
        %v1280 = vadd.f32 %v1210, %v1219
        %v1281 = vadd.f32 %v1211, %v1219
        %v1282 = vadd.f32 %v1212, %v1219
        %v1283 = vadd.f32 %v1213, %v1219
        %v1284 = vadd.f32 %v1214, %v1219
        %v1285 = vmax.f32 %v1221, 0.0
        %v1286 = vmax.f32 %v1222, 0.0
        %v1287 = vmax.f32 %v1223, 0.0
        %v1288 = vmax.f32 %v1224, 0.0
        %v1289 = vmax.f32 %v1225, 0.0
        %v1290 = vmax.f32 %v1226, 0.0
        %v1291 = vmax.f32 %v1227, 0.0
        %v1292 = vmax.f32 %v1228, 0.0
        %v1293 = vmax.f32 %v1229, 0.0
        %v1294 = vmax.f32 %v1230, 0.0
        %v1295 = vmax.f32 %v1231, 0.0
        %v1296 = vmax.f32 %v1232, 0.0
        %v1297 = vmax.f32 %v1233, 0.0
        %v1298 = vmax.f32 %v1234, 0.0
        %v1299 = vmax.f32 %v1235, 0.0
        %v1300 = vmax.f32 %v1236, 0.0
        %v1301 = vmax.f32 %v1237, 0.0
        %v1302 = vmax.f32 %v1238, 0.0
        %v1303 = vmax.f32 %v1239, 0.0
        %v1304 = vmax.f32 %v1240, 0.0
        %v1305 = vmax.f32 %v1241, 0.0
        %v1306 = vmax.f32 %v1242, 0.0
        %v1307 = vmax.f32 %v1243, 0.0
        %v1308 = vmax.f32 %v1244, 0.0
        %v1309 = vmax.f32 %v1245, 0.0
        %v1310 = vmax.f32 %v1246, 0.0
        %v1311 = vmax.f32 %v1247, 0.0
        %v1312 = vmax.f32 %v1248, 0.0
        %v1313 = vmax.f32 %v1249, 0.0
        %v1314 = vmax.f32 %v1250, 0.0
        %v1315 = vmax.f32 %v1251, 0.0
        %v1316 = vmax.f32 %v1252, 0.0
        %v1317 = vmax.f32 %v1253, 0.0
        %v1318 = vmax.f32 %v1254, 0.0
        %v1319 = vmax.f32 %v1255, 0.0
        %v1320 = vmax.f32 %v1256, 0.0
        %v1321 = vmax.f32 %v1257, 0.0
        %v1322 = vmax.f32 %v1258, 0.0
        %v1323 = vmax.f32 %v1259, 0.0
        %v1324 = vmax.f32 %v1260, 0.0
        %v1325 = vmax.f32 %v1261, 0.0
        %v1326 = vmax.f32 %v1262, 0.0
        %v1327 = vmax.f32 %v1263, 0.0
        %v1328 = vmax.f32 %v1264, 0.0
        %v1329 = vmax.f32 %v1265, 0.0
        %v1330 = vmax.f32 %v1266, 0.0
        %v1331 = vmax.f32 %v1267, 0.0
        %v1332 = vmax.f32 %v1268, 0.0
        %v1333 = vmax.f32 %v1269, 0.0
        %v1334 = vmax.f32 %v1270, 0.0
        %v1335 = vmax.f32 %v1271, 0.0
        %v1336 = vmax.f32 %v1272, 0.0
        %v1337 = vmax.f32 %v1273, 0.0
        %v1338 = vmax.f32 %v1274, 0.0
        %v1339 = vmax.f32 %v1275, 0.0
        %v1340 = vmax.f32 %v1276, 0.0
        %v1341 = vmax.f32 %v1277, 0.0
        %v1342 = vmax.f32 %v1278, 0.0
        %v1343 = vmax.f32 %v1279, 0.0
        %v1344 = vmax.f32 %v1280, 0.0
        %v1345 = vmax.f32 %v1281, 0.0
        %v1346 = vmax.f32 %v1282, 0.0
        %v1347 = vmax.f32 %v1283, 0.0
        %v1348 = vmax.f32 %v1284, 0.0
        %1349 = vst [vmem:[%s211] sm:$0xff] %v1285
        %1350 = vst [vmem:[%s211 + $0x8] sm:$0xff] %v1286
        %1351 = vst [vmem:[%s211 + $0x10] sm:$0xff] %v1287
        %1352 = vst [vmem:[%s211 + $0x18] sm:$0xff] %v1288
        %1353 = vst [vmem:[%s211 + $0x20] sm:$0xff] %v1289
        %1354 = vst [vmem:[%s211 + $0x28] sm:$0xff] %v1290
        %1355 = vst [vmem:[%s211 + $0x30] sm:$0xff] %v1291
        %1356 = vst [vmem:[%s211 + $0x38] sm:$0xff] %v1292
        %1357 = vst [vmem:[%s211 + $0x40] sm:$0xff] %v1293
        %1358 = vst [vmem:[%s211 + $0x48] sm:$0xff] %v1294
        %1359 = vst [vmem:[%s211 + $0x50] sm:$0xff] %v1295
        %1360 = vst [vmem:[%s211 + $0x58] sm:$0xff] %v1296
        %1361 = vst [vmem:[%s211 + $0x60] sm:$0xff] %v1297
        %1362 = vst [vmem:[%s211 + $0x68] sm:$0xff] %v1298
        %1363 = vst [vmem:[%s211 + $0x70] sm:$0xff] %v1299
        %1364 = vst [vmem:[%s211 + $0x78] sm:$0xff] %v1300
        %1365 = vst [vmem:[%s211 + $0x80] sm:$0xff] %v1301
        %1366 = vst [vmem:[%s211 + $0x88] sm:$0xff] %v1302
        %1367 = vst [vmem:[%s211 + $0x90] sm:$0xff] %v1303
        %1368 = vst [vmem:[%s211 + $0x98] sm:$0xff] %v1304
        %1369 = vst [vmem:[%s211 + $0xa0] sm:$0xff] %v1305
        %1370 = vst [vmem:[%s211 + $0xa8] sm:$0xff] %v1306
        %1371 = vst [vmem:[%s211 + $0xb0] sm:$0xff] %v1307
        %1372 = vst [vmem:[%s211 + $0xb8] sm:$0xff] %v1308
        %1373 = vst [vmem:[%s211 + $0xc0] sm:$0xff] %v1309
        %1374 = vst [vmem:[%s211 + $0xc8] sm:$0xff] %v1310
        %1375 = vst [vmem:[%s211 + $0xd0] sm:$0xff] %v1311
        %1376 = vst [vmem:[%s211 + $0xd8] sm:$0xff] %v1312
        %1377 = vst [vmem:[%s211 + $0xe0] sm:$0xff] %v1313
        %1378 = vst [vmem:[%s211 + $0xe8] sm:$0xff] %v1314
        %1379 = vst [vmem:[%s211 + $0xf0] sm:$0xff] %v1315
        %1380 = vst [vmem:[%s211 + $0xf8] sm:$0xff] %v1316
        %1381 = vst [vmem:[%s211 + $0x100] sm:$0xff] %v1317
        %1382 = vst [vmem:[%s211 + $0x108] sm:$0xff] %v1318
        %1383 = vst [vmem:[%s211 + $0x110] sm:$0xff] %v1319
        %1384 = vst [vmem:[%s211 + $0x118] sm:$0xff] %v1320
        %1385 = vst [vmem:[%s211 + $0x120] sm:$0xff] %v1321
        %1386 = vst [vmem:[%s211 + $0x128] sm:$0xff] %v1322
        %1387 = vst [vmem:[%s211 + $0x130] sm:$0xff] %v1323
        %1388 = vst [vmem:[%s211 + $0x138] sm:$0xff] %v1324
        %1389 = vst [vmem:[%s211 + $0x140] sm:$0xff] %v1325
        %1390 = vst [vmem:[%s211 + $0x148] sm:$0xff] %v1326
        %1391 = vst [vmem:[%s211 + $0x150] sm:$0xff] %v1327
        %1392 = vst [vmem:[%s211 + $0x158] sm:$0xff] %v1328
        %1393 = vst [vmem:[%s211 + $0x160] sm:$0xff] %v1329
        %1394 = vst [vmem:[%s211 + $0x168] sm:$0xff] %v1330
        %1395 = vst [vmem:[%s211 + $0x170] sm:$0xff] %v1331
        %1396 = vst [vmem:[%s211 + $0x178] sm:$0xff] %v1332
        %1397 = vst [vmem:[%s211 + $0x180] sm:$0xff] %v1333
        %1398 = vst [vmem:[%s211 + $0x188] sm:$0xff] %v1334
        %1399 = vst [vmem:[%s211 + $0x190] sm:$0xff] %v1335
        %1400 = vst [vmem:[%s211 + $0x198] sm:$0xff] %v1336
        %1401 = vst [vmem:[%s211 + $0x1a0] sm:$0xff] %v1337
        %1402 = vst [vmem:[%s211 + $0x1a8] sm:$0xff] %v1338
        %1403 = vst [vmem:[%s211 + $0x1b0] sm:$0xff] %v1339
        %1404 = vst [vmem:[%s211 + $0x1b8] sm:$0xff] %v1340
        %1405 = vst [vmem:[%s211 + $0x1c0] sm:$0xff] %v1341
        %1406 = vst [vmem:[%s211 + $0x1c8] sm:$0xff] %v1342
        %1407 = vst [vmem:[%s211 + $0x1d0] sm:$0xff] %v1343
        %1408 = vst [vmem:[%s211 + $0x1d8] sm:$0xff] %v1344
        %1409 = vst [vmem:[%s211 + $0x1e0] sm:$0xff] %v1345
        %1410 = vst [vmem:[%s211 + $0x1e8] sm:$0xff] %v1346
        %1411 = vst [vmem:[%s211 + $0x1f0] sm:$0xff] %v1347
        %1412 = vst [vmem:[%s211 + $0x1f8] sm:$0xff] %v1348
      $region48: #{main_net_forward.3} parent=35 // pred_fallthru
        _
      %s1413 = smul.u32 64, %s20
      %p1414 = scmp.lt.s32.totalorder %s1413, 63
      %s1415 = scalar_select %p1414, %s1413, 63
      %s1416 = smul.addr %s1415, 8
      %s1417 = scalar_lea.vmem %s4, %s1416
      // Predicated region
      $region49: #{main_net_forward.3} parent=35 // pred_check
        %p1418 = pneg %p134
      $region50: #{main_net_forward.3} parent=35 // pred_check_branch
        %1420 = sbr.rel (%p1418) target = $region52
      $region51: #{main_net_forward.3} parent=35 // pred_region
        %s1421 = smul.u32 64, %s20
      $region52: #{main_net_forward.3} parent=35 // pred_fallthru
        _
      // Predicated region
      $region53: #{main_net_forward.3} parent=35 // pred_check
        %p1422 = pneg %p134
      $region54: #{main_net_forward.3} parent=35 // pred_check_branch
        %1424 = sbr.rel (%p1422) target = $region56
      $region55: #{main_net_forward.3} parent=35 // pred_region
        %s1425 = smul.u32 64, %s20
        %p1426 = scmp.lt.s32.totalorder %s1425, 63
        %s1427 = scalar_select %p1426, %s1425, 63
        %s1428 = smul.addr %s1427, 8
        %s1429 = scalar_lea.vmem %s4, %s1428
      $region56: #{main_net_forward.3} parent=35 // pred_fallthru
        _
    $region36: #{main_net_forward.3} parent=5 // pred_fallthru
      _
    %p1430 = scmp.le.s32.totalorder 2, %s10
    // Predicated region
    $region57: #{main_net_forward.3} parent=5 // pred_check
      %p1431 = pneg %p1430
    $region58: #{main_net_forward.3} parent=5 // pred_check_branch
      %1433 = sbr.rel (%p1431) target = $region60
    $region59: #{main_net_forward.3} parent=5 // pred_region
      %s1434 = ssub.s32 %s10, 2
    $region60: #{main_net_forward.3} parent=5 // pred_fallthru
      _
  $region6: #{main_net_forward.3} parent=0 // loop_footer
    %s14 = sadd.s32 1, %s10
  $region7: #{main_net_forward.3} parent=0 // loop_footer_branch
    %9 = sbr.rel target = $region3
  $region8: #{main_net_forward.3} parent=0 // loop_exit
    _

// kernel: main_net_forward.5
$region0: #{main_net_forward.5}
  #allocation0 [shape = 'u32[]', space=smem, size = 0x4, offset = 0x4, fixed_abs, tag = 'smem constant byte address 0x4 - core index']
  #allocation1 [shape = 'u32[144,128]{1,0:T(1,128)}', space=vmem, size = 0x12000, scoped, tag = 'internal scratch']
  #allocation2 [shape = 'f32[2,128]{1,0:T(2,128)}', space=vmem, size = 0x400, scoped, tag = 'scratch operand']
  %s0 = inlined_call_operand.vmem [shape: bf16[128,36], index: 0, kind: input, shape index: {}]
  %s1 = inlined_call_operand.vmem [shape: bf16[36,128], index: 1, kind: input, shape index: {}]
  %s2 = inlined_call_operand.vmem [shape: f32[1,128], index: 2, kind: input, shape index: {}]
  %s3 = inlined_call_operand.vmem [shape: f32[1,128], index: 3, kind: input, shape index: {}]
  %s4 = inlined_call_operand.vmem [shape: f32[128,128], index: 4, kind: output, shape index: {}]
  %s5 = sld [smem:[#allocation0]]
  $region61: #{main_net_forward.5} parent=0
    _
  %s7 = ssub.s32 1, %s5
  %s8 = scalar_select 0, %s7, %s5
  loop: start=0, step=1, limit=4
  $region2: #{main_net_forward.5} parent=0 // loop_pre_header
    _
  $region3: #{main_net_forward.5} parent=0 // loop_header
    %s10 = sphi 0, %s14
    %p11 = scmp.ge.s32.totalorder %s10, 4
    %s17 = sphi 0, %s29
    %s18 = sphi 0, %s25
    %s19 = sphi 0, %s17
    %s20 = sphi 0, %s18
    %s21 = sphi 0, %s19
    %s22 = sphi 0, %s20
    %s32 = sphi 0, %s34
    %s35 = sphi 0, %s32
    %s36 = sphi 0, %s35
    %s52 = sphi 0, %s36
    %s56 = sphi 0, %s56
    %s58 = sphi 0, %s56
    %s59 = sphi 0, %s58
    %s73 = sphi 0, %s59
    %s77 = sphi 0, %s77
    %s79 = sphi 0, %s77
    %s80 = sphi 0, %s79
    %s94 = sphi 0, %s80
    %s98 = sphi 0, %s98
    %s100 = sphi 0, %s98
    %s101 = sphi 0, %s100
    %s115 = sphi 0, %s101
    %s121 = sphi 0, %s123
    %s124 = sphi 0, %s121
    %s125 = sphi 0, %s124
    %s141 = sphi 0, %s125
  $region4: #{main_net_forward.5} parent=0 // loop_header_branch
    %13 = sbr.rel (%p11) target = $region8
  $region5: #{main_net_forward.5} parent=0 // loop_body
    %s15 = ssub.s32 %s10, 1
    %s16 = ssub.s32 %s10, 2
    %s23 = sadd.s32 1, %s18
    %p24 = scmp.ge.s32.totalorder %s23, 1
    %s25 = scalar_select %p24, 0, %s23
    %s26 = sadd.s32 1, %s17
    %s27 = scalar_select %p24, %s26, %s17
    %p28 = scmp.ge.s32.totalorder %s27, 2
    %s29 = scalar_select %p28, 0, %s27
    %s30 = ssub.s32 %s18, %s25
    %p31 = scmp.eq.s32.totalorder %s30, 0
    %s33 = sadd.s32 %s32, 1
    %s34 = scalar_select %p31, %s32, %s33
    %p37 = pneg %p31
    %p38 = scmp.eq.s32.totalorder %s10, 1
    %p39 = por %p37, %p38
    %p40 = scmp.ne.s32.totalorder %s32, %s35
    %p41 = scmp.eq.s32.totalorder %s10, 0
    %p42 = por %p40, %p41
    %p43 = scmp.ne.s32.totalorder %s32, %s35
    %p44 = scmp.eq.s32.totalorder %s15, 1
    %p45 = por %p43, %p44
    %p46 = scmp.ne.s32.totalorder %s35, %s36
    %p47 = scmp.eq.s32.totalorder %s15, 0
    %p48 = por %p46, %p47
    %p49 = scmp.ne.s32.totalorder %s35, %s36
    %p50 = scmp.eq.s32.totalorder %s16, 1
    %p51 = por %p49, %p50
    %p53 = scmp.ne.s32.totalorder %s36, %s52
    %p54 = scmp.eq.s32.totalorder %s16, 0
    %p55 = por %p53, %p54
    %s57 = sadd.s32 %s56, 1
    %p60 = scmp.eq.s32.totalorder %s10, 1
    %p61 = scmp.ne.s32.totalorder %s56, %s58
    %p62 = scmp.eq.s32.totalorder %s10, 0
    %p63 = por %p61, %p62
    %p64 = scmp.ne.s32.totalorder %s56, %s58
    %p65 = scmp.eq.s32.totalorder %s15, 1
    %p66 = por %p64, %p65
    %p67 = scmp.ne.s32.totalorder %s58, %s59
    %p68 = scmp.eq.s32.totalorder %s15, 0
    %p69 = por %p67, %p68
    %p70 = scmp.ne.s32.totalorder %s58, %s59
    %p71 = scmp.eq.s32.totalorder %s16, 1
    %p72 = por %p70, %p71
    %p74 = scmp.ne.s32.totalorder %s59, %s73
    %p75 = scmp.eq.s32.totalorder %s16, 0
    %p76 = por %p74, %p75
    %s78 = sadd.s32 %s77, 1
    %p81 = scmp.eq.s32.totalorder %s10, 1
    %p82 = scmp.ne.s32.totalorder %s77, %s79
    %p83 = scmp.eq.s32.totalorder %s10, 0
    %p84 = por %p82, %p83
    %p85 = scmp.ne.s32.totalorder %s77, %s79
    %p86 = scmp.eq.s32.totalorder %s15, 1
    %p87 = por %p85, %p86
    %p88 = scmp.ne.s32.totalorder %s79, %s80
    %p89 = scmp.eq.s32.totalorder %s15, 0
    %p90 = por %p88, %p89
    %p91 = scmp.ne.s32.totalorder %s79, %s80
    %p92 = scmp.eq.s32.totalorder %s16, 1
    %p93 = por %p91, %p92
    %p95 = scmp.ne.s32.totalorder %s80, %s94
    %p96 = scmp.eq.s32.totalorder %s16, 0
    %p97 = por %p95, %p96
    %s99 = sadd.s32 %s98, 1
    %p102 = scmp.eq.s32.totalorder %s10, 1
    %p103 = scmp.ne.s32.totalorder %s98, %s100
    %p104 = scmp.eq.s32.totalorder %s10, 0
    %p105 = por %p103, %p104
    %p106 = scmp.ne.s32.totalorder %s98, %s100
    %p107 = scmp.eq.s32.totalorder %s15, 1
    %p108 = por %p106, %p107
    %p109 = scmp.ne.s32.totalorder %s100, %s101
    %p110 = scmp.eq.s32.totalorder %s15, 0
    %p111 = por %p109, %p110
    %p112 = scmp.ne.s32.totalorder %s100, %s101
    %p113 = scmp.eq.s32.totalorder %s16, 1
    %p114 = por %p112, %p113
    %p116 = scmp.ne.s32.totalorder %s101, %s115
    %p117 = scmp.eq.s32.totalorder %s16, 0
    %p118 = por %p116, %p117
    %s119 = ssub.s32 %s18, %s25
    %p120 = scmp.eq.s32.totalorder %s119, 0
    %s122 = sadd.s32 %s121, 1
    %s123 = scalar_select %p120, %s121, %s122
    %p126 = pneg %p120
    %p127 = scmp.eq.s32.totalorder %s10, 1
    %p128 = por %p126, %p127
    %p129 = scmp.ne.s32.totalorder %s121, %s124
    %p130 = scmp.eq.s32.totalorder %s10, 0
    %p131 = por %p129, %p130
    %p132 = scmp.ne.s32.totalorder %s121, %s124
    %p133 = scmp.eq.s32.totalorder %s15, 1
    %p134 = por %p132, %p133
    %p135 = scmp.ne.s32.totalorder %s124, %s125
    %p136 = scmp.eq.s32.totalorder %s15, 0
    %p137 = por %p135, %p136
    %p138 = scmp.ne.s32.totalorder %s124, %s125
    %p139 = scmp.eq.s32.totalorder %s16, 1
    %p140 = por %p138, %p139
    %p142 = scmp.ne.s32.totalorder %s125, %s141
    %p143 = scmp.eq.s32.totalorder %s16, 0
    %p144 = por %p142, %p143
    %p145 = scmp.le.s32.totalorder 1, %s10
    %p146 = scmp.lt.s32.totalorder %s10, 3
    %p147 = pnand %p145, %p146
    %p148 = pneg %p147
    // Predicated region
    $region9: #{main_net_forward.5} parent=5 // pred_check
      _
    $region10: #{main_net_forward.5} parent=5 // pred_check_branch
      %150 = sbr.rel (%p147) target = $region12
    $region11: #{main_net_forward.5} parent=5 // pred_region
      %s151 = ssub.s32 %s10, 1
      // Predicated region
      $region13: #{main_net_forward.5} parent=11 // pred_check
        %p152 = pneg %p48
      $region14: #{main_net_forward.5} parent=11 // pred_check_branch
        %154 = sbr.rel (%p152) target = $region16
      $region15: #{main_net_forward.5} parent=11 // pred_region
        %s155 = smul.u32 16, %s20
        %p156 = scmp.lt.s32.totalorder %s155, 15
        %s157 = scalar_select %p156, %s155, 15
        %s158 = smul.addr %s157, 4
        %s159 = scalar_lea.vmem %s0, %s158
        %s160 = smul.u32 16, %s20
      $region16: #{main_net_forward.5} parent=11 // pred_fallthru
        _
      // Predicated region
      $region17: #{main_net_forward.5} parent=11 // pred_check
        %p161 = pneg %p69
      $region18: #{main_net_forward.5} parent=11 // pred_check_branch
        %163 = sbr.rel (%p161) target = $region20
      $region19: #{main_net_forward.5} parent=11 // pred_region
        _
      $region20: #{main_net_forward.5} parent=11 // pred_fallthru
        _
      // Predicated region
      $region21: #{main_net_forward.5} parent=11 // pred_check
        %p164 = pneg %p90
      $region22: #{main_net_forward.5} parent=11 // pred_check_branch
        %166 = sbr.rel (%p164) target = $region24
      $region23: #{main_net_forward.5} parent=11 // pred_region
        _
      $region24: #{main_net_forward.5} parent=11 // pred_fallthru
        _
      // Predicated region
      $region25: #{main_net_forward.5} parent=11 // pred_check
        %p167 = pneg %p111
      $region26: #{main_net_forward.5} parent=11 // pred_check_branch
        %169 = sbr.rel (%p167) target = $region28
      $region27: #{main_net_forward.5} parent=11 // pred_region
        _
      $region28: #{main_net_forward.5} parent=11 // pred_fallthru
        _
    $region12: #{main_net_forward.5} parent=5 // pred_fallthru
      _
    %p170 = scmp.lt.s32.totalorder %s10, 2
    // Predicated region
    $region29: #{main_net_forward.5} parent=5 // pred_check
      %p171 = pneg %p170
    $region30: #{main_net_forward.5} parent=5 // pred_check_branch
      %173 = sbr.rel (%p171) target = $region32
    $region31: #{main_net_forward.5} parent=5 // pred_region
      _
    $region32: #{main_net_forward.5} parent=5 // pred_fallthru
      _
    %p174 = scmp.le.s32.totalorder 1, %s10
    %p175 = scmp.lt.s32.totalorder %s10, 3
    %p176 = pnand %p174, %p175
    %p177 = pneg %p176
    // Predicated region
    $region33: #{main_net_forward.5} parent=5 // pred_check
      _
    $region34: #{main_net_forward.5} parent=5 // pred_check_branch
      %179 = sbr.rel (%p176) target = $region36
    $region35: #{main_net_forward.5} parent=5 // pred_region
      %s180 = ssub.s32 %s10, 1
      %s181 = smul.u32 16, %s20
      %p182 = scmp.lt.s32.totalorder %s181, 15
      %s183 = scalar_select %p182, %s181, 15
      %s184 = smul.addr %s183, 4
      %s185 = scalar_lea.vmem %s0, %s184
      %p186 = pneg %p48
      %p187 = pneg %p45
      %p188 = pneg %p69
      %p189 = pneg %p66
      %p190 = pneg %p90
      %p191 = pneg %p87
      %p192 = pneg %p111
      %p193 = pneg %p108
      %p194 = pneg %p137
      %p195 = pneg %p134
      %s196 = smul.u32 16, %s20
      %p197 = scmp.lt.s32.totalorder %s196, 15
      %s198 = scalar_select %p197, %s196, 15
      %s199 = smul.addr %s198, 8
      %s200 = scalar_lea.vmem %s4, %s199
      %s201 = smul.u32 16, %s20
      %p202 = scmp.lt.s32.totalorder %s201, 15
      %s203 = scalar_select %p202, %s201, 15
      %s204 = smul.addr %s203, 4
      %s205 = scalar_lea.vmem %s0, %s204
      %s206 = smul.u32 16, %s20
      %s207 = smul.u32 16, %s20
      %p208 = scmp.lt.s32.totalorder %s207, 15
      %s209 = scalar_select %p208, %s207, 15
      %s210 = smul.addr %s209, 8
      %s211 = scalar_lea.vmem %s4, %s210
      %s212 = smul.u32 16, %s20
      %v214 = vld [vmem:[%s205] sm:$0xf]
      %v215 = vld [vmem:[%s205 + $0x4] sm:$0xf]
      %v216 = vld [vmem:[%s205 + $0x8] sm:$0xf]
      %v217 = vld [vmem:[%s205 + $0xc] sm:$0xf]
      %v218 = vld [vmem:[%s205 + $0x10] sm:$0xf]
      %v219 = vld [vmem:[%s205 + $0x14] sm:$0xf]
      %v220 = vld [vmem:[%s205 + $0x18] sm:$0xf]
      %v221 = vld [vmem:[%s205 + $0x1c] sm:$0xf]
      %v222 = vld [vmem:[%s205 + $0x20] sm:$0xf]
      %v223 = vld [vmem:[%s205 + $0x24] sm:$0xf]
      %v224 = vld [vmem:[%s205 + $0x28] sm:$0xf]
      %v225 = vld [vmem:[%s205 + $0x2c] sm:$0xf]
      %v226 = vld [vmem:[%s205 + $0x30] sm:$0xf]
      %v227 = vld [vmem:[%s205 + $0x34] sm:$0xf]
      %v228 = vld [vmem:[%s205 + $0x38] sm:$0xf]
      %v229 = vld [vmem:[%s205 + $0x3c] sm:$0xf]
      %v230 = vld [vmem:[%s1] sm:$0xf]
      %v231 = vld [vmem:[%s1 + $0x4] sm:$0xf]
      %v232 = vld [vmem:[%s1 + $0x8] sm:$0xf]
      %v233 = vld [vmem:[%s1 + $0xc] sm:$0xf]
      %v234 = vld [vmem:[%s1 + $0x10] sm:$0x3]
      %v251 = vunpack.c.l.b16 %v214
      %v252 = vunpack.c.l.b16 %v215
      %v253 = vunpack.c.l.b16 %v216
      %v254 = vunpack.c.l.b16 %v217
      %v255 = vunpack.c.l.b16 %v218
      %v256 = vunpack.c.l.b16 %v219
      %v257 = vunpack.c.l.b16 %v220
      %v258 = vunpack.c.l.b16 %v221
      %v259 = vunpack.c.l.b16 %v222
      %v260 = vunpack.c.l.b16 %v223
      %v261 = vunpack.c.l.b16 %v224
      %v262 = vunpack.c.l.b16 %v225
      %v263 = vunpack.c.l.b16 %v226
      %v264 = vunpack.c.l.b16 %v227
      %v265 = vunpack.c.l.b16 %v228
      %v266 = vunpack.c.l.b16 %v229
      %v267 = vpack.c.b16 %v252, %v251
      %v268 = vpack.c.b16 %v254, %v253
      %v269 = vpack.c.b16 %v256, %v255
      %v270 = vpack.c.b16 %v258, %v257
      %v271 = vpack.c.b16 %v260, %v259
      %v272 = vpack.c.b16 %v262, %v261
      %v273 = vpack.c.b16 %v264, %v263
      %v274 = vpack.c.b16 %v266, %v265
      %v280 = vunpack.c.l.b16 %v230
      %v281 = vunpack.c.l.b16 %v231
      %v282 = vunpack.c.l.b16 %v232
      %v283 = vunpack.c.l.b16 %v233
      %v284 = vunpack.c.l.b16 %v234
      %v285 = vpack.c.b16 %v281, %v280
      %v286 = vpack.c.b16 %v283, %v282
      %v287 = vpack.c.b16 %v284, %v284
      %vm290 = vcmask 293888
      %v292 = vsel %vm290, %v267, 0
      %v295 = vsel %vm290, %v268, 0
      %v298 = vsel %vm290, %v269, 0
      %v301 = vsel %vm290, %v270, 0
      %v304 = vsel %vm290, %v271, 0
      %v307 = vsel %vm290, %v272, 0
      %v310 = vsel %vm290, %v273, 0
      %v313 = vsel %vm290, %v274, 0
      %vm315 = vcmask 1041408
      %v317 = vsel %vm315, %v287, 0
      %319 = vmatprep.subr.bf16.mxu0 0
      %320 = vmatpush1.bf16.msra.mxu0 %v285
      %321 = vmatprep.subr.bf16.mxu0 0
      %322 = vmatpush1.bf16.msra.mxu0 %v286
      %323 = vmatprep.subr.bf16.mxu0 0
      %324 = vmatpush1.bf16.msra.mxu0 %v317
      %325 = vmatprep.subr.bf16.mxu0 0
      %326 = vmatpush1.bf16.msra.mxu0 0
      %327 = vmatprep.subr.bf16.mxu0 0
      %328 = vmatpush1.bf16.msra.mxu0 0
      %329 = vmatprep.subr.bf16.mxu0 0
      %330 = vmatpush1.bf16.msra.mxu0 0
      %331 = vmatprep.subr.bf16.mxu0 0
      %332 = vmatpush1.bf16.msra.mxu0 0
      %333 = vmatprep.subr.bf16.mxu0 0
      %334 = vmatpush1.bf16.msra.mxu0 0
      %335 = vmatprep.subr.bf16.mxu0 0
      %336 = vmatpush1.bf16.msra.mxu0 0
      %337 = vmatprep.subr.bf16.mxu0 0
      %338 = vmatpush1.bf16.msra.mxu0 0
      %339 = vmatprep.subr.bf16.mxu0 0
      %340 = vmatpush1.bf16.msra.mxu0 0
      %341 = vmatprep.subr.bf16.mxu0 0
      %342 = vmatpush1.bf16.msra.mxu0 0
      %343 = vmatprep.subr.bf16.mxu0 0
      %344 = vmatpush1.bf16.msra.mxu0 0
      %345 = vmatprep.subr.bf16.mxu0 0
      %346 = vmatpush1.bf16.msra.mxu0 0
      %347 = vmatprep.subr.bf16.mxu0 0
      %348 = vmatpush1.bf16.msra.mxu0 0
      %349 = vmatprep.subr.bf16.mxu0 0
      %350 = vmatpush1.bf16.msra.mxu0 0
      %351 = vmatprep.mubr.bf16.mxu0 0
      %352 = vmatmul.mubr.bf16.gmra.mrb[0].mxu0 %v292
      %v353 = vpop.f32.mrb[0].mxu0
      %v354 = vadd.f32 0.0, %v353
      %v355 = vpop.f32.mrb[0].mxu0
      %v356 = vpop.f32.mrb[0].mxu0
      %v357 = vadd.f32 0.0, %v356
      %v358 = vpop.f32.mrb[0].mxu0
      %359 = vmatprep.mubr.bf16.mxu0 0
      %360 = vmatmul.mubr.bf16.gmra.mrb[0].mxu0 %v295
      %v361 = vpop.f32.mrb[0].mxu0
      %v362 = vadd.f32 0.0, %v361
      %v363 = vpop.f32.mrb[0].mxu0
      %v364 = vpop.f32.mrb[0].mxu0
      %v365 = vadd.f32 0.0, %v364
      %v366 = vpop.f32.mrb[0].mxu0
      %367 = vmatprep.mubr.bf16.mxu0 0
      %368 = vmatmul.mubr.bf16.gmra.mrb[0].mxu0 %v298
      %v369 = vpop.f32.mrb[0].mxu0
      %v370 = vadd.f32 0.0, %v369
      %v371 = vpop.f32.mrb[0].mxu0
      %v372 = vpop.f32.mrb[0].mxu0
      %v373 = vadd.f32 0.0, %v372
      %v374 = vpop.f32.mrb[0].mxu0
      %375 = vmatprep.mubr.bf16.mxu0 0
      %376 = vmatmul.mubr.bf16.gmra.mrb[0].mxu0 %v301
      %v377 = vpop.f32.mrb[0].mxu0
      %v378 = vadd.f32 0.0, %v377
      %v379 = vpop.f32.mrb[0].mxu0
      %v380 = vpop.f32.mrb[0].mxu0
      %v381 = vadd.f32 0.0, %v380
      %v382 = vpop.f32.mrb[0].mxu0
      %383 = vmatprep.mubr.bf16.mxu0 0
      %384 = vmatmul.mubr.bf16.gmra.mrb[0].mxu0 %v304
      %v385 = vpop.f32.mrb[0].mxu0
      %v386 = vadd.f32 0.0, %v385
      %v387 = vpop.f32.mrb[0].mxu0
      %v388 = vpop.f32.mrb[0].mxu0
      %v389 = vadd.f32 0.0, %v388
      %v390 = vpop.f32.mrb[0].mxu0
      %391 = vmatprep.mubr.bf16.mxu0 0
      %392 = vmatmul.mubr.bf16.gmra.mrb[0].mxu0 %v307
      %v393 = vpop.f32.mrb[0].mxu0
      %v394 = vadd.f32 0.0, %v393
      %v395 = vpop.f32.mrb[0].mxu0
      %v396 = vpop.f32.mrb[0].mxu0
      %v397 = vadd.f32 0.0, %v396
      %v398 = vpop.f32.mrb[0].mxu0
      %399 = vmatprep.mubr.bf16.mxu0 0
      %400 = vmatmul.mubr.bf16.gmra.mrb[0].mxu0 %v310
      %v401 = vpop.f32.mrb[0].mxu0
      %v402 = vadd.f32 0.0, %v401
      %v403 = vpop.f32.mrb[0].mxu0
      %v404 = vpop.f32.mrb[0].mxu0
      %v405 = vadd.f32 0.0, %v404
      %v406 = vpop.f32.mrb[0].mxu0
      %407 = vmatprep.mubr.bf16.mxu0 0
      %408 = vmatmul.mubr.bf16.gmra.mrb[0].mxu0 %v313
      %v409 = vpop.f32.mrb[0].mxu0
      %v410 = vadd.f32 0.0, %v409
      %v411 = vpop.f32.mrb[0].mxu0
      %v412 = vpop.f32.mrb[0].mxu0
      %v413 = vadd.f32 0.0, %v412
      %v414 = vpop.f32.mrb[0].mxu0
      %415 = vdwg.mxu0
      %p416 = scmp.eq.s32.totalorder %s19, 0
      %p417 = scmp.eq.s32.totalorder %s20, 0
      %p418 = pnand %p416, %p417
      %p419 = pneg %p418
      // Predicated region
      $region37: #{main_net_forward.5} parent=35 // pred_check
        _
      $region38: #{main_net_forward.5} parent=35 // pred_check_branch
        %421 = sbr.rel (%p418) target = $region40
      $region39: #{main_net_forward.5} parent=35 // pred_region
        %422 = vst [vmem:[#allocation2] sm:$0x3] 0.0
      $region40: #{main_net_forward.5} parent=35 // pred_fallthru
        _
      // Predicated region
      $region41: #{main_net_forward.5} parent=35 // pred_check
        %p423 = pneg %p416
      $region42: #{main_net_forward.5} parent=35 // pred_check_branch
        %425 = sbr.rel (%p423) target = $region44
      $region43: #{main_net_forward.5} parent=35 // pred_region
        %v426 = vld [vmem:[#allocation2] sm:$0x1]
        %v427 = vadd.f32 %v354, %v357
        %v428 = vadd.f32 %v427, %v362
        %v429 = vadd.f32 %v428, %v365
        %v430 = vadd.f32 %v429, %v370
        %v431 = vadd.f32 %v430, %v373
        %v432 = vadd.f32 %v431, %v378
        %v433 = vadd.f32 %v432, %v381
        %v434 = vadd.f32 %v433, %v386
        %v435 = vadd.f32 %v434, %v389
        %v436 = vadd.f32 %v435, %v394
        %v437 = vadd.f32 %v436, %v397
        %v438 = vadd.f32 %v437, %v402
        %v439 = vadd.f32 %v438, %v405
        %v440 = vadd.f32 %v439, %v410
        %v441 = vadd.f32 %v440, %v413
        %v442 = vrot.slane %v441, 4
        %v443 = vadd.f32 %v441, %v442
        %v444 = vrot.slane %v443, 2
        %v445 = vadd.f32 %v443, %v444
        %v446 = vrot.slane %v445, 1
        %v447 = vadd.f32 %v445, %v446
        %v448 = vadd.f32 %v426, %v447
        %449 = vst [vmem:[#allocation2] sm:$0x1] %v448
        %v450 = vld [vmem:[#allocation2 + $0x1] sm:$0x1]
        %v451 = vmul.f32 %v354, %v354
        %v452 = vmul.f32 %v357, %v357
        %v453 = vmul.f32 %v362, %v362
        %v454 = vmul.f32 %v365, %v365
        %v455 = vmul.f32 %v370, %v370
        %v456 = vmul.f32 %v373, %v373
        %v457 = vmul.f32 %v378, %v378
        %v458 = vmul.f32 %v381, %v381
        %v459 = vmul.f32 %v386, %v386
        %v460 = vmul.f32 %v389, %v389
        %v461 = vmul.f32 %v394, %v394
        %v462 = vmul.f32 %v397, %v397
        %v463 = vmul.f32 %v402, %v402
        %v464 = vmul.f32 %v405, %v405
        %v465 = vmul.f32 %v410, %v410
        %v466 = vmul.f32 %v413, %v413
        %v467 = vadd.f32 %v451, %v452
        %v468 = vadd.f32 %v467, %v453
        %v469 = vadd.f32 %v468, %v454
        %v470 = vadd.f32 %v469, %v455
        %v471 = vadd.f32 %v470, %v456
        %v472 = vadd.f32 %v471, %v457
        %v473 = vadd.f32 %v472, %v458
        %v474 = vadd.f32 %v473, %v459
        %v475 = vadd.f32 %v474, %v460
        %v476 = vadd.f32 %v475, %v461
        %v477 = vadd.f32 %v476, %v462
        %v478 = vadd.f32 %v477, %v463
        %v479 = vadd.f32 %v478, %v464
        %v480 = vadd.f32 %v479, %v465
        %v481 = vadd.f32 %v480, %v466
        %v482 = vrot.slane %v481, 4
        %v483 = vadd.f32 %v481, %v482
        %v484 = vrot.slane %v483, 2
        %v485 = vadd.f32 %v483, %v484
        %v486 = vrot.slane %v485, 1
        %v487 = vadd.f32 %v485, %v486
        %v488 = vadd.f32 %v450, %v487
        %489 = vst [vmem:[#allocation2 + $0x1] sm:$0x1] %v488
        %490 = vst [vmem:[%s211] sm:$0xff] %v354
        %491 = vst [vmem:[%s211 + $0x8] sm:$0xff] %v357
        %492 = vst [vmem:[%s211 + $0x10] sm:$0xff] %v362
        %493 = vst [vmem:[%s211 + $0x18] sm:$0xff] %v365
        %494 = vst [vmem:[%s211 + $0x20] sm:$0xff] %v370
        %495 = vst [vmem:[%s211 + $0x28] sm:$0xff] %v373
        %496 = vst [vmem:[%s211 + $0x30] sm:$0xff] %v378
        %497 = vst [vmem:[%s211 + $0x38] sm:$0xff] %v381
        %498 = vst [vmem:[%s211 + $0x40] sm:$0xff] %v386
        %499 = vst [vmem:[%s211 + $0x48] sm:$0xff] %v389
        %500 = vst [vmem:[%s211 + $0x50] sm:$0xff] %v394
        %501 = vst [vmem:[%s211 + $0x58] sm:$0xff] %v397
        %502 = vst [vmem:[%s211 + $0x60] sm:$0xff] %v402
        %503 = vst [vmem:[%s211 + $0x68] sm:$0xff] %v405
        %504 = vst [vmem:[%s211 + $0x70] sm:$0xff] %v410
        %505 = vst [vmem:[%s211 + $0x78] sm:$0xff] %v413
      $region44: #{main_net_forward.5} parent=35 // pred_fallthru
        _
      %p506 = scmp.eq.s32.totalorder %s19, 1
      // Predicated region
      $region45: #{main_net_forward.5} parent=35 // pred_check
        %p507 = pneg %p506
      $region46: #{main_net_forward.5} parent=35 // pred_check_branch
        %509 = sbr.rel (%p507) target = $region48
      $region47: #{main_net_forward.5} parent=35 // pred_region
        %v510 = vld [vmem:[#allocation2] sm:$0x1]
        %v511 = vmul.f32 %v510, 0.0078125
        %v512 = vld [vmem:[#allocation2 + $0x1] sm:$0x1]
        %v513 = vmul.f32 %v512, 0.0078125
        %v514 = vmul.f32 %v511, %v511
        %v515 = vsub.f32 %v513, %v514
        %v516 = vadd.f32 %v515, 1e-05
        %v517 = vrsqrt.pop %v516
        %v518 = vld [vmem:[%s2] sm:$0x1]
        %v519 = vmul.f32 %v517, %v518
        %v520 = vld [vmem:[%s3] sm:$0x1]
        %v521 = vmul.f32 %v511, %v519
        %v522 = vsub.f32 %v520, %v521
        %v523 = vlaneseq
        %v524 = vshrl.u32 %v523, 7
        %v525 = vsub.s32 0, %v524
        %v526 = vrot.slane %v519, %v525
        %v527 = vmul.f32 %v354, %v526
        %v528 = vmul.f32 %v357, %v526
        %v529 = vmul.f32 %v362, %v526
        %v530 = vmul.f32 %v365, %v526
        %v531 = vmul.f32 %v370, %v526
        %v532 = vmul.f32 %v373, %v526
        %v533 = vmul.f32 %v378, %v526
        %v534 = vmul.f32 %v381, %v526
        %v535 = vmul.f32 %v386, %v526
        %v536 = vmul.f32 %v389, %v526
        %v537 = vmul.f32 %v394, %v526
        %v538 = vmul.f32 %v397, %v526
        %v539 = vmul.f32 %v402, %v526
        %v540 = vmul.f32 %v405, %v526
        %v541 = vmul.f32 %v410, %v526
        %v542 = vmul.f32 %v413, %v526
        %v544 = vlaneseq
        %v545 = vshrl.u32 %v544, 7
        %v546 = vsub.s32 0, %v545
        %v547 = vrot.slane %v522, %v546
        %v549 = vadd.f32 %v527, %v547
        %v550 = vadd.f32 %v528, %v547
        %v551 = vadd.f32 %v529, %v547
        %v552 = vadd.f32 %v530, %v547
        %v553 = vadd.f32 %v531, %v547
        %v554 = vadd.f32 %v532, %v547
        %v555 = vadd.f32 %v533, %v547
        %v556 = vadd.f32 %v534, %v547
        %v557 = vadd.f32 %v535, %v547
        %v558 = vadd.f32 %v536, %v547
        %v559 = vadd.f32 %v537, %v547
        %v560 = vadd.f32 %v538, %v547
        %v561 = vadd.f32 %v539, %v547
        %v562 = vadd.f32 %v540, %v547
        %v563 = vadd.f32 %v541, %v547
        %v564 = vadd.f32 %v542, %v547
        %v565 = vmax.f32 %v549, 0.0
        %v566 = vmax.f32 %v550, 0.0
        %v567 = vmax.f32 %v551, 0.0
        %v568 = vmax.f32 %v552, 0.0
        %v569 = vmax.f32 %v553, 0.0
        %v570 = vmax.f32 %v554, 0.0
        %v571 = vmax.f32 %v555, 0.0
        %v572 = vmax.f32 %v556, 0.0
        %v573 = vmax.f32 %v557, 0.0
        %v574 = vmax.f32 %v558, 0.0
        %v575 = vmax.f32 %v559, 0.0
        %v576 = vmax.f32 %v560, 0.0
        %v577 = vmax.f32 %v561, 0.0
        %v578 = vmax.f32 %v562, 0.0
        %v579 = vmax.f32 %v563, 0.0
        %v580 = vmax.f32 %v564, 0.0
        %581 = vst [vmem:[%s211] sm:$0xff] %v565
        %582 = vst [vmem:[%s211 + $0x8] sm:$0xff] %v566
        %583 = vst [vmem:[%s211 + $0x10] sm:$0xff] %v567
        %584 = vst [vmem:[%s211 + $0x18] sm:$0xff] %v568
        %585 = vst [vmem:[%s211 + $0x20] sm:$0xff] %v569
        %586 = vst [vmem:[%s211 + $0x28] sm:$0xff] %v570
        %587 = vst [vmem:[%s211 + $0x30] sm:$0xff] %v571
        %588 = vst [vmem:[%s211 + $0x38] sm:$0xff] %v572
        %589 = vst [vmem:[%s211 + $0x40] sm:$0xff] %v573
        %590 = vst [vmem:[%s211 + $0x48] sm:$0xff] %v574
        %591 = vst [vmem:[%s211 + $0x50] sm:$0xff] %v575
        %592 = vst [vmem:[%s211 + $0x58] sm:$0xff] %v576
        %593 = vst [vmem:[%s211 + $0x60] sm:$0xff] %v577
        %594 = vst [vmem:[%s211 + $0x68] sm:$0xff] %v578
        %595 = vst [vmem:[%s211 + $0x70] sm:$0xff] %v579
        %596 = vst [vmem:[%s211 + $0x78] sm:$0xff] %v580
      $region48: #{main_net_forward.5} parent=35 // pred_fallthru
        _
      %s597 = smul.u32 16, %s20
      %p598 = scmp.lt.s32.totalorder %s597, 15
      %s599 = scalar_select %p598, %s597, 15
      %s600 = smul.addr %s599, 8
      %s601 = scalar_lea.vmem %s4, %s600
      // Predicated region
      $region49: #{main_net_forward.5} parent=35 // pred_check
        %p602 = pneg %p134
      $region50: #{main_net_forward.5} parent=35 // pred_check_branch
        %604 = sbr.rel (%p602) target = $region52
      $region51: #{main_net_forward.5} parent=35 // pred_region
        %s605 = smul.u32 16, %s20
      $region52: #{main_net_forward.5} parent=35 // pred_fallthru
        _
      // Predicated region
      $region53: #{main_net_forward.5} parent=35 // pred_check
        %p606 = pneg %p134
      $region54: #{main_net_forward.5} parent=35 // pred_check_branch
        %608 = sbr.rel (%p606) target = $region56
      $region55: #{main_net_forward.5} parent=35 // pred_region
        %s609 = smul.u32 16, %s20
        %p610 = scmp.lt.s32.totalorder %s609, 15
        %s611 = scalar_select %p610, %s609, 15
        %s612 = smul.addr %s611, 8
        %s613 = scalar_lea.vmem %s4, %s612
      $region56: #{main_net_forward.5} parent=35 // pred_fallthru
        _
    $region36: #{main_net_forward.5} parent=5 // pred_fallthru
      _
    %p614 = scmp.le.s32.totalorder 2, %s10
    // Predicated region
    $region57: #{main_net_forward.5} parent=5 // pred_check
      %p615 = pneg %p614
    $region58: #{main_net_forward.5} parent=5 // pred_check_branch
      %617 = sbr.rel (%p615) target = $region60
    $region59: #{main_net_forward.5} parent=5 // pred_region
      %s618 = ssub.s32 %s10, 2
    $region60: #{main_net_forward.5} parent=5 // pred_fallthru
      _
  $region6: #{main_net_forward.5} parent=0 // loop_footer
    %s14 = sadd.s32 1, %s10
  $region7: #{main_net_forward.5} parent=0 // loop_footer_branch
    %9 = sbr.rel target = $region3
  $region8: #{main_net_forward.5} parent=0 // loop_exit
    _

// kernel: main_net_forward.4
$region0: #{main_net_forward.4}
  #allocation0 [shape = 'u32[]', space=smem, size = 0x4, offset = 0x4, fixed_abs, tag = 'smem constant byte address 0x4 - core index']
  #allocation1 [shape = 'u32[144,128]{1,0:T(1,128)}', space=vmem, size = 0x12000, scoped, tag = 'internal scratch']
  #allocation2 [shape = 'f32[2,128]{1,0:T(2,128)}', space=vmem, size = 0x400, scoped, tag = 'scratch operand']
  %s0 = inlined_call_operand.vmem [shape: bf16[512,72], index: 0, kind: input, shape index: {}]
  %s1 = inlined_call_operand.vmem [shape: bf16[72,128], index: 1, kind: input, shape index: {}]
  %s2 = inlined_call_operand.vmem [shape: f32[1,128], index: 2, kind: input, shape index: {}]
  %s3 = inlined_call_operand.vmem [shape: f32[1,128], index: 3, kind: input, shape index: {}]
  %s4 = inlined_call_operand.vmem [shape: f32[512,128], index: 4, kind: output, shape index: {}]
  %s5 = sld [smem:[#allocation0]]
  $region61: #{main_net_forward.4} parent=0
    _
  %s7 = ssub.s32 1, %s5
  %s8 = scalar_select 0, %s7, %s5
  loop: start=0, step=1, limit=4
  $region2: #{main_net_forward.4} parent=0 // loop_pre_header
    _
  $region3: #{main_net_forward.4} parent=0 // loop_header
    %s10 = sphi 0, %s14
    %p11 = scmp.ge.s32.totalorder %s10, 4
    %s17 = sphi 0, %s29
    %s18 = sphi 0, %s25
    %s19 = sphi 0, %s17
    %s20 = sphi 0, %s18
    %s21 = sphi 0, %s19
    %s22 = sphi 0, %s20
    %s32 = sphi 0, %s34
    %s35 = sphi 0, %s32
    %s36 = sphi 0, %s35
    %s52 = sphi 0, %s36
    %s56 = sphi 0, %s56
    %s58 = sphi 0, %s56
    %s59 = sphi 0, %s58
    %s73 = sphi 0, %s59
    %s77 = sphi 0, %s77
    %s79 = sphi 0, %s77
    %s80 = sphi 0, %s79
    %s94 = sphi 0, %s80
    %s98 = sphi 0, %s98
    %s100 = sphi 0, %s98
    %s101 = sphi 0, %s100
    %s115 = sphi 0, %s101
    %s121 = sphi 0, %s123
    %s124 = sphi 0, %s121
    %s125 = sphi 0, %s124
    %s141 = sphi 0, %s125
  $region4: #{main_net_forward.4} parent=0 // loop_header_branch
    %13 = sbr.rel (%p11) target = $region8
  $region5: #{main_net_forward.4} parent=0 // loop_body
    %s15 = ssub.s32 %s10, 1
    %s16 = ssub.s32 %s10, 2
    %s23 = sadd.s32 1, %s18
    %p24 = scmp.ge.s32.totalorder %s23, 1
    %s25 = scalar_select %p24, 0, %s23
    %s26 = sadd.s32 1, %s17
    %s27 = scalar_select %p24, %s26, %s17
    %p28 = scmp.ge.s32.totalorder %s27, 2
    %s29 = scalar_select %p28, 0, %s27
    %s30 = ssub.s32 %s18, %s25
    %p31 = scmp.eq.s32.totalorder %s30, 0
    %s33 = sadd.s32 %s32, 1
    %s34 = scalar_select %p31, %s32, %s33
    %p37 = pneg %p31
    %p38 = scmp.eq.s32.totalorder %s10, 1
    %p39 = por %p37, %p38
    %p40 = scmp.ne.s32.totalorder %s32, %s35
    %p41 = scmp.eq.s32.totalorder %s10, 0
    %p42 = por %p40, %p41
    %p43 = scmp.ne.s32.totalorder %s32, %s35
    %p44 = scmp.eq.s32.totalorder %s15, 1
    %p45 = por %p43, %p44
    %p46 = scmp.ne.s32.totalorder %s35, %s36
    %p47 = scmp.eq.s32.totalorder %s15, 0
    %p48 = por %p46, %p47
    %p49 = scmp.ne.s32.totalorder %s35, %s36
    %p50 = scmp.eq.s32.totalorder %s16, 1
    %p51 = por %p49, %p50
    %p53 = scmp.ne.s32.totalorder %s36, %s52
    %p54 = scmp.eq.s32.totalorder %s16, 0
    %p55 = por %p53, %p54
    %s57 = sadd.s32 %s56, 1
    %p60 = scmp.eq.s32.totalorder %s10, 1
    %p61 = scmp.ne.s32.totalorder %s56, %s58
    %p62 = scmp.eq.s32.totalorder %s10, 0
    %p63 = por %p61, %p62
    %p64 = scmp.ne.s32.totalorder %s56, %s58
    %p65 = scmp.eq.s32.totalorder %s15, 1
    %p66 = por %p64, %p65
    %p67 = scmp.ne.s32.totalorder %s58, %s59
    %p68 = scmp.eq.s32.totalorder %s15, 0
    %p69 = por %p67, %p68
    %p70 = scmp.ne.s32.totalorder %s58, %s59
    %p71 = scmp.eq.s32.totalorder %s16, 1
    %p72 = por %p70, %p71
    %p74 = scmp.ne.s32.totalorder %s59, %s73
    %p75 = scmp.eq.s32.totalorder %s16, 0
    %p76 = por %p74, %p75
    %s78 = sadd.s32 %s77, 1
    %p81 = scmp.eq.s32.totalorder %s10, 1
    %p82 = scmp.ne.s32.totalorder %s77, %s79
    %p83 = scmp.eq.s32.totalorder %s10, 0
    %p84 = por %p82, %p83
    %p85 = scmp.ne.s32.totalorder %s77, %s79
    %p86 = scmp.eq.s32.totalorder %s15, 1
    %p87 = por %p85, %p86
    %p88 = scmp.ne.s32.totalorder %s79, %s80
    %p89 = scmp.eq.s32.totalorder %s15, 0
    %p90 = por %p88, %p89
    %p91 = scmp.ne.s32.totalorder %s79, %s80
    %p92 = scmp.eq.s32.totalorder %s16, 1
    %p93 = por %p91, %p92
    %p95 = scmp.ne.s32.totalorder %s80, %s94
    %p96 = scmp.eq.s32.totalorder %s16, 0
    %p97 = por %p95, %p96
    %s99 = sadd.s32 %s98, 1
    %p102 = scmp.eq.s32.totalorder %s10, 1
    %p103 = scmp.ne.s32.totalorder %s98, %s100
    %p104 = scmp.eq.s32.totalorder %s10, 0
    %p105 = por %p103, %p104
    %p106 = scmp.ne.s32.totalorder %s98, %s100
    %p107 = scmp.eq.s32.totalorder %s15, 1
    %p108 = por %p106, %p107
    %p109 = scmp.ne.s32.totalorder %s100, %s101
    %p110 = scmp.eq.s32.totalorder %s15, 0
    %p111 = por %p109, %p110
    %p112 = scmp.ne.s32.totalorder %s100, %s101
    %p113 = scmp.eq.s32.totalorder %s16, 1
    %p114 = por %p112, %p113
    %p116 = scmp.ne.s32.totalorder %s101, %s115
    %p117 = scmp.eq.s32.totalorder %s16, 0
    %p118 = por %p116, %p117
    %s119 = ssub.s32 %s18, %s25
    %p120 = scmp.eq.s32.totalorder %s119, 0
    %s122 = sadd.s32 %s121, 1
    %s123 = scalar_select %p120, %s121, %s122
    %p126 = pneg %p120
    %p127 = scmp.eq.s32.totalorder %s10, 1
    %p128 = por %p126, %p127
    %p129 = scmp.ne.s32.totalorder %s121, %s124
    %p130 = scmp.eq.s32.totalorder %s10, 0
    %p131 = por %p129, %p130
    %p132 = scmp.ne.s32.totalorder %s121, %s124
    %p133 = scmp.eq.s32.totalorder %s15, 1
    %p134 = por %p132, %p133
    %p135 = scmp.ne.s32.totalorder %s124, %s125
    %p136 = scmp.eq.s32.totalorder %s15, 0
    %p137 = por %p135, %p136
    %p138 = scmp.ne.s32.totalorder %s124, %s125
    %p139 = scmp.eq.s32.totalorder %s16, 1
    %p140 = por %p138, %p139
    %p142 = scmp.ne.s32.totalorder %s125, %s141
    %p143 = scmp.eq.s32.totalorder %s16, 0
    %p144 = por %p142, %p143
    %p145 = scmp.le.s32.totalorder 1, %s10
    %p146 = scmp.lt.s32.totalorder %s10, 3
    %p147 = pnand %p145, %p146
    %p148 = pneg %p147
    // Predicated region
    $region9: #{main_net_forward.4} parent=5 // pred_check
      _
    $region10: #{main_net_forward.4} parent=5 // pred_check_branch
      %150 = sbr.rel (%p147) target = $region12
    $region11: #{main_net_forward.4} parent=5 // pred_region
      %s151 = ssub.s32 %s10, 1
      // Predicated region
      $region13: #{main_net_forward.4} parent=11 // pred_check
        %p152 = pneg %p48
      $region14: #{main_net_forward.4} parent=11 // pred_check_branch
        %154 = sbr.rel (%p152) target = $region16
      $region15: #{main_net_forward.4} parent=11 // pred_region
        %s155 = smul.u32 64, %s20
        %p156 = scmp.lt.s32.totalorder %s155, 63
        %s157 = scalar_select %p156, %s155, 63
        %s158 = smul.addr %s157, 4
        %s159 = scalar_lea.vmem %s0, %s158
        %s160 = smul.u32 64, %s20
      $region16: #{main_net_forward.4} parent=11 // pred_fallthru
        _
      // Predicated region
      $region17: #{main_net_forward.4} parent=11 // pred_check
        %p161 = pneg %p69
      $region18: #{main_net_forward.4} parent=11 // pred_check_branch
        %163 = sbr.rel (%p161) target = $region20
      $region19: #{main_net_forward.4} parent=11 // pred_region
        _
      $region20: #{main_net_forward.4} parent=11 // pred_fallthru
        _
      // Predicated region
      $region21: #{main_net_forward.4} parent=11 // pred_check
        %p164 = pneg %p90
      $region22: #{main_net_forward.4} parent=11 // pred_check_branch
        %166 = sbr.rel (%p164) target = $region24
      $region23: #{main_net_forward.4} parent=11 // pred_region
        _
      $region24: #{main_net_forward.4} parent=11 // pred_fallthru
        _
      // Predicated region
      $region25: #{main_net_forward.4} parent=11 // pred_check
        %p167 = pneg %p111
      $region26: #{main_net_forward.4} parent=11 // pred_check_branch
        %169 = sbr.rel (%p167) target = $region28
      $region27: #{main_net_forward.4} parent=11 // pred_region
        _
      $region28: #{main_net_forward.4} parent=11 // pred_fallthru
        _
    $region12: #{main_net_forward.4} parent=5 // pred_fallthru
      _
    %p170 = scmp.lt.s32.totalorder %s10, 2
    // Predicated region
    $region29: #{main_net_forward.4} parent=5 // pred_check
      %p171 = pneg %p170
    $region30: #{main_net_forward.4} parent=5 // pred_check_branch
      %173 = sbr.rel (%p171) target = $region32
    $region31: #{main_net_forward.4} parent=5 // pred_region
      _
    $region32: #{main_net_forward.4} parent=5 // pred_fallthru
      _
    %p174 = scmp.le.s32.totalorder 1, %s10
    %p175 = scmp.lt.s32.totalorder %s10, 3
    %p176 = pnand %p174, %p175
    %p177 = pneg %p176
    // Predicated region
    $region33: #{main_net_forward.4} parent=5 // pred_check
      _
    $region34: #{main_net_forward.4} parent=5 // pred_check_branch
      %179 = sbr.rel (%p176) target = $region36
    $region35: #{main_net_forward.4} parent=5 // pred_region
      %s180 = ssub.s32 %s10, 1
      %s181 = smul.u32 64, %s20
      %p182 = scmp.lt.s32.totalorder %s181, 63
      %s183 = scalar_select %p182, %s181, 63
      %s184 = smul.addr %s183, 4
      %s185 = scalar_lea.vmem %s0, %s184
      %p186 = pneg %p48
      %p187 = pneg %p45
      %p188 = pneg %p69
      %p189 = pneg %p66
      %p190 = pneg %p90
      %p191 = pneg %p87
      %p192 = pneg %p111
      %p193 = pneg %p108
      %p194 = pneg %p137
      %p195 = pneg %p134
      %s196 = smul.u32 64, %s20
      %p197 = scmp.lt.s32.totalorder %s196, 63
      %s198 = scalar_select %p197, %s196, 63
      %s199 = smul.addr %s198, 8
      %s200 = scalar_lea.vmem %s4, %s199
      %s201 = smul.u32 64, %s20
      %p202 = scmp.lt.s32.totalorder %s201, 63
      %s203 = scalar_select %p202, %s201, 63
      %s204 = smul.addr %s203, 4
      %s205 = scalar_lea.vmem %s0, %s204
      %s206 = smul.u32 64, %s20
      %s207 = smul.u32 64, %s20
      %p208 = scmp.lt.s32.totalorder %s207, 63
      %s209 = scalar_select %p208, %s207, 63
      %s210 = smul.addr %s209, 8
      %s211 = scalar_lea.vmem %s4, %s210
      %s212 = smul.u32 64, %s20
      %v214 = vld [vmem:[%s205] sm:$0xf]
      %v215 = vld [vmem:[%s205 + $0x4] sm:$0xf]
      %v216 = vld [vmem:[%s205 + $0x8] sm:$0xf]
      %v217 = vld [vmem:[%s205 + $0xc] sm:$0xf]
      %v218 = vld [vmem:[%s205 + $0x10] sm:$0xf]
      %v219 = vld [vmem:[%s205 + $0x14] sm:$0xf]
      %v220 = vld [vmem:[%s205 + $0x18] sm:$0xf]
      %v221 = vld [vmem:[%s205 + $0x1c] sm:$0xf]
      %v222 = vld [vmem:[%s205 + $0x20] sm:$0xf]
      %v223 = vld [vmem:[%s205 + $0x24] sm:$0xf]
      %v224 = vld [vmem:[%s205 + $0x28] sm:$0xf]
      %v225 = vld [vmem:[%s205 + $0x2c] sm:$0xf]
      %v226 = vld [vmem:[%s205 + $0x30] sm:$0xf]
      %v227 = vld [vmem:[%s205 + $0x34] sm:$0xf]
      %v228 = vld [vmem:[%s205 + $0x38] sm:$0xf]
      %v229 = vld [vmem:[%s205 + $0x3c] sm:$0xf]
      %v230 = vld [vmem:[%s205 + $0x40] sm:$0xf]
      %v231 = vld [vmem:[%s205 + $0x44] sm:$0xf]
      %v232 = vld [vmem:[%s205 + $0x48] sm:$0xf]
      %v233 = vld [vmem:[%s205 + $0x4c] sm:$0xf]
      %v234 = vld [vmem:[%s205 + $0x50] sm:$0xf]
      %v235 = vld [vmem:[%s205 + $0x54] sm:$0xf]
      %v236 = vld [vmem:[%s205 + $0x58] sm:$0xf]
      %v237 = vld [vmem:[%s205 + $0x5c] sm:$0xf]
      %v238 = vld [vmem:[%s205 + $0x60] sm:$0xf]
      %v239 = vld [vmem:[%s205 + $0x64] sm:$0xf]
      %v240 = vld [vmem:[%s205 + $0x68] sm:$0xf]
      %v241 = vld [vmem:[%s205 + $0x6c] sm:$0xf]
      %v242 = vld [vmem:[%s205 + $0x70] sm:$0xf]
      %v243 = vld [vmem:[%s205 + $0x74] sm:$0xf]
      %v244 = vld [vmem:[%s205 + $0x78] sm:$0xf]
      %v245 = vld [vmem:[%s205 + $0x7c] sm:$0xf]
      %v246 = vld [vmem:[%s205 + $0x80] sm:$0xf]
      %v247 = vld [vmem:[%s205 + $0x84] sm:$0xf]
      %v248 = vld [vmem:[%s205 + $0x88] sm:$0xf]
      %v249 = vld [vmem:[%s205 + $0x8c] sm:$0xf]
      %v250 = vld [vmem:[%s205 + $0x90] sm:$0xf]
      %v251 = vld [vmem:[%s205 + $0x94] sm:$0xf]
      %v252 = vld [vmem:[%s205 + $0x98] sm:$0xf]
      %v253 = vld [vmem:[%s205 + $0x9c] sm:$0xf]
      %v254 = vld [vmem:[%s205 + $0xa0] sm:$0xf]
      %v255 = vld [vmem:[%s205 + $0xa4] sm:$0xf]
      %v256 = vld [vmem:[%s205 + $0xa8] sm:$0xf]
      %v257 = vld [vmem:[%s205 + $0xac] sm:$0xf]
      %v258 = vld [vmem:[%s205 + $0xb0] sm:$0xf]
      %v259 = vld [vmem:[%s205 + $0xb4] sm:$0xf]
      %v260 = vld [vmem:[%s205 + $0xb8] sm:$0xf]
      %v261 = vld [vmem:[%s205 + $0xbc] sm:$0xf]
      %v262 = vld [vmem:[%s205 + $0xc0] sm:$0xf]
      %v263 = vld [vmem:[%s205 + $0xc4] sm:$0xf]
      %v264 = vld [vmem:[%s205 + $0xc8] sm:$0xf]
      %v265 = vld [vmem:[%s205 + $0xcc] sm:$0xf]
      %v266 = vld [vmem:[%s205 + $0xd0] sm:$0xf]
      %v267 = vld [vmem:[%s205 + $0xd4] sm:$0xf]
      %v268 = vld [vmem:[%s205 + $0xd8] sm:$0xf]
      %v269 = vld [vmem:[%s205 + $0xdc] sm:$0xf]
      %v270 = vld [vmem:[%s205 + $0xe0] sm:$0xf]
      %v271 = vld [vmem:[%s205 + $0xe4] sm:$0xf]
      %v272 = vld [vmem:[%s205 + $0xe8] sm:$0xf]
      %v273 = vld [vmem:[%s205 + $0xec] sm:$0xf]
      %v274 = vld [vmem:[%s205 + $0xf0] sm:$0xf]
      %v275 = vld [vmem:[%s205 + $0xf4] sm:$0xf]
      %v276 = vld [vmem:[%s205 + $0xf8] sm:$0xf]
      %v277 = vld [vmem:[%s205 + $0xfc] sm:$0xf]
      %v278 = vld [vmem:[%s1] sm:$0xf]
      %v279 = vld [vmem:[%s1 + $0x4] sm:$0xf]
      %v280 = vld [vmem:[%s1 + $0x8] sm:$0xf]
      %v281 = vld [vmem:[%s1 + $0xc] sm:$0xf]
      %v282 = vld [vmem:[%s1 + $0x10] sm:$0xf]
      %v283 = vld [vmem:[%s1 + $0x14] sm:$0xf]
      %v284 = vld [vmem:[%s1 + $0x18] sm:$0xf]
      %v285 = vld [vmem:[%s1 + $0x1c] sm:$0xf]
      %v286 = vld [vmem:[%s1 + $0x20] sm:$0xf]
      %v351 = vunpack.c.l.b16 %v214
      %v352 = vunpack.c.l.b16 %v215
      %v353 = vunpack.c.l.b16 %v216
      %v354 = vunpack.c.l.b16 %v217
      %v355 = vunpack.c.l.b16 %v218
      %v356 = vunpack.c.l.b16 %v219
      %v357 = vunpack.c.l.b16 %v220
      %v358 = vunpack.c.l.b16 %v221
      %v359 = vunpack.c.l.b16 %v222
      %v360 = vunpack.c.l.b16 %v223
      %v361 = vunpack.c.l.b16 %v224
      %v362 = vunpack.c.l.b16 %v225
      %v363 = vunpack.c.l.b16 %v226
      %v364 = vunpack.c.l.b16 %v227
      %v365 = vunpack.c.l.b16 %v228
      %v366 = vunpack.c.l.b16 %v229
      %v367 = vunpack.c.l.b16 %v230
      %v368 = vunpack.c.l.b16 %v231
      %v369 = vunpack.c.l.b16 %v232
      %v370 = vunpack.c.l.b16 %v233
      %v371 = vunpack.c.l.b16 %v234
      %v372 = vunpack.c.l.b16 %v235
      %v373 = vunpack.c.l.b16 %v236
      %v374 = vunpack.c.l.b16 %v237
      %v375 = vunpack.c.l.b16 %v238
      %v376 = vunpack.c.l.b16 %v239
      %v377 = vunpack.c.l.b16 %v240
      %v378 = vunpack.c.l.b16 %v241
      %v379 = vunpack.c.l.b16 %v242
      %v380 = vunpack.c.l.b16 %v243
      %v381 = vunpack.c.l.b16 %v244
      %v382 = vunpack.c.l.b16 %v245
      %v383 = vunpack.c.l.b16 %v246
      %v384 = vunpack.c.l.b16 %v247
      %v385 = vunpack.c.l.b16 %v248
      %v386 = vunpack.c.l.b16 %v249
      %v387 = vunpack.c.l.b16 %v250
      %v388 = vunpack.c.l.b16 %v251
      %v389 = vunpack.c.l.b16 %v252
      %v390 = vunpack.c.l.b16 %v253
      %v391 = vunpack.c.l.b16 %v254
      %v392 = vunpack.c.l.b16 %v255
      %v393 = vunpack.c.l.b16 %v256
      %v394 = vunpack.c.l.b16 %v257
      %v395 = vunpack.c.l.b16 %v258
      %v396 = vunpack.c.l.b16 %v259
      %v397 = vunpack.c.l.b16 %v260
      %v398 = vunpack.c.l.b16 %v261
      %v399 = vunpack.c.l.b16 %v262
      %v400 = vunpack.c.l.b16 %v263
      %v401 = vunpack.c.l.b16 %v264
      %v402 = vunpack.c.l.b16 %v265
      %v403 = vunpack.c.l.b16 %v266
      %v404 = vunpack.c.l.b16 %v267
      %v405 = vunpack.c.l.b16 %v268
      %v406 = vunpack.c.l.b16 %v269
      %v407 = vunpack.c.l.b16 %v270
      %v408 = vunpack.c.l.b16 %v271
      %v409 = vunpack.c.l.b16 %v272
      %v410 = vunpack.c.l.b16 %v273
      %v411 = vunpack.c.l.b16 %v274
      %v412 = vunpack.c.l.b16 %v275
      %v413 = vunpack.c.l.b16 %v276
      %v414 = vunpack.c.l.b16 %v277
      %v415 = vpack.c.b16 %v352, %v351
      %v416 = vpack.c.b16 %v354, %v353
      %v417 = vpack.c.b16 %v356, %v355
      %v418 = vpack.c.b16 %v358, %v357
      %v419 = vpack.c.b16 %v360, %v359
      %v420 = vpack.c.b16 %v362, %v361
      %v421 = vpack.c.b16 %v364, %v363
      %v422 = vpack.c.b16 %v366, %v365
      %v423 = vpack.c.b16 %v368, %v367
      %v424 = vpack.c.b16 %v370, %v369
      %v425 = vpack.c.b16 %v372, %v371
      %v426 = vpack.c.b16 %v374, %v373
      %v427 = vpack.c.b16 %v376, %v375
      %v428 = vpack.c.b16 %v378, %v377
      %v429 = vpack.c.b16 %v380, %v379
      %v430 = vpack.c.b16 %v382, %v381
      %v431 = vpack.c.b16 %v384, %v383
      %v432 = vpack.c.b16 %v386, %v385
      %v433 = vpack.c.b16 %v388, %v387
      %v434 = vpack.c.b16 %v390, %v389
      %v435 = vpack.c.b16 %v392, %v391
      %v436 = vpack.c.b16 %v394, %v393
      %v437 = vpack.c.b16 %v396, %v395
      %v438 = vpack.c.b16 %v398, %v397
      %v439 = vpack.c.b16 %v400, %v399
      %v440 = vpack.c.b16 %v402, %v401
      %v441 = vpack.c.b16 %v404, %v403
      %v442 = vpack.c.b16 %v406, %v405
      %v443 = vpack.c.b16 %v408, %v407
      %v444 = vpack.c.b16 %v410, %v409
      %v445 = vpack.c.b16 %v412, %v411
      %v446 = vpack.c.b16 %v414, %v413
      %v456 = vunpack.c.l.b16 %v278
      %v457 = vunpack.c.l.b16 %v279
      %v458 = vunpack.c.l.b16 %v280
      %v459 = vunpack.c.l.b16 %v281
      %v460 = vunpack.c.l.b16 %v282
      %v461 = vunpack.c.l.b16 %v283
      %v462 = vunpack.c.l.b16 %v284
      %v463 = vunpack.c.l.b16 %v285
      %v464 = vunpack.c.l.b16 %v286
      %v465 = vpack.c.b16 %v457, %v456
      %v466 = vpack.c.b16 %v459, %v458
      %v467 = vpack.c.b16 %v461, %v460
      %v468 = vpack.c.b16 %v463, %v462
      %v469 = vpack.c.b16 %v464, %v464
      %vm474 = vcmask 588800
      %v476 = vsel %vm474, %v415, 0
      %v479 = vsel %vm474, %v416, 0
      %v482 = vsel %vm474, %v417, 0
      %v485 = vsel %vm474, %v418, 0
      %v488 = vsel %vm474, %v419, 0
      %v491 = vsel %vm474, %v420, 0
      %v494 = vsel %vm474, %v421, 0
      %v497 = vsel %vm474, %v422, 0
      %v500 = vsel %vm474, %v423, 0
      %v503 = vsel %vm474, %v424, 0
      %v506 = vsel %vm474, %v425, 0
      %v509 = vsel %vm474, %v426, 0
      %v512 = vsel %vm474, %v427, 0
      %v515 = vsel %vm474, %v428, 0
      %v518 = vsel %vm474, %v429, 0
      %v521 = vsel %vm474, %v430, 0
      %v524 = vsel %vm474, %v431, 0
      %v527 = vsel %vm474, %v432, 0
      %v530 = vsel %vm474, %v433, 0
      %v533 = vsel %vm474, %v434, 0
      %v536 = vsel %vm474, %v435, 0
      %v539 = vsel %vm474, %v436, 0
      %v542 = vsel %vm474, %v437, 0
      %v545 = vsel %vm474, %v438, 0
      %v548 = vsel %vm474, %v439, 0
      %v551 = vsel %vm474, %v440, 0
      %v554 = vsel %vm474, %v441, 0
      %v557 = vsel %vm474, %v442, 0
      %v560 = vsel %vm474, %v443, 0
      %v563 = vsel %vm474, %v444, 0
      %v566 = vsel %vm474, %v445, 0
      %v569 = vsel %vm474, %v446, 0
      %vm571 = vcmask 1043456
      %v573 = vsel %vm571, %v469, 0
      %575 = vmatprep.subr.bf16.mxu0 0
      %576 = vmatpush1.bf16.msra.mxu0 %v465
      %577 = vmatprep.subr.bf16.mxu0 0
      %578 = vmatpush1.bf16.msra.mxu0 %v466
      %579 = vmatprep.subr.bf16.mxu0 0
      %580 = vmatpush1.bf16.msra.mxu0 %v467
      %581 = vmatprep.subr.bf16.mxu0 0
      %582 = vmatpush1.bf16.msra.mxu0 %v468
      %583 = vmatprep.subr.bf16.mxu0 0
      %584 = vmatpush1.bf16.msra.mxu0 %v573
      %585 = vmatprep.subr.bf16.mxu0 0
      %586 = vmatpush1.bf16.msra.mxu0 0
      %587 = vmatprep.subr.bf16.mxu0 0
      %588 = vmatpush1.bf16.msra.mxu0 0
      %589 = vmatprep.subr.bf16.mxu0 0
      %590 = vmatpush1.bf16.msra.mxu0 0
      %591 = vmatprep.subr.bf16.mxu0 0
      %592 = vmatpush1.bf16.msra.mxu0 0
      %593 = vmatprep.subr.bf16.mxu0 0
      %594 = vmatpush1.bf16.msra.mxu0 0
      %595 = vmatprep.subr.bf16.mxu0 0
      %596 = vmatpush1.bf16.msra.mxu0 0
      %597 = vmatprep.subr.bf16.mxu0 0
      %598 = vmatpush1.bf16.msra.mxu0 0
      %599 = vmatprep.subr.bf16.mxu0 0
      %600 = vmatpush1.bf16.msra.mxu0 0
      %601 = vmatprep.subr.bf16.mxu0 0
      %602 = vmatpush1.bf16.msra.mxu0 0
      %603 = vmatprep.subr.bf16.mxu0 0
      %604 = vmatpush1.bf16.msra.mxu0 0
      %605 = vmatprep.subr.bf16.mxu0 0
      %606 = vmatpush1.bf16.msra.mxu0 0
      %607 = vmatprep.mubr.bf16.mxu0 0
      %608 = vmatmul.mubr.bf16.gmra.mrb[0].mxu0 %v476
      %v609 = vpop.f32.mrb[0].mxu0
      %v610 = vadd.f32 0.0, %v609
      %v611 = vpop.f32.mrb[0].mxu0
      %v612 = vpop.f32.mrb[0].mxu0
      %v613 = vadd.f32 0.0, %v612
      %v614 = vpop.f32.mrb[0].mxu0
      %615 = vmatprep.mubr.bf16.mxu0 0
      %616 = vmatmul.mubr.bf16.gmra.mrb[0].mxu0 %v479
      %v617 = vpop.f32.mrb[0].mxu0
      %v618 = vadd.f32 0.0, %v617
      %v619 = vpop.f32.mrb[0].mxu0
      %v620 = vpop.f32.mrb[0].mxu0
      %v621 = vadd.f32 0.0, %v620
      %v622 = vpop.f32.mrb[0].mxu0
      %623 = vmatprep.mubr.bf16.mxu0 0
      %624 = vmatmul.mubr.bf16.gmra.mrb[0].mxu0 %v482
      %v625 = vpop.f32.mrb[0].mxu0
      %v626 = vadd.f32 0.0, %v625
      %v627 = vpop.f32.mrb[0].mxu0
      %v628 = vpop.f32.mrb[0].mxu0
      %v629 = vadd.f32 0.0, %v628
      %v630 = vpop.f32.mrb[0].mxu0
      %631 = vmatprep.mubr.bf16.mxu0 0
      %632 = vmatmul.mubr.bf16.gmra.mrb[0].mxu0 %v485
      %v633 = vpop.f32.mrb[0].mxu0
      %v634 = vadd.f32 0.0, %v633
      %v635 = vpop.f32.mrb[0].mxu0
      %v636 = vpop.f32.mrb[0].mxu0
      %v637 = vadd.f32 0.0, %v636
      %v638 = vpop.f32.mrb[0].mxu0
      %639 = vmatprep.mubr.bf16.mxu0 0
      %640 = vmatmul.mubr.bf16.gmra.mrb[0].mxu0 %v488
      %v641 = vpop.f32.mrb[0].mxu0
      %v642 = vadd.f32 0.0, %v641
      %v643 = vpop.f32.mrb[0].mxu0
      %v644 = vpop.f32.mrb[0].mxu0
      %v645 = vadd.f32 0.0, %v644
      %v646 = vpop.f32.mrb[0].mxu0
      %647 = vmatprep.mubr.bf16.mxu0 0
      %648 = vmatmul.mubr.bf16.gmra.mrb[0].mxu0 %v491
      %v649 = vpop.f32.mrb[0].mxu0
      %v650 = vadd.f32 0.0, %v649
      %v651 = vpop.f32.mrb[0].mxu0
      %v652 = vpop.f32.mrb[0].mxu0
      %v653 = vadd.f32 0.0, %v652
      %v654 = vpop.f32.mrb[0].mxu0
      %655 = vmatprep.mubr.bf16.mxu0 0
      %656 = vmatmul.mubr.bf16.gmra.mrb[0].mxu0 %v494
      %v657 = vpop.f32.mrb[0].mxu0
      %v658 = vadd.f32 0.0, %v657
      %v659 = vpop.f32.mrb[0].mxu0
      %v660 = vpop.f32.mrb[0].mxu0
      %v661 = vadd.f32 0.0, %v660
      %v662 = vpop.f32.mrb[0].mxu0
      %663 = vmatprep.mubr.bf16.mxu0 0
      %664 = vmatmul.mubr.bf16.gmra.mrb[0].mxu0 %v497
      %v665 = vpop.f32.mrb[0].mxu0
      %v666 = vadd.f32 0.0, %v665
      %v667 = vpop.f32.mrb[0].mxu0
      %v668 = vpop.f32.mrb[0].mxu0
      %v669 = vadd.f32 0.0, %v668
      %v670 = vpop.f32.mrb[0].mxu0
      %671 = vmatprep.mubr.bf16.mxu0 0
      %672 = vmatmul.mubr.bf16.gmra.mrb[0].mxu0 %v500
      %v673 = vpop.f32.mrb[0].mxu0
      %v674 = vadd.f32 0.0, %v673
      %v675 = vpop.f32.mrb[0].mxu0
      %v676 = vpop.f32.mrb[0].mxu0
      %v677 = vadd.f32 0.0, %v676
      %v678 = vpop.f32.mrb[0].mxu0
      %679 = vmatprep.mubr.bf16.mxu0 0
      %680 = vmatmul.mubr.bf16.gmra.mrb[0].mxu0 %v503
      %v681 = vpop.f32.mrb[0].mxu0
      %v682 = vadd.f32 0.0, %v681
      %v683 = vpop.f32.mrb[0].mxu0
      %v684 = vpop.f32.mrb[0].mxu0
      %v685 = vadd.f32 0.0, %v684
      %v686 = vpop.f32.mrb[0].mxu0
      %687 = vmatprep.mubr.bf16.mxu0 0
      %688 = vmatmul.mubr.bf16.gmra.mrb[0].mxu0 %v506
      %v689 = vpop.f32.mrb[0].mxu0
      %v690 = vadd.f32 0.0, %v689
      %v691 = vpop.f32.mrb[0].mxu0
      %v692 = vpop.f32.mrb[0].mxu0
      %v693 = vadd.f32 0.0, %v692
      %v694 = vpop.f32.mrb[0].mxu0
      %695 = vmatprep.mubr.bf16.mxu0 0
      %696 = vmatmul.mubr.bf16.gmra.mrb[0].mxu0 %v509
      %v697 = vpop.f32.mrb[0].mxu0
      %v698 = vadd.f32 0.0, %v697
      %v699 = vpop.f32.mrb[0].mxu0
      %v700 = vpop.f32.mrb[0].mxu0
      %v701 = vadd.f32 0.0, %v700
      %v702 = vpop.f32.mrb[0].mxu0
      %703 = vmatprep.mubr.bf16.mxu0 0
      %704 = vmatmul.mubr.bf16.gmra.mrb[0].mxu0 %v512
      %v705 = vpop.f32.mrb[0].mxu0
      %v706 = vadd.f32 0.0, %v705
      %v707 = vpop.f32.mrb[0].mxu0
      %v708 = vpop.f32.mrb[0].mxu0
      %v709 = vadd.f32 0.0, %v708
      %v710 = vpop.f32.mrb[0].mxu0
      %711 = vmatprep.mubr.bf16.mxu0 0
      %712 = vmatmul.mubr.bf16.gmra.mrb[0].mxu0 %v515
      %v713 = vpop.f32.mrb[0].mxu0
      %v714 = vadd.f32 0.0, %v713
      %v715 = vpop.f32.mrb[0].mxu0
      %v716 = vpop.f32.mrb[0].mxu0
      %v717 = vadd.f32 0.0, %v716
      %v718 = vpop.f32.mrb[0].mxu0
      %719 = vmatprep.mubr.bf16.mxu0 0
      %720 = vmatmul.mubr.bf16.gmra.mrb[0].mxu0 %v518
      %v721 = vpop.f32.mrb[0].mxu0
      %v722 = vadd.f32 0.0, %v721
      %v723 = vpop.f32.mrb[0].mxu0
      %v724 = vpop.f32.mrb[0].mxu0
      %v725 = vadd.f32 0.0, %v724
      %v726 = vpop.f32.mrb[0].mxu0
      %727 = vmatprep.mubr.bf16.mxu0 0
      %728 = vmatmul.mubr.bf16.gmra.mrb[0].mxu0 %v521
      %v729 = vpop.f32.mrb[0].mxu0
      %v730 = vadd.f32 0.0, %v729
      %v731 = vpop.f32.mrb[0].mxu0
      %v732 = vpop.f32.mrb[0].mxu0
      %v733 = vadd.f32 0.0, %v732
      %v734 = vpop.f32.mrb[0].mxu0
      %735 = vmatprep.mubr.bf16.mxu0 0
      %736 = vmatmul.mubr.bf16.gmra.mrb[0].mxu0 %v524
      %v737 = vpop.f32.mrb[0].mxu0
      %v738 = vadd.f32 0.0, %v737
      %v739 = vpop.f32.mrb[0].mxu0
      %v740 = vpop.f32.mrb[0].mxu0
      %v741 = vadd.f32 0.0, %v740
      %v742 = vpop.f32.mrb[0].mxu0
      %743 = vmatprep.mubr.bf16.mxu0 0
      %744 = vmatmul.mubr.bf16.gmra.mrb[0].mxu0 %v527
      %v745 = vpop.f32.mrb[0].mxu0
      %v746 = vadd.f32 0.0, %v745
      %v747 = vpop.f32.mrb[0].mxu0
      %v748 = vpop.f32.mrb[0].mxu0
      %v749 = vadd.f32 0.0, %v748
      %v750 = vpop.f32.mrb[0].mxu0
      %751 = vmatprep.mubr.bf16.mxu0 0
      %752 = vmatmul.mubr.bf16.gmra.mrb[0].mxu0 %v530
      %v753 = vpop.f32.mrb[0].mxu0
      %v754 = vadd.f32 0.0, %v753
      %v755 = vpop.f32.mrb[0].mxu0
      %v756 = vpop.f32.mrb[0].mxu0
      %v757 = vadd.f32 0.0, %v756
      %v758 = vpop.f32.mrb[0].mxu0
      %759 = vmatprep.mubr.bf16.mxu0 0
      %760 = vmatmul.mubr.bf16.gmra.mrb[0].mxu0 %v533
      %v761 = vpop.f32.mrb[0].mxu0
      %v762 = vadd.f32 0.0, %v761
      %v763 = vpop.f32.mrb[0].mxu0
      %v764 = vpop.f32.mrb[0].mxu0
      %v765 = vadd.f32 0.0, %v764
      %v766 = vpop.f32.mrb[0].mxu0
      %767 = vmatprep.mubr.bf16.mxu0 0
      %768 = vmatmul.mubr.bf16.gmra.mrb[0].mxu0 %v536
      %v769 = vpop.f32.mrb[0].mxu0
      %v770 = vadd.f32 0.0, %v769
      %v771 = vpop.f32.mrb[0].mxu0
      %v772 = vpop.f32.mrb[0].mxu0
      %v773 = vadd.f32 0.0, %v772
      %v774 = vpop.f32.mrb[0].mxu0
      %775 = vmatprep.mubr.bf16.mxu0 0
      %776 = vmatmul.mubr.bf16.gmra.mrb[0].mxu0 %v539
      %v777 = vpop.f32.mrb[0].mxu0
      %v778 = vadd.f32 0.0, %v777
      %v779 = vpop.f32.mrb[0].mxu0
      %v780 = vpop.f32.mrb[0].mxu0
      %v781 = vadd.f32 0.0, %v780
      %v782 = vpop.f32.mrb[0].mxu0
      %783 = vmatprep.mubr.bf16.mxu0 0
      %784 = vmatmul.mubr.bf16.gmra.mrb[0].mxu0 %v542
      %v785 = vpop.f32.mrb[0].mxu0
      %v786 = vadd.f32 0.0, %v785
      %v787 = vpop.f32.mrb[0].mxu0
      %v788 = vpop.f32.mrb[0].mxu0
      %v789 = vadd.f32 0.0, %v788
      %v790 = vpop.f32.mrb[0].mxu0
      %791 = vmatprep.mubr.bf16.mxu0 0
      %792 = vmatmul.mubr.bf16.gmra.mrb[0].mxu0 %v545
      %v793 = vpop.f32.mrb[0].mxu0
      %v794 = vadd.f32 0.0, %v793
      %v795 = vpop.f32.mrb[0].mxu0
      %v796 = vpop.f32.mrb[0].mxu0
      %v797 = vadd.f32 0.0, %v796
      %v798 = vpop.f32.mrb[0].mxu0
      %799 = vmatprep.mubr.bf16.mxu0 0
      %800 = vmatmul.mubr.bf16.gmra.mrb[0].mxu0 %v548
      %v801 = vpop.f32.mrb[0].mxu0
      %v802 = vadd.f32 0.0, %v801
      %v803 = vpop.f32.mrb[0].mxu0
      %v804 = vpop.f32.mrb[0].mxu0
      %v805 = vadd.f32 0.0, %v804
      %v806 = vpop.f32.mrb[0].mxu0
      %807 = vmatprep.mubr.bf16.mxu0 0
      %808 = vmatmul.mubr.bf16.gmra.mrb[0].mxu0 %v551
      %v809 = vpop.f32.mrb[0].mxu0
      %v810 = vadd.f32 0.0, %v809
      %v811 = vpop.f32.mrb[0].mxu0
      %v812 = vpop.f32.mrb[0].mxu0
      %v813 = vadd.f32 0.0, %v812
      %v814 = vpop.f32.mrb[0].mxu0
      %815 = vmatprep.mubr.bf16.mxu0 0
      %816 = vmatmul.mubr.bf16.gmra.mrb[0].mxu0 %v554
      %v817 = vpop.f32.mrb[0].mxu0
      %v818 = vadd.f32 0.0, %v817
      %v819 = vpop.f32.mrb[0].mxu0
      %v820 = vpop.f32.mrb[0].mxu0
      %v821 = vadd.f32 0.0, %v820
      %v822 = vpop.f32.mrb[0].mxu0
      %823 = vmatprep.mubr.bf16.mxu0 0
      %824 = vmatmul.mubr.bf16.gmra.mrb[0].mxu0 %v557
      %v825 = vpop.f32.mrb[0].mxu0
      %v826 = vadd.f32 0.0, %v825
      %v827 = vpop.f32.mrb[0].mxu0
      %v828 = vpop.f32.mrb[0].mxu0
      %v829 = vadd.f32 0.0, %v828
      %v830 = vpop.f32.mrb[0].mxu0
      %831 = vmatprep.mubr.bf16.mxu0 0
      %832 = vmatmul.mubr.bf16.gmra.mrb[0].mxu0 %v560
      %v833 = vpop.f32.mrb[0].mxu0
      %v834 = vadd.f32 0.0, %v833
      %v835 = vpop.f32.mrb[0].mxu0
      %v836 = vpop.f32.mrb[0].mxu0
      %v837 = vadd.f32 0.0, %v836
      %v838 = vpop.f32.mrb[0].mxu0
      %839 = vmatprep.mubr.bf16.mxu0 0
      %840 = vmatmul.mubr.bf16.gmra.mrb[0].mxu0 %v563
      %v841 = vpop.f32.mrb[0].mxu0
      %v842 = vadd.f32 0.0, %v841
      %v843 = vpop.f32.mrb[0].mxu0
      %v844 = vpop.f32.mrb[0].mxu0
      %v845 = vadd.f32 0.0, %v844
      %v846 = vpop.f32.mrb[0].mxu0
      %847 = vmatprep.mubr.bf16.mxu0 0
      %848 = vmatmul.mubr.bf16.gmra.mrb[0].mxu0 %v566
      %v849 = vpop.f32.mrb[0].mxu0
      %v850 = vadd.f32 0.0, %v849
      %v851 = vpop.f32.mrb[0].mxu0
      %v852 = vpop.f32.mrb[0].mxu0
      %v853 = vadd.f32 0.0, %v852
      %v854 = vpop.f32.mrb[0].mxu0
      %855 = vmatprep.mubr.bf16.mxu0 0
      %856 = vmatmul.mubr.bf16.gmra.mrb[0].mxu0 %v569
      %v857 = vpop.f32.mrb[0].mxu0
      %v858 = vadd.f32 0.0, %v857
      %v859 = vpop.f32.mrb[0].mxu0
      %v860 = vpop.f32.mrb[0].mxu0
      %v861 = vadd.f32 0.0, %v860
      %v862 = vpop.f32.mrb[0].mxu0
      %863 = vdwg.mxu0
      %p864 = scmp.eq.s32.totalorder %s19, 0
      %p865 = scmp.eq.s32.totalorder %s20, 0
      %p866 = pnand %p864, %p865
      %p867 = pneg %p866
      // Predicated region
      $region37: #{main_net_forward.4} parent=35 // pred_check
        _
      $region38: #{main_net_forward.4} parent=35 // pred_check_branch
        %869 = sbr.rel (%p866) target = $region40
      $region39: #{main_net_forward.4} parent=35 // pred_region
        %870 = vst [vmem:[#allocation2] sm:$0x3] 0.0
      $region40: #{main_net_forward.4} parent=35 // pred_fallthru
        _
      // Predicated region
      $region41: #{main_net_forward.4} parent=35 // pred_check
        %p871 = pneg %p864
      $region42: #{main_net_forward.4} parent=35 // pred_check_branch
        %873 = sbr.rel (%p871) target = $region44
      $region43: #{main_net_forward.4} parent=35 // pred_region
        %v874 = vld [vmem:[#allocation2] sm:$0x1]
        %v875 = vadd.f32 %v610, %v613
        %v876 = vadd.f32 %v875, %v618
        %v877 = vadd.f32 %v876, %v621
        %v878 = vadd.f32 %v877, %v626
        %v879 = vadd.f32 %v878, %v629
        %v880 = vadd.f32 %v879, %v634
        %v881 = vadd.f32 %v880, %v637
        %v882 = vadd.f32 %v881, %v642
        %v883 = vadd.f32 %v882, %v645
        %v884 = vadd.f32 %v883, %v650
        %v885 = vadd.f32 %v884, %v653
        %v886 = vadd.f32 %v885, %v658
        %v887 = vadd.f32 %v886, %v661
        %v888 = vadd.f32 %v887, %v666
        %v889 = vadd.f32 %v888, %v669
        %v890 = vadd.f32 %v889, %v674
        %v891 = vadd.f32 %v890, %v677
        %v892 = vadd.f32 %v891, %v682
        %v893 = vadd.f32 %v892, %v685
        %v894 = vadd.f32 %v893, %v690
        %v895 = vadd.f32 %v894, %v693
        %v896 = vadd.f32 %v895, %v698
        %v897 = vadd.f32 %v896, %v701
        %v898 = vadd.f32 %v897, %v706
        %v899 = vadd.f32 %v898, %v709
        %v900 = vadd.f32 %v899, %v714
        %v901 = vadd.f32 %v900, %v717
        %v902 = vadd.f32 %v901, %v722
        %v903 = vadd.f32 %v902, %v725
        %v904 = vadd.f32 %v903, %v730
        %v905 = vadd.f32 %v904, %v733
        %v906 = vadd.f32 %v905, %v738
        %v907 = vadd.f32 %v906, %v741
        %v908 = vadd.f32 %v907, %v746
        %v909 = vadd.f32 %v908, %v749
        %v910 = vadd.f32 %v909, %v754
        %v911 = vadd.f32 %v910, %v757
        %v912 = vadd.f32 %v911, %v762
        %v913 = vadd.f32 %v912, %v765
        %v914 = vadd.f32 %v913, %v770
        %v915 = vadd.f32 %v914, %v773
        %v916 = vadd.f32 %v915, %v778
        %v917 = vadd.f32 %v916, %v781
        %v918 = vadd.f32 %v917, %v786
        %v919 = vadd.f32 %v918, %v789
        %v920 = vadd.f32 %v919, %v794
        %v921 = vadd.f32 %v920, %v797
        %v922 = vadd.f32 %v921, %v802
        %v923 = vadd.f32 %v922, %v805
        %v924 = vadd.f32 %v923, %v810
        %v925 = vadd.f32 %v924, %v813
        %v926 = vadd.f32 %v925, %v818
        %v927 = vadd.f32 %v926, %v821
        %v928 = vadd.f32 %v927, %v826
        %v929 = vadd.f32 %v928, %v829
        %v930 = vadd.f32 %v929, %v834
        %v931 = vadd.f32 %v930, %v837
        %v932 = vadd.f32 %v931, %v842
        %v933 = vadd.f32 %v932, %v845
        %v934 = vadd.f32 %v933, %v850
        %v935 = vadd.f32 %v934, %v853
        %v936 = vadd.f32 %v935, %v858
        %v937 = vadd.f32 %v936, %v861
        %v938 = vrot.slane %v937, 4
        %v939 = vadd.f32 %v937, %v938
        %v940 = vrot.slane %v939, 2
        %v941 = vadd.f32 %v939, %v940
        %v942 = vrot.slane %v941, 1
        %v943 = vadd.f32 %v941, %v942
        %v944 = vadd.f32 %v874, %v943
        %945 = vst [vmem:[#allocation2] sm:$0x1] %v944
        %v946 = vld [vmem:[#allocation2 + $0x1] sm:$0x1]
        %v947 = vmul.f32 %v610, %v610
        %v948 = vmul.f32 %v613, %v613
        %v949 = vmul.f32 %v618, %v618
        %v950 = vmul.f32 %v621, %v621
        %v951 = vmul.f32 %v626, %v626
        %v952 = vmul.f32 %v629, %v629
        %v953 = vmul.f32 %v634, %v634
        %v954 = vmul.f32 %v637, %v637
        %v955 = vmul.f32 %v642, %v642
        %v956 = vmul.f32 %v645, %v645
        %v957 = vmul.f32 %v650, %v650
        %v958 = vmul.f32 %v653, %v653
        %v959 = vmul.f32 %v658, %v658
        %v960 = vmul.f32 %v661, %v661
        %v961 = vmul.f32 %v666, %v666
        %v962 = vmul.f32 %v669, %v669
        %v963 = vmul.f32 %v674, %v674
        %v964 = vmul.f32 %v677, %v677
        %v965 = vmul.f32 %v682, %v682
        %v966 = vmul.f32 %v685, %v685
        %v967 = vmul.f32 %v690, %v690
        %v968 = vmul.f32 %v693, %v693
        %v969 = vmul.f32 %v698, %v698
        %v970 = vmul.f32 %v701, %v701
        %v971 = vmul.f32 %v706, %v706
        %v972 = vmul.f32 %v709, %v709
        %v973 = vmul.f32 %v714, %v714
        %v974 = vmul.f32 %v717, %v717
        %v975 = vmul.f32 %v722, %v722
        %v976 = vmul.f32 %v725, %v725
        %v977 = vmul.f32 %v730, %v730
        %v978 = vmul.f32 %v733, %v733
        %v979 = vmul.f32 %v738, %v738
        %v980 = vmul.f32 %v741, %v741
        %v981 = vmul.f32 %v746, %v746
        %v982 = vmul.f32 %v749, %v749
        %v983 = vmul.f32 %v754, %v754
        %v984 = vmul.f32 %v757, %v757
        %v985 = vmul.f32 %v762, %v762
        %v986 = vmul.f32 %v765, %v765
        %v987 = vmul.f32 %v770, %v770
        %v988 = vmul.f32 %v773, %v773
        %v989 = vmul.f32 %v778, %v778
        %v990 = vmul.f32 %v781, %v781
        %v991 = vmul.f32 %v786, %v786
        %v992 = vmul.f32 %v789, %v789
        %v993 = vmul.f32 %v794, %v794
        %v994 = vmul.f32 %v797, %v797
        %v995 = vmul.f32 %v802, %v802
        %v996 = vmul.f32 %v805, %v805
        %v997 = vmul.f32 %v810, %v810
        %v998 = vmul.f32 %v813, %v813
        %v999 = vmul.f32 %v818, %v818
        %v1000 = vmul.f32 %v821, %v821
        %v1001 = vmul.f32 %v826, %v826
        %v1002 = vmul.f32 %v829, %v829
        %v1003 = vmul.f32 %v834, %v834
        %v1004 = vmul.f32 %v837, %v837
        %v1005 = vmul.f32 %v842, %v842
        %v1006 = vmul.f32 %v845, %v845
        %v1007 = vmul.f32 %v850, %v850
        %v1008 = vmul.f32 %v853, %v853
        %v1009 = vmul.f32 %v858, %v858
        %v1010 = vmul.f32 %v861, %v861
        %v1011 = vadd.f32 %v947, %v948
        %v1012 = vadd.f32 %v1011, %v949
        %v1013 = vadd.f32 %v1012, %v950
        %v1014 = vadd.f32 %v1013, %v951
        %v1015 = vadd.f32 %v1014, %v952
        %v1016 = vadd.f32 %v1015, %v953
        %v1017 = vadd.f32 %v1016, %v954
        %v1018 = vadd.f32 %v1017, %v955
        %v1019 = vadd.f32 %v1018, %v956
        %v1020 = vadd.f32 %v1019, %v957
        %v1021 = vadd.f32 %v1020, %v958
        %v1022 = vadd.f32 %v1021, %v959
        %v1023 = vadd.f32 %v1022, %v960
        %v1024 = vadd.f32 %v1023, %v961
        %v1025 = vadd.f32 %v1024, %v962
        %v1026 = vadd.f32 %v1025, %v963
        %v1027 = vadd.f32 %v1026, %v964
        %v1028 = vadd.f32 %v1027, %v965
        %v1029 = vadd.f32 %v1028, %v966
        %v1030 = vadd.f32 %v1029, %v967
        %v1031 = vadd.f32 %v1030, %v968
        %v1032 = vadd.f32 %v1031, %v969
        %v1033 = vadd.f32 %v1032, %v970
        %v1034 = vadd.f32 %v1033, %v971
        %v1035 = vadd.f32 %v1034, %v972
        %v1036 = vadd.f32 %v1035, %v973
        %v1037 = vadd.f32 %v1036, %v974
        %v1038 = vadd.f32 %v1037, %v975
        %v1039 = vadd.f32 %v1038, %v976
        %v1040 = vadd.f32 %v1039, %v977
        %v1041 = vadd.f32 %v1040, %v978
        %v1042 = vadd.f32 %v1041, %v979
        %v1043 = vadd.f32 %v1042, %v980
        %v1044 = vadd.f32 %v1043, %v981
        %v1045 = vadd.f32 %v1044, %v982
        %v1046 = vadd.f32 %v1045, %v983
        %v1047 = vadd.f32 %v1046, %v984
        %v1048 = vadd.f32 %v1047, %v985
        %v1049 = vadd.f32 %v1048, %v986
        %v1050 = vadd.f32 %v1049, %v987
        %v1051 = vadd.f32 %v1050, %v988
        %v1052 = vadd.f32 %v1051, %v989
        %v1053 = vadd.f32 %v1052, %v990
        %v1054 = vadd.f32 %v1053, %v991
        %v1055 = vadd.f32 %v1054, %v992
        %v1056 = vadd.f32 %v1055, %v993
        %v1057 = vadd.f32 %v1056, %v994
        %v1058 = vadd.f32 %v1057, %v995
        %v1059 = vadd.f32 %v1058, %v996
        %v1060 = vadd.f32 %v1059, %v997
        %v1061 = vadd.f32 %v1060, %v998
        %v1062 = vadd.f32 %v1061, %v999
        %v1063 = vadd.f32 %v1062, %v1000
        %v1064 = vadd.f32 %v1063, %v1001
        %v1065 = vadd.f32 %v1064, %v1002
        %v1066 = vadd.f32 %v1065, %v1003
        %v1067 = vadd.f32 %v1066, %v1004
        %v1068 = vadd.f32 %v1067, %v1005
        %v1069 = vadd.f32 %v1068, %v1006
        %v1070 = vadd.f32 %v1069, %v1007
        %v1071 = vadd.f32 %v1070, %v1008
        %v1072 = vadd.f32 %v1071, %v1009
        %v1073 = vadd.f32 %v1072, %v1010
        %v1074 = vrot.slane %v1073, 4
        %v1075 = vadd.f32 %v1073, %v1074
        %v1076 = vrot.slane %v1075, 2
        %v1077 = vadd.f32 %v1075, %v1076
        %v1078 = vrot.slane %v1077, 1
        %v1079 = vadd.f32 %v1077, %v1078
        %v1080 = vadd.f32 %v946, %v1079
        %1081 = vst [vmem:[#allocation2 + $0x1] sm:$0x1] %v1080
        %1082 = vst [vmem:[%s211] sm:$0xff] %v610
        %1083 = vst [vmem:[%s211 + $0x8] sm:$0xff] %v613
        %1084 = vst [vmem:[%s211 + $0x10] sm:$0xff] %v618
        %1085 = vst [vmem:[%s211 + $0x18] sm:$0xff] %v621
        %1086 = vst [vmem:[%s211 + $0x20] sm:$0xff] %v626
        %1087 = vst [vmem:[%s211 + $0x28] sm:$0xff] %v629
        %1088 = vst [vmem:[%s211 + $0x30] sm:$0xff] %v634
        %1089 = vst [vmem:[%s211 + $0x38] sm:$0xff] %v637
        %1090 = vst [vmem:[%s211 + $0x40] sm:$0xff] %v642
        %1091 = vst [vmem:[%s211 + $0x48] sm:$0xff] %v645
        %1092 = vst [vmem:[%s211 + $0x50] sm:$0xff] %v650
        %1093 = vst [vmem:[%s211 + $0x58] sm:$0xff] %v653
        %1094 = vst [vmem:[%s211 + $0x60] sm:$0xff] %v658
        %1095 = vst [vmem:[%s211 + $0x68] sm:$0xff] %v661
        %1096 = vst [vmem:[%s211 + $0x70] sm:$0xff] %v666
        %1097 = vst [vmem:[%s211 + $0x78] sm:$0xff] %v669
        %1098 = vst [vmem:[%s211 + $0x80] sm:$0xff] %v674
        %1099 = vst [vmem:[%s211 + $0x88] sm:$0xff] %v677
        %1100 = vst [vmem:[%s211 + $0x90] sm:$0xff] %v682
        %1101 = vst [vmem:[%s211 + $0x98] sm:$0xff] %v685
        %1102 = vst [vmem:[%s211 + $0xa0] sm:$0xff] %v690
        %1103 = vst [vmem:[%s211 + $0xa8] sm:$0xff] %v693
        %1104 = vst [vmem:[%s211 + $0xb0] sm:$0xff] %v698
        %1105 = vst [vmem:[%s211 + $0xb8] sm:$0xff] %v701
        %1106 = vst [vmem:[%s211 + $0xc0] sm:$0xff] %v706
        %1107 = vst [vmem:[%s211 + $0xc8] sm:$0xff] %v709
        %1108 = vst [vmem:[%s211 + $0xd0] sm:$0xff] %v714
        %1109 = vst [vmem:[%s211 + $0xd8] sm:$0xff] %v717
        %1110 = vst [vmem:[%s211 + $0xe0] sm:$0xff] %v722
        %1111 = vst [vmem:[%s211 + $0xe8] sm:$0xff] %v725
        %1112 = vst [vmem:[%s211 + $0xf0] sm:$0xff] %v730
        %1113 = vst [vmem:[%s211 + $0xf8] sm:$0xff] %v733
        %1114 = vst [vmem:[%s211 + $0x100] sm:$0xff] %v738
        %1115 = vst [vmem:[%s211 + $0x108] sm:$0xff] %v741
        %1116 = vst [vmem:[%s211 + $0x110] sm:$0xff] %v746
        %1117 = vst [vmem:[%s211 + $0x118] sm:$0xff] %v749
        %1118 = vst [vmem:[%s211 + $0x120] sm:$0xff] %v754
        %1119 = vst [vmem:[%s211 + $0x128] sm:$0xff] %v757
        %1120 = vst [vmem:[%s211 + $0x130] sm:$0xff] %v762
        %1121 = vst [vmem:[%s211 + $0x138] sm:$0xff] %v765
        %1122 = vst [vmem:[%s211 + $0x140] sm:$0xff] %v770
        %1123 = vst [vmem:[%s211 + $0x148] sm:$0xff] %v773
        %1124 = vst [vmem:[%s211 + $0x150] sm:$0xff] %v778
        %1125 = vst [vmem:[%s211 + $0x158] sm:$0xff] %v781
        %1126 = vst [vmem:[%s211 + $0x160] sm:$0xff] %v786
        %1127 = vst [vmem:[%s211 + $0x168] sm:$0xff] %v789
        %1128 = vst [vmem:[%s211 + $0x170] sm:$0xff] %v794
        %1129 = vst [vmem:[%s211 + $0x178] sm:$0xff] %v797
        %1130 = vst [vmem:[%s211 + $0x180] sm:$0xff] %v802
        %1131 = vst [vmem:[%s211 + $0x188] sm:$0xff] %v805
        %1132 = vst [vmem:[%s211 + $0x190] sm:$0xff] %v810
        %1133 = vst [vmem:[%s211 + $0x198] sm:$0xff] %v813
        %1134 = vst [vmem:[%s211 + $0x1a0] sm:$0xff] %v818
        %1135 = vst [vmem:[%s211 + $0x1a8] sm:$0xff] %v821
        %1136 = vst [vmem:[%s211 + $0x1b0] sm:$0xff] %v826
        %1137 = vst [vmem:[%s211 + $0x1b8] sm:$0xff] %v829
        %1138 = vst [vmem:[%s211 + $0x1c0] sm:$0xff] %v834
        %1139 = vst [vmem:[%s211 + $0x1c8] sm:$0xff] %v837
        %1140 = vst [vmem:[%s211 + $0x1d0] sm:$0xff] %v842
        %1141 = vst [vmem:[%s211 + $0x1d8] sm:$0xff] %v845
        %1142 = vst [vmem:[%s211 + $0x1e0] sm:$0xff] %v850
        %1143 = vst [vmem:[%s211 + $0x1e8] sm:$0xff] %v853
        %1144 = vst [vmem:[%s211 + $0x1f0] sm:$0xff] %v858
        %1145 = vst [vmem:[%s211 + $0x1f8] sm:$0xff] %v861
      $region44: #{main_net_forward.4} parent=35 // pred_fallthru
        _
      %p1146 = scmp.eq.s32.totalorder %s19, 1
      // Predicated region
      $region45: #{main_net_forward.4} parent=35 // pred_check
        %p1147 = pneg %p1146
      $region46: #{main_net_forward.4} parent=35 // pred_check_branch
        %1149 = sbr.rel (%p1147) target = $region48
      $region47: #{main_net_forward.4} parent=35 // pred_region
        %v1150 = vld [vmem:[#allocation2] sm:$0x1]
        %v1151 = vmul.f32 %v1150, 0.001953125
        %v1152 = vld [vmem:[#allocation2 + $0x1] sm:$0x1]
        %v1153 = vmul.f32 %v1152, 0.001953125
        %v1154 = vmul.f32 %v1151, %v1151
        %v1155 = vsub.f32 %v1153, %v1154
        %v1156 = vadd.f32 %v1155, 1e-05
        %v1157 = vrsqrt.pop %v1156
        %v1158 = vld [vmem:[%s2] sm:$0x1]
        %v1159 = vmul.f32 %v1157, %v1158
        %v1160 = vld [vmem:[%s3] sm:$0x1]
        %v1161 = vmul.f32 %v1151, %v1159
        %v1162 = vsub.f32 %v1160, %v1161
        %v1163 = vlaneseq
        %v1164 = vshrl.u32 %v1163, 7
        %v1165 = vsub.s32 0, %v1164
        %v1166 = vrot.slane %v1159, %v1165
        %v1167 = vmul.f32 %v610, %v1166
        %v1168 = vmul.f32 %v613, %v1166
        %v1169 = vmul.f32 %v618, %v1166
        %v1170 = vmul.f32 %v621, %v1166
        %v1171 = vmul.f32 %v626, %v1166
        %v1172 = vmul.f32 %v629, %v1166
        %v1173 = vmul.f32 %v634, %v1166
        %v1174 = vmul.f32 %v637, %v1166
        %v1175 = vmul.f32 %v642, %v1166
        %v1176 = vmul.f32 %v645, %v1166
        %v1177 = vmul.f32 %v650, %v1166
        %v1178 = vmul.f32 %v653, %v1166
        %v1179 = vmul.f32 %v658, %v1166
        %v1180 = vmul.f32 %v661, %v1166
        %v1181 = vmul.f32 %v666, %v1166
        %v1182 = vmul.f32 %v669, %v1166
        %v1183 = vmul.f32 %v674, %v1166
        %v1184 = vmul.f32 %v677, %v1166
        %v1185 = vmul.f32 %v682, %v1166
        %v1186 = vmul.f32 %v685, %v1166
        %v1187 = vmul.f32 %v690, %v1166
        %v1188 = vmul.f32 %v693, %v1166
        %v1189 = vmul.f32 %v698, %v1166
        %v1190 = vmul.f32 %v701, %v1166
        %v1191 = vmul.f32 %v706, %v1166
        %v1192 = vmul.f32 %v709, %v1166
        %v1193 = vmul.f32 %v714, %v1166
        %v1194 = vmul.f32 %v717, %v1166
        %v1195 = vmul.f32 %v722, %v1166
        %v1196 = vmul.f32 %v725, %v1166
        %v1197 = vmul.f32 %v730, %v1166
        %v1198 = vmul.f32 %v733, %v1166
        %v1199 = vmul.f32 %v738, %v1166
        %v1200 = vmul.f32 %v741, %v1166
        %v1201 = vmul.f32 %v746, %v1166
        %v1202 = vmul.f32 %v749, %v1166
        %v1203 = vmul.f32 %v754, %v1166
        %v1204 = vmul.f32 %v757, %v1166
        %v1205 = vmul.f32 %v762, %v1166
        %v1206 = vmul.f32 %v765, %v1166
        %v1207 = vmul.f32 %v770, %v1166
        %v1208 = vmul.f32 %v773, %v1166
        %v1209 = vmul.f32 %v778, %v1166
        %v1210 = vmul.f32 %v781, %v1166
        %v1211 = vmul.f32 %v786, %v1166
        %v1212 = vmul.f32 %v789, %v1166
        %v1213 = vmul.f32 %v794, %v1166
        %v1214 = vmul.f32 %v797, %v1166
        %v1215 = vmul.f32 %v802, %v1166
        %v1216 = vmul.f32 %v805, %v1166
        %v1217 = vmul.f32 %v810, %v1166
        %v1218 = vmul.f32 %v813, %v1166
        %v1219 = vmul.f32 %v818, %v1166
        %v1220 = vmul.f32 %v821, %v1166
        %v1221 = vmul.f32 %v826, %v1166
        %v1222 = vmul.f32 %v829, %v1166
        %v1223 = vmul.f32 %v834, %v1166
        %v1224 = vmul.f32 %v837, %v1166
        %v1225 = vmul.f32 %v842, %v1166
        %v1226 = vmul.f32 %v845, %v1166
        %v1227 = vmul.f32 %v850, %v1166
        %v1228 = vmul.f32 %v853, %v1166
        %v1229 = vmul.f32 %v858, %v1166
        %v1230 = vmul.f32 %v861, %v1166
        %v1232 = vlaneseq
        %v1233 = vshrl.u32 %v1232, 7
        %v1234 = vsub.s32 0, %v1233
        %v1235 = vrot.slane %v1162, %v1234
        %v1237 = vadd.f32 %v1167, %v1235
        %v1238 = vadd.f32 %v1168, %v1235
        %v1239 = vadd.f32 %v1169, %v1235
        %v1240 = vadd.f32 %v1170, %v1235
        %v1241 = vadd.f32 %v1171, %v1235
        %v1242 = vadd.f32 %v1172, %v1235
        %v1243 = vadd.f32 %v1173, %v1235
        %v1244 = vadd.f32 %v1174, %v1235
        %v1245 = vadd.f32 %v1175, %v1235
        %v1246 = vadd.f32 %v1176, %v1235
        %v1247 = vadd.f32 %v1177, %v1235
        %v1248 = vadd.f32 %v1178, %v1235
        %v1249 = vadd.f32 %v1179, %v1235
        %v1250 = vadd.f32 %v1180, %v1235
        %v1251 = vadd.f32 %v1181, %v1235
        %v1252 = vadd.f32 %v1182, %v1235
        %v1253 = vadd.f32 %v1183, %v1235
        %v1254 = vadd.f32 %v1184, %v1235
        %v1255 = vadd.f32 %v1185, %v1235
        %v1256 = vadd.f32 %v1186, %v1235
        %v1257 = vadd.f32 %v1187, %v1235
        %v1258 = vadd.f32 %v1188, %v1235
        %v1259 = vadd.f32 %v1189, %v1235
        %v1260 = vadd.f32 %v1190, %v1235
        %v1261 = vadd.f32 %v1191, %v1235
        %v1262 = vadd.f32 %v1192, %v1235
        %v1263 = vadd.f32 %v1193, %v1235
        %v1264 = vadd.f32 %v1194, %v1235
        %v1265 = vadd.f32 %v1195, %v1235
        %v1266 = vadd.f32 %v1196, %v1235
        %v1267 = vadd.f32 %v1197, %v1235
        %v1268 = vadd.f32 %v1198, %v1235
        %v1269 = vadd.f32 %v1199, %v1235
        %v1270 = vadd.f32 %v1200, %v1235
        %v1271 = vadd.f32 %v1201, %v1235
        %v1272 = vadd.f32 %v1202, %v1235
        %v1273 = vadd.f32 %v1203, %v1235
        %v1274 = vadd.f32 %v1204, %v1235
        %v1275 = vadd.f32 %v1205, %v1235
        %v1276 = vadd.f32 %v1206, %v1235
        %v1277 = vadd.f32 %v1207, %v1235
        %v1278 = vadd.f32 %v1208, %v1235
        %v1279 = vadd.f32 %v1209, %v1235
        %v1280 = vadd.f32 %v1210, %v1235
        %v1281 = vadd.f32 %v1211, %v1235
        %v1282 = vadd.f32 %v1212, %v1235
        %v1283 = vadd.f32 %v1213, %v1235
        %v1284 = vadd.f32 %v1214, %v1235
        %v1285 = vadd.f32 %v1215, %v1235
        %v1286 = vadd.f32 %v1216, %v1235
        %v1287 = vadd.f32 %v1217, %v1235
        %v1288 = vadd.f32 %v1218, %v1235
        %v1289 = vadd.f32 %v1219, %v1235
        %v1290 = vadd.f32 %v1220, %v1235
        %v1291 = vadd.f32 %v1221, %v1235
        %v1292 = vadd.f32 %v1222, %v1235
        %v1293 = vadd.f32 %v1223, %v1235
        %v1294 = vadd.f32 %v1224, %v1235
        %v1295 = vadd.f32 %v1225, %v1235
        %v1296 = vadd.f32 %v1226, %v1235
        %v1297 = vadd.f32 %v1227, %v1235
        %v1298 = vadd.f32 %v1228, %v1235
        %v1299 = vadd.f32 %v1229, %v1235
        %v1300 = vadd.f32 %v1230, %v1235
        %v1301 = vmax.f32 %v1237, 0.0
        %v1302 = vmax.f32 %v1238, 0.0
        %v1303 = vmax.f32 %v1239, 0.0
        %v1304 = vmax.f32 %v1240, 0.0
        %v1305 = vmax.f32 %v1241, 0.0
        %v1306 = vmax.f32 %v1242, 0.0
        %v1307 = vmax.f32 %v1243, 0.0
        %v1308 = vmax.f32 %v1244, 0.0
        %v1309 = vmax.f32 %v1245, 0.0
        %v1310 = vmax.f32 %v1246, 0.0
        %v1311 = vmax.f32 %v1247, 0.0
        %v1312 = vmax.f32 %v1248, 0.0
        %v1313 = vmax.f32 %v1249, 0.0
        %v1314 = vmax.f32 %v1250, 0.0
        %v1315 = vmax.f32 %v1251, 0.0
        %v1316 = vmax.f32 %v1252, 0.0
        %v1317 = vmax.f32 %v1253, 0.0
        %v1318 = vmax.f32 %v1254, 0.0
        %v1319 = vmax.f32 %v1255, 0.0
        %v1320 = vmax.f32 %v1256, 0.0
        %v1321 = vmax.f32 %v1257, 0.0
        %v1322 = vmax.f32 %v1258, 0.0
        %v1323 = vmax.f32 %v1259, 0.0
        %v1324 = vmax.f32 %v1260, 0.0
        %v1325 = vmax.f32 %v1261, 0.0
        %v1326 = vmax.f32 %v1262, 0.0
        %v1327 = vmax.f32 %v1263, 0.0
        %v1328 = vmax.f32 %v1264, 0.0
        %v1329 = vmax.f32 %v1265, 0.0
        %v1330 = vmax.f32 %v1266, 0.0
        %v1331 = vmax.f32 %v1267, 0.0
        %v1332 = vmax.f32 %v1268, 0.0
        %v1333 = vmax.f32 %v1269, 0.0
        %v1334 = vmax.f32 %v1270, 0.0
        %v1335 = vmax.f32 %v1271, 0.0
        %v1336 = vmax.f32 %v1272, 0.0
        %v1337 = vmax.f32 %v1273, 0.0
        %v1338 = vmax.f32 %v1274, 0.0
        %v1339 = vmax.f32 %v1275, 0.0
        %v1340 = vmax.f32 %v1276, 0.0
        %v1341 = vmax.f32 %v1277, 0.0
        %v1342 = vmax.f32 %v1278, 0.0
        %v1343 = vmax.f32 %v1279, 0.0
        %v1344 = vmax.f32 %v1280, 0.0
        %v1345 = vmax.f32 %v1281, 0.0
        %v1346 = vmax.f32 %v1282, 0.0
        %v1347 = vmax.f32 %v1283, 0.0
        %v1348 = vmax.f32 %v1284, 0.0
        %v1349 = vmax.f32 %v1285, 0.0
        %v1350 = vmax.f32 %v1286, 0.0
        %v1351 = vmax.f32 %v1287, 0.0
        %v1352 = vmax.f32 %v1288, 0.0
        %v1353 = vmax.f32 %v1289, 0.0
        %v1354 = vmax.f32 %v1290, 0.0
        %v1355 = vmax.f32 %v1291, 0.0
        %v1356 = vmax.f32 %v1292, 0.0
        %v1357 = vmax.f32 %v1293, 0.0
        %v1358 = vmax.f32 %v1294, 0.0
        %v1359 = vmax.f32 %v1295, 0.0
        %v1360 = vmax.f32 %v1296, 0.0
        %v1361 = vmax.f32 %v1297, 0.0
        %v1362 = vmax.f32 %v1298, 0.0
        %v1363 = vmax.f32 %v1299, 0.0
        %v1364 = vmax.f32 %v1300, 0.0
        %1365 = vst [vmem:[%s211] sm:$0xff] %v1301
        %1366 = vst [vmem:[%s211 + $0x8] sm:$0xff] %v1302
        %1367 = vst [vmem:[%s211 + $0x10] sm:$0xff] %v1303
        %1368 = vst [vmem:[%s211 + $0x18] sm:$0xff] %v1304
        %1369 = vst [vmem:[%s211 + $0x20] sm:$0xff] %v1305
        %1370 = vst [vmem:[%s211 + $0x28] sm:$0xff] %v1306
        %1371 = vst [vmem:[%s211 + $0x30] sm:$0xff] %v1307
        %1372 = vst [vmem:[%s211 + $0x38] sm:$0xff] %v1308
        %1373 = vst [vmem:[%s211 + $0x40] sm:$0xff] %v1309
        %1374 = vst [vmem:[%s211 + $0x48] sm:$0xff] %v1310
        %1375 = vst [vmem:[%s211 + $0x50] sm:$0xff] %v1311
        %1376 = vst [vmem:[%s211 + $0x58] sm:$0xff] %v1312
        %1377 = vst [vmem:[%s211 + $0x60] sm:$0xff] %v1313
        %1378 = vst [vmem:[%s211 + $0x68] sm:$0xff] %v1314
        %1379 = vst [vmem:[%s211 + $0x70] sm:$0xff] %v1315
        %1380 = vst [vmem:[%s211 + $0x78] sm:$0xff] %v1316
        %1381 = vst [vmem:[%s211 + $0x80] sm:$0xff] %v1317
        %1382 = vst [vmem:[%s211 + $0x88] sm:$0xff] %v1318
        %1383 = vst [vmem:[%s211 + $0x90] sm:$0xff] %v1319
        %1384 = vst [vmem:[%s211 + $0x98] sm:$0xff] %v1320
        %1385 = vst [vmem:[%s211 + $0xa0] sm:$0xff] %v1321
        %1386 = vst [vmem:[%s211 + $0xa8] sm:$0xff] %v1322
        %1387 = vst [vmem:[%s211 + $0xb0] sm:$0xff] %v1323
        %1388 = vst [vmem:[%s211 + $0xb8] sm:$0xff] %v1324
        %1389 = vst [vmem:[%s211 + $0xc0] sm:$0xff] %v1325
        %1390 = vst [vmem:[%s211 + $0xc8] sm:$0xff] %v1326
        %1391 = vst [vmem:[%s211 + $0xd0] sm:$0xff] %v1327
        %1392 = vst [vmem:[%s211 + $0xd8] sm:$0xff] %v1328
        %1393 = vst [vmem:[%s211 + $0xe0] sm:$0xff] %v1329
        %1394 = vst [vmem:[%s211 + $0xe8] sm:$0xff] %v1330
        %1395 = vst [vmem:[%s211 + $0xf0] sm:$0xff] %v1331
        %1396 = vst [vmem:[%s211 + $0xf8] sm:$0xff] %v1332
        %1397 = vst [vmem:[%s211 + $0x100] sm:$0xff] %v1333
        %1398 = vst [vmem:[%s211 + $0x108] sm:$0xff] %v1334
        %1399 = vst [vmem:[%s211 + $0x110] sm:$0xff] %v1335
        %1400 = vst [vmem:[%s211 + $0x118] sm:$0xff] %v1336
        %1401 = vst [vmem:[%s211 + $0x120] sm:$0xff] %v1337
        %1402 = vst [vmem:[%s211 + $0x128] sm:$0xff] %v1338
        %1403 = vst [vmem:[%s211 + $0x130] sm:$0xff] %v1339
        %1404 = vst [vmem:[%s211 + $0x138] sm:$0xff] %v1340
        %1405 = vst [vmem:[%s211 + $0x140] sm:$0xff] %v1341
        %1406 = vst [vmem:[%s211 + $0x148] sm:$0xff] %v1342
        %1407 = vst [vmem:[%s211 + $0x150] sm:$0xff] %v1343
        %1408 = vst [vmem:[%s211 + $0x158] sm:$0xff] %v1344
        %1409 = vst [vmem:[%s211 + $0x160] sm:$0xff] %v1345
        %1410 = vst [vmem:[%s211 + $0x168] sm:$0xff] %v1346
        %1411 = vst [vmem:[%s211 + $0x170] sm:$0xff] %v1347
        %1412 = vst [vmem:[%s211 + $0x178] sm:$0xff] %v1348
        %1413 = vst [vmem:[%s211 + $0x180] sm:$0xff] %v1349
        %1414 = vst [vmem:[%s211 + $0x188] sm:$0xff] %v1350
        %1415 = vst [vmem:[%s211 + $0x190] sm:$0xff] %v1351
        %1416 = vst [vmem:[%s211 + $0x198] sm:$0xff] %v1352
        %1417 = vst [vmem:[%s211 + $0x1a0] sm:$0xff] %v1353
        %1418 = vst [vmem:[%s211 + $0x1a8] sm:$0xff] %v1354
        %1419 = vst [vmem:[%s211 + $0x1b0] sm:$0xff] %v1355
        %1420 = vst [vmem:[%s211 + $0x1b8] sm:$0xff] %v1356
        %1421 = vst [vmem:[%s211 + $0x1c0] sm:$0xff] %v1357
        %1422 = vst [vmem:[%s211 + $0x1c8] sm:$0xff] %v1358
        %1423 = vst [vmem:[%s211 + $0x1d0] sm:$0xff] %v1359
        %1424 = vst [vmem:[%s211 + $0x1d8] sm:$0xff] %v1360
        %1425 = vst [vmem:[%s211 + $0x1e0] sm:$0xff] %v1361
        %1426 = vst [vmem:[%s211 + $0x1e8] sm:$0xff] %v1362
        %1427 = vst [vmem:[%s211 + $0x1f0] sm:$0xff] %v1363
        %1428 = vst [vmem:[%s211 + $0x1f8] sm:$0xff] %v1364
      $region48: #{main_net_forward.4} parent=35 // pred_fallthru
        _
      %s1429 = smul.u32 64, %s20
      %p1430 = scmp.lt.s32.totalorder %s1429, 63
      %s1431 = scalar_select %p1430, %s1429, 63
      %s1432 = smul.addr %s1431, 8
      %s1433 = scalar_lea.vmem %s4, %s1432
      // Predicated region
      $region49: #{main_net_forward.4} parent=35 // pred_check
        %p1434 = pneg %p134
      $region50: #{main_net_forward.4} parent=35 // pred_check_branch
        %1436 = sbr.rel (%p1434) target = $region52
      $region51: #{main_net_forward.4} parent=35 // pred_region
        %s1437 = smul.u32 64, %s20
      $region52: #{main_net_forward.4} parent=35 // pred_fallthru
        _
      // Predicated region
      $region53: #{main_net_forward.4} parent=35 // pred_check
        %p1438 = pneg %p134
      $region54: #{main_net_forward.4} parent=35 // pred_check_branch
        %1440 = sbr.rel (%p1438) target = $region56
      $region55: #{main_net_forward.4} parent=35 // pred_region
        %s1441 = smul.u32 64, %s20
        %p1442 = scmp.lt.s32.totalorder %s1441, 63
        %s1443 = scalar_select %p1442, %s1441, 63
        %s1444 = smul.addr %s1443, 8
        %s1445 = scalar_lea.vmem %s4, %s1444
      $region56: #{main_net_forward.4} parent=35 // pred_fallthru
        _
    $region36: #{main_net_forward.4} parent=5 // pred_fallthru
      _
    %p1446 = scmp.le.s32.totalorder 2, %s10
    // Predicated region
    $region57: #{main_net_forward.4} parent=5 // pred_check
      %p1447 = pneg %p1446
    $region58: #{main_net_forward.4} parent=5 // pred_check_branch
      %1449 = sbr.rel (%p1447) target = $region60
    $region59: #{main_net_forward.4} parent=5 // pred_region
      %s1450 = ssub.s32 %s10, 2
    $region60: #{main_net_forward.4} parent=5 // pred_fallthru
      _
  $region6: #{main_net_forward.4} parent=0 // loop_footer
    %s14 = sadd.s32 1, %s10
  $region7: #{main_net_forward.4} parent=0 // loop_footer_branch
    %9 = sbr.rel target = $region3
  $region8: #{main_net_forward.4} parent=0 // loop_exit
    _

</llo_original>
